<compile_context>
chip_gen: v7x
topology: tpu7x:2x2x1
jax: 0.10.0
libtpu: 0.0.40
codegen_flags: <defaults>
</compile_context>

<pallas_src>
import functools
import math

import jax
import jax.numpy as jnp
from jax.experimental import pallas as pl
from jax.experimental.pallas import tpu as pltpu


# ---------------------------------------------------------------------------
# Fused MHA kernel: one grid step handles `tb` batch elements end-to-end.
# ---------------------------------------------------------------------------
def _fused_mha_kernel(*refs, n_heads, head_dim, self_attn):
    if self_attn:
        (x_ref, wq_ref, bq_ref, wk_ref, bk_ref, wv_ref, bv_ref,
         wo_ref, bo_ref, o_ref) = refs
        xq_ref = x_ref
    else:
        (xq_ref, xk_ref, xv_ref, wq_ref, bq_ref, wk_ref, bk_ref,
         wv_ref, bv_ref, wo_ref, bo_ref, o_ref) = refs

    tb, S, D = xq_ref.shape
    dh = head_dim

    xq = xq_ref[...].reshape(tb * S, D)
    if self_attn:
        xk = xq
        xv = xq
    else:
        xk = xk_ref[...].reshape(tb * S, D)
        xv = xv_ref[...].reshape(tb * S, D)

    # Accumulate the output projection head by head (no lane concatenation).
    acc = jnp.zeros((tb * S, D), jnp.float32)
    for h in range(n_heads):
        q = (jnp.dot(xq, wq_ref[h], preferred_element_type=jnp.float32)
             + bq_ref[h]).reshape(tb, S, dh)          # pre-scaled by 1/sqrt(dh)
        k = (jnp.dot(xk, wk_ref[h], preferred_element_type=jnp.float32)
             + bk_ref[h]).reshape(tb, S, dh)
        v = (jnp.dot(xv, wv_ref[h], preferred_element_type=jnp.float32)
             + bv_ref[h]).reshape(tb, S, dh)

        s = jnp.einsum('bqd,bkd->bqk', q, k,
                       preferred_element_type=jnp.float32)      # (tb, S, S)
        m = jnp.max(s, axis=-1, keepdims=True)
        p = jnp.exp(s - m)
        p = p / jnp.sum(p, axis=-1, keepdims=True)
        ctx = jnp.einsum('bqk,bkd->bqd', p, v,
                         preferred_element_type=jnp.float32)    # (tb, S, dh)

        acc = acc + jnp.dot(ctx.reshape(tb * S, dh), wo_ref[h],
                            preferred_element_type=jnp.float32)

    out = acc + bo_ref[...]
    o_ref[...] = out.reshape(tb, S, D).astype(o_ref.dtype)


# ---------------------------------------------------------------------------
# Full MultiHeadAttention forward (supports the 3-D and 4-D torch branches).
# Weights are (in_features, out_features), i.e. transpose of nn.Linear.weight.
# ---------------------------------------------------------------------------
def multi_head_attention_forward(query, key, value, params, *, n_heads):
    *batch, S, D = query.shape
    assert D % n_heads == 0
    dh = D // n_heads
    B_flat = int(math.prod(batch)) if batch else 1
    scale = 1.0 / math.sqrt(dh)

    self_attn = (key is query) and (value is query)

    # --- one-time weight repacking into per-head layout (wrapper-side JAX) ---
    def per_head_in(w, b, s=1.0):
        wh = (w * s).reshape(D, n_heads, dh).transpose(1, 0, 2)   # (H, D, dh)
        bh = (b * s).reshape(n_heads, 1, dh)                      # (H, 1, dh)
        return wh, bh

    wq_h, bq_h = per_head_in(params['wq'], params['bq'], scale)   # scale folded in
    wk_h, bk_h = per_head_in(params['wk'], params['bk'])
    wv_h, bv_h = per_head_in(params['wv'], params['bv'])
    wo_h = params['wo'].reshape(n_heads, dh, D)                   # (H, dh, D)
    bo2 = params['bo'].reshape(1, D)

    xq = query.reshape(B_flat, S, D)

    # Batch-tile size: largest divisor of B_flat targeting ~256 matmul rows / step
    # (no padding, few large grid steps).
    cap = max(1, 256 // max(S, 1))
    tb = 1
    for t in range(min(B_flat, cap), 0, -1):
        if B_flat % t == 0:
            tb = t
            break

    x_spec = pl.BlockSpec((tb, S, D), lambda i: (i, 0, 0))

    def full_spec(shape):
        return pl.BlockSpec(shape, lambda i, _s=len(shape): (0,) * _s)

    weight_inputs = [wq_h, bq_h, wk_h, bk_h, wv_h, bv_h, wo_h, bo2]
    weight_specs = [full_spec(w.shape) for w in weight_inputs]

    kernel = functools.partial(_fused_mha_kernel, n_heads=n_heads,
                               head_dim=dh, self_attn=self_attn)

    if self_attn:
        inputs = (xq, *weight_inputs)
        in_specs = [x_spec] + weight_specs
    else:
        xk = key.reshape(B_flat, S, D)
        xv = value.reshape(B_flat, S, D)
        inputs = (xq, xk, xv, *weight_inputs)
        in_specs = [x_spec, x_spec, x_spec] + weight_specs

    out = pl.pallas_call(
        kernel,
        out_shape=jax.ShapeDtypeStruct((B_flat, S, D), query.dtype),
        grid_spec=pltpu.PrefetchScalarGridSpec(
            num_scalar_prefetch=0,
            grid=(B_flat // tb,),
            in_specs=in_specs,
            out_specs=pl.BlockSpec((tb, S, D), lambda i: (i, 0, 0)),
        ),
        compiler_params=pltpu.CompilerParams(
            dimension_semantics=("parallel",),
            vmem_limit_bytes=64 * 1024 * 1024,
        ),
    )(*inputs)
    return out.reshape(*batch, S, D)


# ---------------------------------------------------------------------------
# Pure-JAX reference (mirrors the torch module exactly, eval mode, mask=None)
# ---------------------------------------------------------------------------
def mha_reference(query, key, value, params, *, n_heads):
    *batch, S, D = query.shape
    dh = D // n_heads

    def proj(x, w, b):
        return x @ w + b

    def split(t):
        return jnp.moveaxis(t.reshape(*batch, S, n_heads, dh), -2, -3)

    q = split(proj(query, params['wq'], params['bq']))
    k = split(proj(key, params['wk'], params['bk']))
    v = split(proj(value, params['wv'], params['bv']))
    scores = jnp.einsum('...qd,...kd->...qk', q, k) / math.sqrt(dh)
    p = jax.nn.softmax(scores, axis=-1)
    ctx = jnp.einsum('...qk,...kd->...qd', p, v)
    ctx = jnp.moveaxis(ctx, -3, -2).reshape(*batch, S, D)
    return ctx @ params['wo'] + params['bo']


if __name__ == "__main__":
    hidden_dim = 32
    n_heads = 4
    B, S = 2, 8
    D = hidden_dim

    key0 = jax.random.PRNGKey(0)
    keys = jax.random.split(key0, 11)
    params = {
        'wq': jax.random.normal(keys[0], (D, D), jnp.float32) * 0.1,
        'bq': jax.random.normal(keys[1], (D,), jnp.float32) * 0.1,
        'wk': jax.random.normal(keys[2], (D, D), jnp.float32) * 0.1,
        'bk': jax.random.normal(keys[3], (D,), jnp.float32) * 0.1,
        'wv': jax.random.normal(keys[4], (D, D), jnp.float32) * 0.1,
        'bv': jax.random.normal(keys[5], (D,), jnp.float32) * 0.1,
        'wo': jax.random.normal(keys[6], (D, D), jnp.float32) * 0.1,
        'bo': jax.random.normal(keys[7], (D,), jnp.float32) * 0.1,
    }

    # 3-D branch (B, S, hidden): self-attention, mask=None
    x3 = jax.random.normal(keys[8], (B, S, D), jnp.float32)
    out3 = multi_head_attention_forward(x3, x3, x3, params, n_heads=n_heads)
    out3 = jax.block_until_ready(out3)
    ref3 = mha_reference(x3, x3, x3, params, n_heads=n_heads)
    assert out3.shape == (B, S, D)
    assert jnp.allclose(out3, ref3, atol=1e-4, rtol=1e-4), \
        float(jnp.max(jnp.abs(out3 - ref3)))

    # 4-D branch (B, G, S, hidden), as in the torch module's dim()==4 path
    x4 = jax.random.normal(keys[9], (2, 3, S, D), jnp.float32)
    out4 = multi_head_attention_forward(x4, x4, x4, params, n_heads=n_heads)
    out4 = jax.block_until_ready(out4)
    ref4 = mha_reference(x4, x4, x4, params, n_heads=n_heads)
    assert out4.shape == (2, 3, S, D)
    assert jnp.allclose(out4, ref4, atol=1e-4, rtol=1e-4), \
        float(jnp.max(jnp.abs(out4 - ref4)))

    # cross-attention path (query != key/value objects)
    y3 = jax.random.normal(keys[10], (B, S, D), jnp.float32)
    outx = multi_head_attention_forward(x3, y3, y3, params, n_heads=n_heads)
    outx = jax.block_until_ready(outx)
    refx = mha_reference(x3, y3, y3, params, n_heads=n_heads)
    assert jnp.allclose(outx, refx, atol=1e-4, rtol=1e-4), \
        float(jnp.max(jnp.abs(outx - refx)))

    print("KERNEL_OK")
</pallas_src>

<mosaic_0001>
module attributes {stable_mosaic.version = 11 : i64} {
  func.func @_fused_mha_kernel(%arg0: i32, %arg1: memref<2x8x32xf32, #tpu.memory_space<vmem>>, %arg2: memref<4x32x8xf32, #tpu.memory_space<vmem>>, %arg3: memref<4x1x8xf32, #tpu.memory_space<vmem>>, %arg4: memref<4x32x8xf32, #tpu.memory_space<vmem>>, %arg5: memref<4x1x8xf32, #tpu.memory_space<vmem>>, %arg6: memref<4x32x8xf32, #tpu.memory_space<vmem>>, %arg7: memref<4x1x8xf32, #tpu.memory_space<vmem>>, %arg8: memref<4x8x32xf32, #tpu.memory_space<vmem>>, %arg9: memref<1x32xf32, #tpu.memory_space<vmem>>, %arg10: memref<2x8x32xf32, #tpu.memory_space<vmem>>) attributes {dimension_semantics = [#tpu.dimension_semantics<parallel>], iteration_bounds = array<i64: 1>, scalar_prefetch = 0 : i64, scratch_operands = 0 : i64, tpu.core_type = #tpu.core_type<tc>, window_params = [{transform_indices = @transform_0, window_bounds = array<i64: 2, 8, 32>}, {pipeline_mode = #tpu.pipeline_mode<synchronous>, transform_indices = @transform_1, window_bounds = array<i64: 4, 32, 8>}, {pipeline_mode = #tpu.pipeline_mode<synchronous>, transform_indices = @transform_2, window_bounds = array<i64: 4, 1, 8>}, {pipeline_mode = #tpu.pipeline_mode<synchronous>, transform_indices = @transform_3, window_bounds = array<i64: 4, 32, 8>}, {pipeline_mode = #tpu.pipeline_mode<synchronous>, transform_indices = @transform_4, window_bounds = array<i64: 4, 1, 8>}, {pipeline_mode = #tpu.pipeline_mode<synchronous>, transform_indices = @transform_5, window_bounds = array<i64: 4, 32, 8>}, {pipeline_mode = #tpu.pipeline_mode<synchronous>, transform_indices = @transform_6, window_bounds = array<i64: 4, 1, 8>}, {pipeline_mode = #tpu.pipeline_mode<synchronous>, transform_indices = @transform_7, window_bounds = array<i64: 4, 8, 32>}, {pipeline_mode = #tpu.pipeline_mode<synchronous>, transform_indices = @transform_8, window_bounds = array<i64: 1, 32>}, {transform_indices = @transform_9, window_bounds = array<i64: 2, 8, 32>}]} {
    %c0 = arith.constant 0 : index
    %c0_0 = arith.constant 0 : index
    %c0_1 = arith.constant 0 : index
    %0 = vector.load %arg1[%c0, %c0_0, %c0_1] : memref<2x8x32xf32, #tpu.memory_space<vmem>>, vector<2x8x32xf32>
    %1 = vector.shape_cast %0 : vector<2x8x32xf32> to vector<16x32xf32>
    %cst = arith.constant 0.000000e+00 : f32
    %2 = vector.broadcast %cst : f32 to vector<16x32xf32>
    %c0_2 = arith.constant 0 : index
    %c0_3 = arith.constant 0 : index
    %c0_4 = arith.constant 0 : index
    %3 = vector.load %arg2[%c0_2, %c0_3, %c0_4] : memref<4x32x8xf32, #tpu.memory_space<vmem>>, vector<1x32x8xf32>
    %4 = vector.shape_cast %3 : vector<1x32x8xf32> to vector<32x8xf32>
    %cst_5 = arith.constant dense<0.000000e+00> : vector<16x8xf32>
    %5 = tpu.matmul %1, %4, %cst_5 {dimension_numbers = #tpu.dot_dimension_numbers<[1], [0], [0], [1], [0, 0, 1, 1], [], []>} : vector<16x32xf32>, vector<32x8xf32>, vector<16x8xf32> -> vector<16x8xf32>
    %c0_6 = arith.constant 0 : index
    %c0_7 = arith.constant 0 : index
    %c0_8 = arith.constant 0 : index
    %6 = vector.load %arg3[%c0_6, %c0_7, %c0_8] : memref<4x1x8xf32, #tpu.memory_space<vmem>>, vector<1x1x8xf32>
    %7 = vector.shape_cast %6 : vector<1x1x8xf32> to vector<1x8xf32>
    %8 = vector.broadcast %7 : vector<1x8xf32> to vector<16x8xf32>
    %9 = arith.addf %5, %8 : vector<16x8xf32>
    %10 = vector.shape_cast %9 : vector<16x8xf32> to vector<2x8x8xf32>
    %c0_9 = arith.constant 0 : index
    %c0_10 = arith.constant 0 : index
    %c0_11 = arith.constant 0 : index
    %11 = vector.load %arg4[%c0_9, %c0_10, %c0_11] : memref<4x32x8xf32, #tpu.memory_space<vmem>>, vector<1x32x8xf32>
    %12 = vector.shape_cast %11 : vector<1x32x8xf32> to vector<32x8xf32>
    %cst_12 = arith.constant dense<0.000000e+00> : vector<16x8xf32>
    %13 = tpu.matmul %1, %12, %cst_12 {dimension_numbers = #tpu.dot_dimension_numbers<[1], [0], [0], [1], [0, 0, 1, 1], [], []>} : vector<16x32xf32>, vector<32x8xf32>, vector<16x8xf32> -> vector<16x8xf32>
    %c0_13 = arith.constant 0 : index
    %c0_14 = arith.constant 0 : index
    %c0_15 = arith.constant 0 : index
    %14 = vector.load %arg5[%c0_13, %c0_14, %c0_15] : memref<4x1x8xf32, #tpu.memory_space<vmem>>, vector<1x1x8xf32>
    %15 = vector.shape_cast %14 : vector<1x1x8xf32> to vector<1x8xf32>
    %16 = vector.broadcast %15 : vector<1x8xf32> to vector<16x8xf32>
    %17 = arith.addf %13, %16 : vector<16x8xf32>
    %18 = vector.shape_cast %17 : vector<16x8xf32> to vector<2x8x8xf32>
    %c0_16 = arith.constant 0 : index
    %c0_17 = arith.constant 0 : index
    %c0_18 = arith.constant 0 : index
    %19 = vector.load %arg6[%c0_16, %c0_17, %c0_18] : memref<4x32x8xf32, #tpu.memory_space<vmem>>, vector<1x32x8xf32>
    %20 = vector.shape_cast %19 : vector<1x32x8xf32> to vector<32x8xf32>
    %cst_19 = arith.constant dense<0.000000e+00> : vector<16x8xf32>
    %21 = tpu.matmul %1, %20, %cst_19 {dimension_numbers = #tpu.dot_dimension_numbers<[1], [0], [0], [1], [0, 0, 1, 1], [], []>} : vector<16x32xf32>, vector<32x8xf32>, vector<16x8xf32> -> vector<16x8xf32>
    %c0_20 = arith.constant 0 : index
    %c0_21 = arith.constant 0 : index
    %c0_22 = arith.constant 0 : index
    %22 = vector.load %arg7[%c0_20, %c0_21, %c0_22] : memref<4x1x8xf32, #tpu.memory_space<vmem>>, vector<1x1x8xf32>
    %23 = vector.shape_cast %22 : vector<1x1x8xf32> to vector<1x8xf32>
    %24 = vector.broadcast %23 : vector<1x8xf32> to vector<16x8xf32>
    %25 = arith.addf %21, %24 : vector<16x8xf32>
    %26 = vector.shape_cast %25 : vector<16x8xf32> to vector<2x8x8xf32>
    "tpu.trace_start"() <{level = 10 : i32, message = "bqd,bkd->bqk"}> : () -> ()
    %cst_23 = arith.constant dense<0.000000e+00> : vector<2x8x8xf32>
    %27 = tpu.matmul %10, %18, %cst_23 {dimension_numbers = #tpu.dot_dimension_numbers<[2], [2], [1], [1], [0, 0, 0, 1, 1, 1], [0], [0]>} : vector<2x8x8xf32>, vector<2x8x8xf32>, vector<2x8x8xf32> -> vector<2x8x8xf32>
    "tpu.trace_stop"() : () -> ()
    %cst_24 = arith.constant dense<0xFF800000> : vector<2x8xf32>
    %28 = vector.multi_reduction <maximumf>, %27, %cst_24 [2] : vector<2x8x8xf32> to vector<2x8xf32>
    %29 = vector.shape_cast %28 : vector<2x8xf32> to vector<2x8x1xf32>
    %30 = vector.broadcast %29 : vector<2x8x1xf32> to vector<2x8x8xf32>
    %31 = arith.subf %27, %30 : vector<2x8x8xf32>
    %32 = math.exp %31 : vector<2x8x8xf32>
    %cst_25 = arith.constant dense<0.000000e+00> : vector<2x8xf32>
    %33 = vector.multi_reduction <add>, %32, %cst_25 [2] : vector<2x8x8xf32> to vector<2x8xf32>
    %34 = vector.shape_cast %33 : vector<2x8xf32> to vector<2x8x1xf32>
    %35 = vector.broadcast %34 : vector<2x8x1xf32> to vector<2x8x8xf32>
    %36 = arith.divf %32, %35 : vector<2x8x8xf32>
    "tpu.trace_start"() <{level = 10 : i32, message = "bqk,bkd->bqd"}> : () -> ()
    %cst_26 = arith.constant dense<0.000000e+00> : vector<2x8x8xf32>
    %37 = tpu.matmul %36, %26, %cst_26 {dimension_numbers = #tpu.dot_dimension_numbers<[2], [1], [1], [2], [0, 0, 0, 1, 1, 2], [0], [0]>} : vector<2x8x8xf32>, vector<2x8x8xf32>, vector<2x8x8xf32> -> vector<2x8x8xf32>
    "tpu.trace_stop"() : () -> ()
    %38 = vector.shape_cast %37 : vector<2x8x8xf32> to vector<16x8xf32>
    %c0_27 = arith.constant 0 : index
    %c0_28 = arith.constant 0 : index
    %c0_29 = arith.constant 0 : index
    %39 = vector.load %arg8[%c0_27, %c0_28, %c0_29] : memref<4x8x32xf32, #tpu.memory_space<vmem>>, vector<1x8x32xf32>
    %40 = vector.shape_cast %39 : vector<1x8x32xf32> to vector<8x32xf32>
    %cst_30 = arith.constant dense<0.000000e+00> : vector<16x32xf32>
    %41 = tpu.matmul %38, %40, %cst_30 {dimension_numbers = #tpu.dot_dimension_numbers<[1], [0], [0], [1], [0, 0, 1, 1], [], []>} : vector<16x8xf32>, vector<8x32xf32>, vector<16x32xf32> -> vector<16x32xf32>
    %42 = arith.addf %2, %41 : vector<16x32xf32>
    %c1 = arith.constant 1 : index
    %c0_31 = arith.constant 0 : index
    %c0_32 = arith.constant 0 : index
    %43 = vector.load %arg2[%c1, %c0_31, %c0_32] : memref<4x32x8xf32, #tpu.memory_space<vmem>>, vector<1x32x8xf32>
    %44 = vector.shape_cast %43 : vector<1x32x8xf32> to vector<32x8xf32>
    %cst_33 = arith.constant dense<0.000000e+00> : vector<16x8xf32>
    %45 = tpu.matmul %1, %44, %cst_33 {dimension_numbers = #tpu.dot_dimension_numbers<[1], [0], [0], [1], [0, 0, 1, 1], [], []>} : vector<16x32xf32>, vector<32x8xf32>, vector<16x8xf32> -> vector<16x8xf32>
    %c1_34 = arith.constant 1 : index
    %c0_35 = arith.constant 0 : index
    %c0_36 = arith.constant 0 : index
    %46 = vector.load %arg3[%c1_34, %c0_35, %c0_36] : memref<4x1x8xf32, #tpu.memory_space<vmem>>, vector<1x1x8xf32>
    %47 = vector.shape_cast %46 : vector<1x1x8xf32> to vector<1x8xf32>
    %48 = vector.broadcast %47 : vector<1x8xf32> to vector<16x8xf32>
    %49 = arith.addf %45, %48 : vector<16x8xf32>
    %50 = vector.shape_cast %49 : vector<16x8xf32> to vector<2x8x8xf32>
    %c1_37 = arith.constant 1 : index
    %c0_38 = arith.constant 0 : index
    %c0_39 = arith.constant 0 : index
    %51 = vector.load %arg4[%c1_37, %c0_38, %c0_39] : memref<4x32x8xf32, #tpu.memory_space<vmem>>, vector<1x32x8xf32>
    %52 = vector.shape_cast %51 : vector<1x32x8xf32> to vector<32x8xf32>
    %cst_40 = arith.constant dense<0.000000e+00> : vector<16x8xf32>
    %53 = tpu.matmul %1, %52, %cst_40 {dimension_numbers = #tpu.dot_dimension_numbers<[1], [0], [0], [1], [0, 0, 1, 1], [], []>} : vector<16x32xf32>, vector<32x8xf32>, vector<16x8xf32> -> vector<16x8xf32>
    %c1_41 = arith.constant 1 : index
    %c0_42 = arith.constant 0 : index
    %c0_43 = arith.constant 0 : index
    %54 = vector.load %arg5[%c1_41, %c0_42, %c0_43] : memref<4x1x8xf32, #tpu.memory_space<vmem>>, vector<1x1x8xf32>
    %55 = vector.shape_cast %54 : vector<1x1x8xf32> to vector<1x8xf32>
    %56 = vector.broadcast %55 : vector<1x8xf32> to vector<16x8xf32>
    %57 = arith.addf %53, %56 : vector<16x8xf32>
    %58 = vector.shape_cast %57 : vector<16x8xf32> to vector<2x8x8xf32>
    %c1_44 = arith.constant 1 : index
    %c0_45 = arith.constant 0 : index
    %c0_46 = arith.constant 0 : index
    %59 = vector.load %arg6[%c1_44, %c0_45, %c0_46] : memref<4x32x8xf32, #tpu.memory_space<vmem>>, vector<1x32x8xf32>
    %60 = vector.shape_cast %59 : vector<1x32x8xf32> to vector<32x8xf32>
    %cst_47 = arith.constant dense<0.000000e+00> : vector<16x8xf32>
    %61 = tpu.matmul %1, %60, %cst_47 {dimension_numbers = #tpu.dot_dimension_numbers<[1], [0], [0], [1], [0, 0, 1, 1], [], []>} : vector<16x32xf32>, vector<32x8xf32>, vector<16x8xf32> -> vector<16x8xf32>
    %c1_48 = arith.constant 1 : index
    %c0_49 = arith.constant 0 : index
    %c0_50 = arith.constant 0 : index
    %62 = vector.load %arg7[%c1_48, %c0_49, %c0_50] : memref<4x1x8xf32, #tpu.memory_space<vmem>>, vector<1x1x8xf32>
    %63 = vector.shape_cast %62 : vector<1x1x8xf32> to vector<1x8xf32>
    %64 = vector.broadcast %63 : vector<1x8xf32> to vector<16x8xf32>
    %65 = arith.addf %61, %64 : vector<16x8xf32>
    %66 = vector.shape_cast %65 : vector<16x8xf32> to vector<2x8x8xf32>
    "tpu.trace_start"() <{level = 10 : i32, message = "bqd,bkd->bqk"}> : () -> ()
    %cst_51 = arith.constant dense<0.000000e+00> : vector<2x8x8xf32>
    %67 = tpu.matmul %50, %58, %cst_51 {dimension_numbers = #tpu.dot_dimension_numbers<[2], [2], [1], [1], [0, 0, 0, 1, 1, 1], [0], [0]>} : vector<2x8x8xf32>, vector<2x8x8xf32>, vector<2x8x8xf32> -> vector<2x8x8xf32>
    "tpu.trace_stop"() : () -> ()
    %cst_52 = arith.constant dense<0xFF800000> : vector<2x8xf32>
    %68 = vector.multi_reduction <maximumf>, %67, %cst_52 [2] : vector<2x8x8xf32> to vector<2x8xf32>
    %69 = vector.shape_cast %68 : vector<2x8xf32> to vector<2x8x1xf32>
    %70 = vector.broadcast %69 : vector<2x8x1xf32> to vector<2x8x8xf32>
    %71 = arith.subf %67, %70 : vector<2x8x8xf32>
    %72 = math.exp %71 : vector<2x8x8xf32>
    %cst_53 = arith.constant dense<0.000000e+00> : vector<2x8xf32>
    %73 = vector.multi_reduction <add>, %72, %cst_53 [2] : vector<2x8x8xf32> to vector<2x8xf32>
    %74 = vector.shape_cast %73 : vector<2x8xf32> to vector<2x8x1xf32>
    %75 = vector.broadcast %74 : vector<2x8x1xf32> to vector<2x8x8xf32>
    %76 = arith.divf %72, %75 : vector<2x8x8xf32>
    "tpu.trace_start"() <{level = 10 : i32, message = "bqk,bkd->bqd"}> : () -> ()
    %cst_54 = arith.constant dense<0.000000e+00> : vector<2x8x8xf32>
    %77 = tpu.matmul %76, %66, %cst_54 {dimension_numbers = #tpu.dot_dimension_numbers<[2], [1], [1], [2], [0, 0, 0, 1, 1, 2], [0], [0]>} : vector<2x8x8xf32>, vector<2x8x8xf32>, vector<2x8x8xf32> -> vector<2x8x8xf32>
    "tpu.trace_stop"() : () -> ()
    %78 = vector.shape_cast %77 : vector<2x8x8xf32> to vector<16x8xf32>
    %c1_55 = arith.constant 1 : index
    %c0_56 = arith.constant 0 : index
    %c0_57 = arith.constant 0 : index
    %79 = vector.load %arg8[%c1_55, %c0_56, %c0_57] : memref<4x8x32xf32, #tpu.memory_space<vmem>>, vector<1x8x32xf32>
    %80 = vector.shape_cast %79 : vector<1x8x32xf32> to vector<8x32xf32>
    %cst_58 = arith.constant dense<0.000000e+00> : vector<16x32xf32>
    %81 = tpu.matmul %78, %80, %cst_58 {dimension_numbers = #tpu.dot_dimension_numbers<[1], [0], [0], [1], [0, 0, 1, 1], [], []>} : vector<16x8xf32>, vector<8x32xf32>, vector<16x32xf32> -> vector<16x32xf32>
    %82 = arith.addf %42, %81 : vector<16x32xf32>
    %c2 = arith.constant 2 : index
    %c0_59 = arith.constant 0 : index
    %c0_60 = arith.constant 0 : index
    %83 = vector.load %arg2[%c2, %c0_59, %c0_60] : memref<4x32x8xf32, #tpu.memory_space<vmem>>, vector<1x32x8xf32>
    %84 = vector.shape_cast %83 : vector<1x32x8xf32> to vector<32x8xf32>
    %cst_61 = arith.constant dense<0.000000e+00> : vector<16x8xf32>
    %85 = tpu.matmul %1, %84, %cst_61 {dimension_numbers = #tpu.dot_dimension_numbers<[1], [0], [0], [1], [0, 0, 1, 1], [], []>} : vector<16x32xf32>, vector<32x8xf32>, vector<16x8xf32> -> vector<16x8xf32>
    %c2_62 = arith.constant 2 : index
    %c0_63 = arith.constant 0 : index
    %c0_64 = arith.constant 0 : index
    %86 = vector.load %arg3[%c2_62, %c0_63, %c0_64] : memref<4x1x8xf32, #tpu.memory_space<vmem>>, vector<1x1x8xf32>
    %87 = vector.shape_cast %86 : vector<1x1x8xf32> to vector<1x8xf32>
    %88 = vector.broadcast %87 : vector<1x8xf32> to vector<16x8xf32>
    %89 = arith.addf %85, %88 : vector<16x8xf32>
    %90 = vector.shape_cast %89 : vector<16x8xf32> to vector<2x8x8xf32>
    %c2_65 = arith.constant 2 : index
    %c0_66 = arith.constant 0 : index
    %c0_67 = arith.constant 0 : index
    %91 = vector.load %arg4[%c2_65, %c0_66, %c0_67] : memref<4x32x8xf32, #tpu.memory_space<vmem>>, vector<1x32x8xf32>
    %92 = vector.shape_cast %91 : vector<1x32x8xf32> to vector<32x8xf32>
    %cst_68 = arith.constant dense<0.000000e+00> : vector<16x8xf32>
    %93 = tpu.matmul %1, %92, %cst_68 {dimension_numbers = #tpu.dot_dimension_numbers<[1], [0], [0], [1], [0, 0, 1, 1], [], []>} : vector<16x32xf32>, vector<32x8xf32>, vector<16x8xf32> -> vector<16x8xf32>
    %c2_69 = arith.constant 2 : index
    %c0_70 = arith.constant 0 : index
    %c0_71 = arith.constant 0 : index
    %94 = vector.load %arg5[%c2_69, %c0_70, %c0_71] : memref<4x1x8xf32, #tpu.memory_space<vmem>>, vector<1x1x8xf32>
    %95 = vector.shape_cast %94 : vector<1x1x8xf32> to vector<1x8xf32>
    %96 = vector.broadcast %95 : vector<1x8xf32> to vector<16x8xf32>
    %97 = arith.addf %93, %96 : vector<16x8xf32>
    %98 = vector.shape_cast %97 : vector<16x8xf32> to vector<2x8x8xf32>
    %c2_72 = arith.constant 2 : index
    %c0_73 = arith.constant 0 : index
    %c0_74 = arith.constant 0 : index
    %99 = vector.load %arg6[%c2_72, %c0_73, %c0_74] : memref<4x32x8xf32, #tpu.memory_space<vmem>>, vector<1x32x8xf32>
    %100 = vector.shape_cast %99 : vector<1x32x8xf32> to vector<32x8xf32>
    %cst_75 = arith.constant dense<0.000000e+00> : vector<16x8xf32>
    %101 = tpu.matmul %1, %100, %cst_75 {dimension_numbers = #tpu.dot_dimension_numbers<[1], [0], [0], [1], [0, 0, 1, 1], [], []>} : vector<16x32xf32>, vector<32x8xf32>, vector<16x8xf32> -> vector<16x8xf32>
    %c2_76 = arith.constant 2 : index
    %c0_77 = arith.constant 0 : index
    %c0_78 = arith.constant 0 : index
    %102 = vector.load %arg7[%c2_76, %c0_77, %c0_78] : memref<4x1x8xf32, #tpu.memory_space<vmem>>, vector<1x1x8xf32>
    %103 = vector.shape_cast %102 : vector<1x1x8xf32> to vector<1x8xf32>
    %104 = vector.broadcast %103 : vector<1x8xf32> to vector<16x8xf32>
    %105 = arith.addf %101, %104 : vector<16x8xf32>
    %106 = vector.shape_cast %105 : vector<16x8xf32> to vector<2x8x8xf32>
    "tpu.trace_start"() <{level = 10 : i32, message = "bqd,bkd->bqk"}> : () -> ()
    %cst_79 = arith.constant dense<0.000000e+00> : vector<2x8x8xf32>
    %107 = tpu.matmul %90, %98, %cst_79 {dimension_numbers = #tpu.dot_dimension_numbers<[2], [2], [1], [1], [0, 0, 0, 1, 1, 1], [0], [0]>} : vector<2x8x8xf32>, vector<2x8x8xf32>, vector<2x8x8xf32> -> vector<2x8x8xf32>
    "tpu.trace_stop"() : () -> ()
    %cst_80 = arith.constant dense<0xFF800000> : vector<2x8xf32>
    %108 = vector.multi_reduction <maximumf>, %107, %cst_80 [2] : vector<2x8x8xf32> to vector<2x8xf32>
    %109 = vector.shape_cast %108 : vector<2x8xf32> to vector<2x8x1xf32>
    %110 = vector.broadcast %109 : vector<2x8x1xf32> to vector<2x8x8xf32>
    %111 = arith.subf %107, %110 : vector<2x8x8xf32>
    %112 = math.exp %111 : vector<2x8x8xf32>
    %cst_81 = arith.constant dense<0.000000e+00> : vector<2x8xf32>
    %113 = vector.multi_reduction <add>, %112, %cst_81 [2] : vector<2x8x8xf32> to vector<2x8xf32>
    %114 = vector.shape_cast %113 : vector<2x8xf32> to vector<2x8x1xf32>
    %115 = vector.broadcast %114 : vector<2x8x1xf32> to vector<2x8x8xf32>
    %116 = arith.divf %112, %115 : vector<2x8x8xf32>
    "tpu.trace_start"() <{level = 10 : i32, message = "bqk,bkd->bqd"}> : () -> ()
    %cst_82 = arith.constant dense<0.000000e+00> : vector<2x8x8xf32>
    %117 = tpu.matmul %116, %106, %cst_82 {dimension_numbers = #tpu.dot_dimension_numbers<[2], [1], [1], [2], [0, 0, 0, 1, 1, 2], [0], [0]>} : vector<2x8x8xf32>, vector<2x8x8xf32>, vector<2x8x8xf32> -> vector<2x8x8xf32>
    "tpu.trace_stop"() : () -> ()
    %118 = vector.shape_cast %117 : vector<2x8x8xf32> to vector<16x8xf32>
    %c2_83 = arith.constant 2 : index
    %c0_84 = arith.constant 0 : index
    %c0_85 = arith.constant 0 : index
    %119 = vector.load %arg8[%c2_83, %c0_84, %c0_85] : memref<4x8x32xf32, #tpu.memory_space<vmem>>, vector<1x8x32xf32>
    %120 = vector.shape_cast %119 : vector<1x8x32xf32> to vector<8x32xf32>
    %cst_86 = arith.constant dense<0.000000e+00> : vector<16x32xf32>
    %121 = tpu.matmul %118, %120, %cst_86 {dimension_numbers = #tpu.dot_dimension_numbers<[1], [0], [0], [1], [0, 0, 1, 1], [], []>} : vector<16x8xf32>, vector<8x32xf32>, vector<16x32xf32> -> vector<16x32xf32>
    %122 = arith.addf %82, %121 : vector<16x32xf32>
    %c3 = arith.constant 3 : index
    %c0_87 = arith.constant 0 : index
    %c0_88 = arith.constant 0 : index
    %123 = vector.load %arg2[%c3, %c0_87, %c0_88] : memref<4x32x8xf32, #tpu.memory_space<vmem>>, vector<1x32x8xf32>
    %124 = vector.shape_cast %123 : vector<1x32x8xf32> to vector<32x8xf32>
    %cst_89 = arith.constant dense<0.000000e+00> : vector<16x8xf32>
    %125 = tpu.matmul %1, %124, %cst_89 {dimension_numbers = #tpu.dot_dimension_numbers<[1], [0], [0], [1], [0, 0, 1, 1], [], []>} : vector<16x32xf32>, vector<32x8xf32>, vector<16x8xf32> -> vector<16x8xf32>
    %c3_90 = arith.constant 3 : index
    %c0_91 = arith.constant 0 : index
    %c0_92 = arith.constant 0 : index
    %126 = vector.load %arg3[%c3_90, %c0_91, %c0_92] : memref<4x1x8xf32, #tpu.memory_space<vmem>>, vector<1x1x8xf32>
    %127 = vector.shape_cast %126 : vector<1x1x8xf32> to vector<1x8xf32>
    %128 = vector.broadcast %127 : vector<1x8xf32> to vector<16x8xf32>
    %129 = arith.addf %125, %128 : vector<16x8xf32>
    %130 = vector.shape_cast %129 : vector<16x8xf32> to vector<2x8x8xf32>
    %c3_93 = arith.constant 3 : index
    %c0_94 = arith.constant 0 : index
    %c0_95 = arith.constant 0 : index
    %131 = vector.load %arg4[%c3_93, %c0_94, %c0_95] : memref<4x32x8xf32, #tpu.memory_space<vmem>>, vector<1x32x8xf32>
    %132 = vector.shape_cast %131 : vector<1x32x8xf32> to vector<32x8xf32>
    %cst_96 = arith.constant dense<0.000000e+00> : vector<16x8xf32>
    %133 = tpu.matmul %1, %132, %cst_96 {dimension_numbers = #tpu.dot_dimension_numbers<[1], [0], [0], [1], [0, 0, 1, 1], [], []>} : vector<16x32xf32>, vector<32x8xf32>, vector<16x8xf32> -> vector<16x8xf32>
    %c3_97 = arith.constant 3 : index
    %c0_98 = arith.constant 0 : index
    %c0_99 = arith.constant 0 : index
    %134 = vector.load %arg5[%c3_97, %c0_98, %c0_99] : memref<4x1x8xf32, #tpu.memory_space<vmem>>, vector<1x1x8xf32>
    %135 = vector.shape_cast %134 : vector<1x1x8xf32> to vector<1x8xf32>
    %136 = vector.broadcast %135 : vector<1x8xf32> to vector<16x8xf32>
    %137 = arith.addf %133, %136 : vector<16x8xf32>
    %138 = vector.shape_cast %137 : vector<16x8xf32> to vector<2x8x8xf32>
    %c3_100 = arith.constant 3 : index
    %c0_101 = arith.constant 0 : index
    %c0_102 = arith.constant 0 : index
    %139 = vector.load %arg6[%c3_100, %c0_101, %c0_102] : memref<4x32x8xf32, #tpu.memory_space<vmem>>, vector<1x32x8xf32>
    %140 = vector.shape_cast %139 : vector<1x32x8xf32> to vector<32x8xf32>
    %cst_103 = arith.constant dense<0.000000e+00> : vector<16x8xf32>
    %141 = tpu.matmul %1, %140, %cst_103 {dimension_numbers = #tpu.dot_dimension_numbers<[1], [0], [0], [1], [0, 0, 1, 1], [], []>} : vector<16x32xf32>, vector<32x8xf32>, vector<16x8xf32> -> vector<16x8xf32>
    %c3_104 = arith.constant 3 : index
    %c0_105 = arith.constant 0 : index
    %c0_106 = arith.constant 0 : index
    %142 = vector.load %arg7[%c3_104, %c0_105, %c0_106] : memref<4x1x8xf32, #tpu.memory_space<vmem>>, vector<1x1x8xf32>
    %143 = vector.shape_cast %142 : vector<1x1x8xf32> to vector<1x8xf32>
    %144 = vector.broadcast %143 : vector<1x8xf32> to vector<16x8xf32>
    %145 = arith.addf %141, %144 : vector<16x8xf32>
    %146 = vector.shape_cast %145 : vector<16x8xf32> to vector<2x8x8xf32>
    "tpu.trace_start"() <{level = 10 : i32, message = "bqd,bkd->bqk"}> : () -> ()
    %cst_107 = arith.constant dense<0.000000e+00> : vector<2x8x8xf32>
    %147 = tpu.matmul %130, %138, %cst_107 {dimension_numbers = #tpu.dot_dimension_numbers<[2], [2], [1], [1], [0, 0, 0, 1, 1, 1], [0], [0]>} : vector<2x8x8xf32>, vector<2x8x8xf32>, vector<2x8x8xf32> -> vector<2x8x8xf32>
    "tpu.trace_stop"() : () -> ()
    %cst_108 = arith.constant dense<0xFF800000> : vector<2x8xf32>
    %148 = vector.multi_reduction <maximumf>, %147, %cst_108 [2] : vector<2x8x8xf32> to vector<2x8xf32>
    %149 = vector.shape_cast %148 : vector<2x8xf32> to vector<2x8x1xf32>
    %150 = vector.broadcast %149 : vector<2x8x1xf32> to vector<2x8x8xf32>
    %151 = arith.subf %147, %150 : vector<2x8x8xf32>
    %152 = math.exp %151 : vector<2x8x8xf32>
    %cst_109 = arith.constant dense<0.000000e+00> : vector<2x8xf32>
    %153 = vector.multi_reduction <add>, %152, %cst_109 [2] : vector<2x8x8xf32> to vector<2x8xf32>
    %154 = vector.shape_cast %153 : vector<2x8xf32> to vector<2x8x1xf32>
    %155 = vector.broadcast %154 : vector<2x8x1xf32> to vector<2x8x8xf32>
    %156 = arith.divf %152, %155 : vector<2x8x8xf32>
    "tpu.trace_start"() <{level = 10 : i32, message = "bqk,bkd->bqd"}> : () -> ()
    %cst_110 = arith.constant dense<0.000000e+00> : vector<2x8x8xf32>
    %157 = tpu.matmul %156, %146, %cst_110 {dimension_numbers = #tpu.dot_dimension_numbers<[2], [1], [1], [2], [0, 0, 0, 1, 1, 2], [0], [0]>} : vector<2x8x8xf32>, vector<2x8x8xf32>, vector<2x8x8xf32> -> vector<2x8x8xf32>
    "tpu.trace_stop"() : () -> ()
    %158 = vector.shape_cast %157 : vector<2x8x8xf32> to vector<16x8xf32>
    %c3_111 = arith.constant 3 : index
    %c0_112 = arith.constant 0 : index
    %c0_113 = arith.constant 0 : index
    %159 = vector.load %arg8[%c3_111, %c0_112, %c0_113] : memref<4x8x32xf32, #tpu.memory_space<vmem>>, vector<1x8x32xf32>
    %160 = vector.shape_cast %159 : vector<1x8x32xf32> to vector<8x32xf32>
    %cst_114 = arith.constant dense<0.000000e+00> : vector<16x32xf32>
    %161 = tpu.matmul %158, %160, %cst_114 {dimension_numbers = #tpu.dot_dimension_numbers<[1], [0], [0], [1], [0, 0, 1, 1], [], []>} : vector<16x8xf32>, vector<8x32xf32>, vector<16x32xf32> -> vector<16x32xf32>
    %162 = arith.addf %122, %161 : vector<16x32xf32>
    %c0_115 = arith.constant 0 : index
    %c0_116 = arith.constant 0 : index
    %163 = vector.load %arg9[%c0_115, %c0_116] : memref<1x32xf32, #tpu.memory_space<vmem>>, vector<1x32xf32>
    %164 = vector.broadcast %163 : vector<1x32xf32> to vector<16x32xf32>
    %165 = arith.addf %162, %164 : vector<16x32xf32>
    %166 = vector.shape_cast %165 : vector<16x32xf32> to vector<2x8x32xf32>
    %c0_117 = arith.constant 0 : index
    %c0_118 = arith.constant 0 : index
    %c0_119 = arith.constant 0 : index
    %167 = vector.load %arg10[%c0_117, %c0_118, %c0_119] : memref<2x8x32xf32, #tpu.memory_space<vmem>>, vector<2x8x32xf32>
    tpu.vector_store %arg10[%c0_117, %c0_118, %c0_119], %166 {strides = array<i32>} : memref<2x8x32xf32, #tpu.memory_space<vmem>>, vector<2x8x32xf32>,
    return
  }
  func.func @transform_0(%arg0: i32) -> (i32, i32, i32) {
    %c0_i32 = arith.constant 0 : i32
    %c0_i32_0 = arith.constant 0 : i32
    %c0_i32_1 = arith.constant 0 : i32
    return %arg0, %c0_i32, %c0_i32_0 : i32, i32, i32
  }
  func.func @transform_1(%arg0: i32) -> (i32, i32, i32) {
    %c0_i32 = arith.constant 0 : i32
    %c0_i32_0 = arith.constant 0 : i32
    %c0_i32_1 = arith.constant 0 : i32
    %c0_i32_2 = arith.constant 0 : i32
    return %c0_i32, %c0_i32_0, %c0_i32_1 : i32, i32, i32
  }
  func.func @transform_2(%arg0: i32) -> (i32, i32, i32) {
    %c0_i32 = arith.constant 0 : i32
    %c0_i32_0 = arith.constant 0 : i32
    %c0_i32_1 = arith.constant 0 : i32
    %c0_i32_2 = arith.constant 0 : i32
    return %c0_i32, %c0_i32_0, %c0_i32_1 : i32, i32, i32
  }
  func.func @transform_3(%arg0: i32) -> (i32, i32, i32) {
    %c0_i32 = arith.constant 0 : i32
    %c0_i32_0 = arith.constant 0 : i32
    %c0_i32_1 = arith.constant 0 : i32
    %c0_i32_2 = arith.constant 0 : i32
    return %c0_i32, %c0_i32_0, %c0_i32_1 : i32, i32, i32
  }
  func.func @transform_4(%arg0: i32) -> (i32, i32, i32) {
    %c0_i32 = arith.constant 0 : i32
    %c0_i32_0 = arith.constant 0 : i32
    %c0_i32_1 = arith.constant 0 : i32
    %c0_i32_2 = arith.constant 0 : i32
    return %c0_i32, %c0_i32_0, %c0_i32_1 : i32, i32, i32
  }
  func.func @transform_5(%arg0: i32) -> (i32, i32, i32) {
    %c0_i32 = arith.constant 0 : i32
    %c0_i32_0 = arith.constant 0 : i32
    %c0_i32_1 = arith.constant 0 : i32
    %c0_i32_2 = arith.constant 0 : i32
    return %c0_i32, %c0_i32_0, %c0_i32_1 : i32, i32, i32
  }
  func.func @transform_6(%arg0: i32) -> (i32, i32, i32) {
    %c0_i32 = arith.constant 0 : i32
    %c0_i32_0 = arith.constant 0 : i32
    %c0_i32_1 = arith.constant 0 : i32
    %c0_i32_2 = arith.constant 0 : i32
    return %c0_i32, %c0_i32_0, %c0_i32_1 : i32, i32, i32
  }
  func.func @transform_7(%arg0: i32) -> (i32, i32, i32) {
    %c0_i32 = arith.constant 0 : i32
    %c0_i32_0 = arith.constant 0 : i32
    %c0_i32_1 = arith.constant 0 : i32
    %c0_i32_2 = arith.constant 0 : i32
    return %c0_i32, %c0_i32_0, %c0_i32_1 : i32, i32, i32
  }
  func.func @transform_8(%arg0: i32) -> (i32, i32) {
    %c0_i32 = arith.constant 0 : i32
    %c0_i32_0 = arith.constant 0 : i32
    %c0_i32_1 = arith.constant 0 : i32
    return %c0_i32, %c0_i32_0 : i32, i32
  }
  func.func @transform_9(%arg0: i32) -> (i32, i32, i32) {
    %c0_i32 = arith.constant 0 : i32
    %c0_i32_0 = arith.constant 0 : i32
    %c0_i32_1 = arith.constant 0 : i32
    return %arg0, %c0_i32, %c0_i32_0 : i32, i32, i32
  }
}

</mosaic_0001>

<llo_original>
// kernel: tpu_custom_call.1
$region0: #{tpu_custom_call.1}
  #allocation0 [shape = 'u32[]', space=smem, size = 0x4, offset = 0x4, fixed_abs, tag = 'smem constant byte address 0x4 - core index']
  #allocation1 [shape = 'u32[144,128]{1,0:T(1,128)}', space=vmem, size = 0x12000, scoped, tag = 'internal scratch']
  %s0 = inlined_call_operand.hbm [shape: f32[2,8,32], index: 0, kind: input, shape index: {}]
  %s1 = inlined_call_operand.hbm [shape: f32[4,32,8], index: 1, kind: input, shape index: {}]
  %s2 = inlined_call_operand.hbm [shape: f32[4,1,8], index: 2, kind: input, shape index: {}]
  %s3 = inlined_call_operand.hbm [shape: f32[4,32,8], index: 3, kind: input, shape index: {}]
  %s4 = inlined_call_operand.hbm [shape: f32[4,1,8], index: 4, kind: input, shape index: {}]
  %s5 = inlined_call_operand.hbm [shape: f32[4,32,8], index: 5, kind: input, shape index: {}]
  %s6 = inlined_call_operand.hbm [shape: f32[4,1,8], index: 6, kind: input, shape index: {}]
  %s7 = inlined_call_operand.hbm [shape: f32[4,8,32], index: 7, kind: input, shape index: {}]
  %s8 = inlined_call_operand.hbm [shape: f32[1,32], index: 8, kind: input, shape index: {}]
  %s9 = inlined_call_operand.hbm [shape: f32[2,8,32], index: 9, kind: output, shape index: {}]
  %s10 = sld [smem:[#allocation0]]
  $region82: #{tpu_custom_call.1} parent=0
    _
  %s12 = ssub.s32 1, %s10
  %s13 = scalar_select 0, %s12, %s10
  $region1: #{tpu_custom_call.1} parent=0
    #allocation2 [shape = 'u8[8192]{0}', space=vmem, size = 0x2000, scoped, tag = 'input window, operand 0, single buffered']
    #allocation3 [shape = 's32[1]{0}', space=sflag, size = 0x4, scoped, tag = 'scoped memory for tpu_custom_call.1']
    #allocation4 [shape = 's32[1]{0}', space=sflag, size = 0x4, scoped, tag = 'scoped memory for tpu_custom_call.1']
    #allocation5 [shape = 'u8[65536]{0}', space=vmem, size = 0x10000, scoped, tag = 'input window, operand 1, single buffered']
    #allocation6 [shape = 's32[1]{0}', space=sflag, size = 0x4, scoped, tag = 'scoped memory for tpu_custom_call.1']
    #allocation7 [shape = 'u8[2048]{0}', space=vmem, size = 0x800, scoped, tag = 'input window, operand 2, single buffered']
    #allocation8 [shape = 'u8[65536]{0}', space=vmem, size = 0x10000, scoped, tag = 'input window, operand 3, single buffered']
    #allocation9 [shape = 's32[1]{0}', space=sflag, size = 0x4, scoped, tag = 'scoped memory for tpu_custom_call.1']
    #allocation10 [shape = 'u8[2048]{0}', space=vmem, size = 0x800, scoped, tag = 'input window, operand 4, single buffered']
    #allocation11 [shape = 'u8[65536]{0}', space=vmem, size = 0x10000, scoped, tag = 'input window, operand 5, single buffered']
    #allocation12 [shape = 's32[1]{0}', space=sflag, size = 0x4, scoped, tag = 'scoped memory for tpu_custom_call.1']
    #allocation13 [shape = 'u8[2048]{0}', space=vmem, size = 0x800, scoped, tag = 'input window, operand 6, single buffered']
    #allocation14 [shape = 'u8[16384]{0}', space=vmem, size = 0x4000, scoped, tag = 'input window, operand 7, single buffered']
    #allocation15 [shape = 's32[1]{0}', space=sflag, size = 0x4, scoped, tag = 'scoped memory for tpu_custom_call.1']
    #allocation16 [shape = 'u8[512]{0}', space=vmem, size = 0x400, scoped, tag = 'input window, operand 8, single buffered']
    #allocation17 [shape = 'u8[8192]{0}', space=vmem, size = 0x2000, scoped, tag = 'output window, operand 0, single buffered']
    %14 = vsyncpa [#allocation3], 0
    %15 = vsyncpa [#allocation6], 0
    %16 = vsyncpa [#allocation9], 0
    %17 = vsyncpa [#allocation12], 0
    %18 = vsyncpa [#allocation15], 0
    %19 = vsyncpa [#allocation4], 0
    // Predicated region
    $region2: #{tpu_custom_call.1} parent=1 // pred_check
      _
    $region3: #{tpu_custom_call.1} parent=1 // pred_check_branch
      %21 = sbr.rel (0) target = $region5
    $region4: #{tpu_custom_call.1} parent=1 // pred_region
      %s23 = ssub.s32 256, 256
      %24 = vsyncadd [#allocation3], %s23
      %s25 = sshll.u32 [#allocation2], 4
      %s26 = int_to_ptr.vmem [resolvable:$true] %s25
      %31 = dma.hbm_to_vmem [thread:$0]  %s0, 256, %s26, [#allocation3], 128, 128, 8
    $region5: #{tpu_custom_call.1} parent=1 // pred_fallthru
      _
    // Predicated region
    $region6: #{tpu_custom_call.1} parent=1 // pred_check
      _
    $region7: #{tpu_custom_call.1} parent=1 // pred_check_branch
      %33 = sbr.rel (0) target = $region9
    $region8: #{tpu_custom_call.1} parent=1 // pred_region
      %s35 = ssub.s32 2048, 2048
      %36 = vsyncadd [#allocation6], %s35
      %s37 = sshll.u32 [#allocation5], 4
      %s38 = int_to_ptr.vmem [resolvable:$true] %s37
      %43 = dma.hbm_to_vmem [thread:$0]  %s1, 2048, %s38, [#allocation6], 128, 128, 8
    $region9: #{tpu_custom_call.1} parent=1 // pred_fallthru
      _
    // Predicated region
    $region10: #{tpu_custom_call.1} parent=1 // pred_check
      _
    $region11: #{tpu_custom_call.1} parent=1 // pred_check_branch
      %45 = sbr.rel (0) target = $region13
    $region12: #{tpu_custom_call.1} parent=1 // pred_region
      %s47 = ssub.s32 64, 64
      %48 = vsyncadd [#allocation6], %s47
      %s49 = sshll.u32 [#allocation7], 4
      %s50 = int_to_ptr.vmem [resolvable:$true] %s49
      %55 = dma.hbm_to_vmem [thread:$0]  %s2, 64, %s50, [#allocation6], 16, 16, 1
    $region13: #{tpu_custom_call.1} parent=1 // pred_fallthru
      _
    // Predicated region
    $region14: #{tpu_custom_call.1} parent=1 // pred_check
      _
    $region15: #{tpu_custom_call.1} parent=1 // pred_check_branch
      %57 = sbr.rel (0) target = $region17
    $region16: #{tpu_custom_call.1} parent=1 // pred_region
      %s59 = ssub.s32 2048, 2048
      %60 = vsyncadd [#allocation9], %s59
      %s61 = sshll.u32 [#allocation8], 4
      %s62 = int_to_ptr.vmem [resolvable:$true] %s61
      %67 = dma.hbm_to_vmem [thread:$0]  %s3, 2048, %s62, [#allocation9], 128, 128, 8
    $region17: #{tpu_custom_call.1} parent=1 // pred_fallthru
      _
    // Predicated region
    $region18: #{tpu_custom_call.1} parent=1 // pred_check
      _
    $region19: #{tpu_custom_call.1} parent=1 // pred_check_branch
      %69 = sbr.rel (0) target = $region21
    $region20: #{tpu_custom_call.1} parent=1 // pred_region
      %s71 = ssub.s32 64, 64
      %72 = vsyncadd [#allocation9], %s71
      %s73 = sshll.u32 [#allocation10], 4
      %s74 = int_to_ptr.vmem [resolvable:$true] %s73
      %79 = dma.hbm_to_vmem [thread:$0]  %s4, 64, %s74, [#allocation9], 16, 16, 1
    $region21: #{tpu_custom_call.1} parent=1 // pred_fallthru
      _
    // Predicated region
    $region22: #{tpu_custom_call.1} parent=1 // pred_check
      _
    $region23: #{tpu_custom_call.1} parent=1 // pred_check_branch
      %81 = sbr.rel (0) target = $region25
    $region24: #{tpu_custom_call.1} parent=1 // pred_region
      %s83 = ssub.s32 2048, 2048
      %84 = vsyncadd [#allocation12], %s83
      %s85 = sshll.u32 [#allocation11], 4
      %s86 = int_to_ptr.vmem [resolvable:$true] %s85
      %91 = dma.hbm_to_vmem [thread:$0]  %s5, 2048, %s86, [#allocation12], 128, 128, 8
    $region25: #{tpu_custom_call.1} parent=1 // pred_fallthru
      _
    // Predicated region
    $region26: #{tpu_custom_call.1} parent=1 // pred_check
      _
    $region27: #{tpu_custom_call.1} parent=1 // pred_check_branch
      %93 = sbr.rel (0) target = $region29
    $region28: #{tpu_custom_call.1} parent=1 // pred_region
      %s95 = ssub.s32 64, 64
      %96 = vsyncadd [#allocation12], %s95
      %s97 = sshll.u32 [#allocation13], 4
      %s98 = int_to_ptr.vmem [resolvable:$true] %s97
      %103 = dma.hbm_to_vmem [thread:$0]  %s6, 64, %s98, [#allocation12], 16, 16, 1
    $region29: #{tpu_custom_call.1} parent=1 // pred_fallthru
      _
    // Predicated region
    $region30: #{tpu_custom_call.1} parent=1 // pred_check
      _
    $region31: #{tpu_custom_call.1} parent=1 // pred_check_branch
      %105 = sbr.rel (0) target = $region33
    $region32: #{tpu_custom_call.1} parent=1 // pred_region
      %s107 = ssub.s32 512, 512
      %108 = vsyncadd [#allocation15], %s107
      %s109 = sshll.u32 [#allocation14], 4
      %s110 = int_to_ptr.vmem [resolvable:$true] %s109
      %115 = dma.hbm_to_vmem [thread:$0]  %s7, 512, %s110, [#allocation15], 128, 128, 8
    $region33: #{tpu_custom_call.1} parent=1 // pred_fallthru
      _
    // Predicated region
    $region34: #{tpu_custom_call.1} parent=1 // pred_check
      _
    $region35: #{tpu_custom_call.1} parent=1 // pred_check_branch
      %117 = sbr.rel (0) target = $region37
    $region36: #{tpu_custom_call.1} parent=1 // pred_region
      %s119 = ssub.s32 16, 16
      %120 = vsyncadd [#allocation15], %s119
      %s122 = sshll.u32 [#allocation16], 4
      %s123 = int_to_ptr.vmem [resolvable:$true] %s122
      %125 = dma.hbm_to_vmem [thread:$0]  %s8, 16, %s123, [#allocation15]
    $region37: #{tpu_custom_call.1} parent=1 // pred_fallthru
      _
    // Predicated region
    $region38: #{tpu_custom_call.1} parent=1 // pred_check
      _
    $region39: #{tpu_custom_call.1} parent=1 // pred_check_branch
      %127 = sbr.rel (0) target = $region41
    $region40: #{tpu_custom_call.1} parent=1 // pred_region
      %128 = dma.done [#allocation3], 256
    $region41: #{tpu_custom_call.1} parent=1 // pred_fallthru
      _
    // Predicated region
    $region42: #{tpu_custom_call.1} parent=1 // pred_check
      _
    $region43: #{tpu_custom_call.1} parent=1 // pred_check_branch
      %130 = sbr.rel (0) target = $region45
    $region44: #{tpu_custom_call.1} parent=1 // pred_region
      %131 = dma.done [#allocation6], 2048
    $region45: #{tpu_custom_call.1} parent=1 // pred_fallthru
      _
    // Predicated region
    $region46: #{tpu_custom_call.1} parent=1 // pred_check
      _
    $region47: #{tpu_custom_call.1} parent=1 // pred_check_branch
      %133 = sbr.rel (0) target = $region49
    $region48: #{tpu_custom_call.1} parent=1 // pred_region
      %134 = dma.done [#allocation6], 64
    $region49: #{tpu_custom_call.1} parent=1 // pred_fallthru
      _
    // Predicated region
    $region50: #{tpu_custom_call.1} parent=1 // pred_check
      _
    $region51: #{tpu_custom_call.1} parent=1 // pred_check_branch
      %136 = sbr.rel (0) target = $region53
    $region52: #{tpu_custom_call.1} parent=1 // pred_region
      %137 = dma.done [#allocation9], 2048
    $region53: #{tpu_custom_call.1} parent=1 // pred_fallthru
      _
    // Predicated region
    $region54: #{tpu_custom_call.1} parent=1 // pred_check
      _
    $region55: #{tpu_custom_call.1} parent=1 // pred_check_branch
      %139 = sbr.rel (0) target = $region57
    $region56: #{tpu_custom_call.1} parent=1 // pred_region
      %140 = dma.done [#allocation9], 64
    $region57: #{tpu_custom_call.1} parent=1 // pred_fallthru
      _
    // Predicated region
    $region58: #{tpu_custom_call.1} parent=1 // pred_check
      _
    $region59: #{tpu_custom_call.1} parent=1 // pred_check_branch
      %142 = sbr.rel (0) target = $region61
    $region60: #{tpu_custom_call.1} parent=1 // pred_region
      %143 = dma.done [#allocation12], 2048
    $region61: #{tpu_custom_call.1} parent=1 // pred_fallthru
      _
    // Predicated region
    $region62: #{tpu_custom_call.1} parent=1 // pred_check
      _
    $region63: #{tpu_custom_call.1} parent=1 // pred_check_branch
      %145 = sbr.rel (0) target = $region65
    $region64: #{tpu_custom_call.1} parent=1 // pred_region
      %146 = dma.done [#allocation12], 64
    $region65: #{tpu_custom_call.1} parent=1 // pred_fallthru
      _
    // Predicated region
    $region66: #{tpu_custom_call.1} parent=1 // pred_check
      _
    $region67: #{tpu_custom_call.1} parent=1 // pred_check_branch
      %148 = sbr.rel (0) target = $region69
    $region68: #{tpu_custom_call.1} parent=1 // pred_region
      %149 = dma.done [#allocation15], 512
    $region69: #{tpu_custom_call.1} parent=1 // pred_fallthru
      _
    // Predicated region
    $region70: #{tpu_custom_call.1} parent=1 // pred_check
      _
    $region71: #{tpu_custom_call.1} parent=1 // pred_check_branch
      %151 = sbr.rel (0) target = $region73
    $region72: #{tpu_custom_call.1} parent=1 // pred_region
      %152 = dma.done [#allocation15], 16
    $region73: #{tpu_custom_call.1} parent=1 // pred_fallthru
      _
    %v153 = vld [vmem:[#allocation2] sm:$0xff]
    %v154 = vld [vmem:[#allocation2 + $0x8] sm:$0xff]
    %v155 = vld [vmem:[#allocation5] sm:$0xff]
    %v156 = vld [vmem:[#allocation5 + $0x8] sm:$0xff]
    %v157 = vld [vmem:[#allocation5 + $0x10] sm:$0xff]
    %v158 = vld [vmem:[#allocation5 + $0x18] sm:$0xff]
    %v159 = vld [vmem:[#allocation7] sm:$0x1]
    %v161 = vlaneseq
    %v162 = vshrl.u32 %v161, 7
    %v163 = vsub.s32 0, %v162
    %v164 = vrot.slane %v159, %v163
    %vm166 = vcmask 261120
    %v168 = vsel %vm166, %v153, 0
    %v171 = vsel %vm166, %v154, 0
    %173 = vmatprep.subr.mxu0 0.0
    %174 = vmatpush1.msra.mxu0 %v155
    %175 = vmatprep.subr.mxu0 0.0
    %176 = vmatpush1.msra.mxu0 %v156
    %177 = vmatprep.subr.mxu0 0.0
    %178 = vmatpush1.msra.mxu0 %v157
    %179 = vmatprep.subr.mxu0 0.0
    %180 = vmatpush1.msra.mxu0 %v158
    %181 = vmatprep.subr.mxu0 0.0
    %182 = vmatpush1.msra.mxu0 0.0
    %183 = vmatprep.subr.mxu0 0.0
    %184 = vmatpush1.msra.mxu0 0.0
    %185 = vmatprep.subr.mxu0 0.0
    %186 = vmatpush1.msra.mxu0 0.0
    %187 = vmatprep.subr.mxu0 0.0
    %188 = vmatpush1.msra.mxu0 0.0
    %189 = vmatprep.subr.mxu0 0.0
    %190 = vmatpush1.msra.mxu0 0.0
    %191 = vmatprep.subr.mxu0 0.0
    %192 = vmatpush1.msra.mxu0 0.0
    %193 = vmatprep.subr.mxu0 0.0
    %194 = vmatpush1.msra.mxu0 0.0
    %195 = vmatprep.subr.mxu0 0.0
    %196 = vmatpush1.msra.mxu0 0.0
    %197 = vmatprep.subr.mxu0 0.0
    %198 = vmatpush1.msra.mxu0 0.0
    %199 = vmatprep.subr.mxu0 0.0
    %200 = vmatpush1.msra.mxu0 0.0
    %201 = vmatprep.subr.mxu0 0.0
    %202 = vmatpush1.msra.mxu0 0.0
    %203 = vmatprep.subr.mxu0 0.0
    %204 = vmatpush1.msra.mxu0 0.0
    %205 = vmatprep.subr.mxu0 0.0
    %206 = vmatpush1.msra.mxu0 0.0
    %207 = vmatprep.subr.mxu0 0.0
    %208 = vmatpush1.msra.mxu0 0.0
    %209 = vmatprep.subr.mxu0 0.0
    %210 = vmatpush1.msra.mxu0 0.0
    %211 = vmatprep.subr.mxu0 0.0
    %212 = vmatpush1.msra.mxu0 0.0
    %213 = vmatprep.subr.mxu0 0.0
    %214 = vmatpush1.msra.mxu0 0.0
    %215 = vmatprep.subr.mxu0 0.0
    %216 = vmatpush1.msra.mxu0 0.0
    %217 = vmatprep.subr.mxu0 0.0
    %218 = vmatpush1.msra.mxu0 0.0
    %219 = vmatprep.subr.mxu0 0.0
    %220 = vmatpush1.msra.mxu0 0.0
    %221 = vmatprep.subr.mxu0 0.0
    %222 = vmatpush1.msra.mxu0 0.0
    %223 = vmatprep.subr.mxu0 0.0
    %224 = vmatpush1.msra.mxu0 0.0
    %225 = vmatprep.subr.mxu0 0.0
    %226 = vmatpush1.msra.mxu0 0.0
    %227 = vmatprep.subr.mxu0 0.0
    %228 = vmatpush1.msra.mxu0 0.0
    %229 = vmatprep.subr.mxu0 0.0
    %230 = vmatpush1.msra.mxu0 0.0
    %231 = vmatprep.subr.mxu0 0.0
    %232 = vmatpush1.msra.mxu0 0.0
    %233 = vmatprep.subr.mxu0 0.0
    %234 = vmatpush1.msra.mxu0 0.0
    %235 = vmatprep.subr.mxu0 0.0
    %236 = vmatpush1.msra.mxu0 0.0
    %237 = vmatprep.mubr.f32.mxu0 0.0
    %238 = vmatmul.mubr.f32.gmra.mrb[0].mxu0 %v168
    %v239 = vpop.f32.mrb[0].mxu0
    %v240 = vadd.f32 %v164, %v239
    %v241 = vpop.f32.mrb[0].mxu0
    %242 = vmatprep.mubr.f32.mxu0 0.0
    %243 = vmatmul.mubr.f32.gmra.mrb[0].mxu0 %v171
    %v244 = vpop.f32.mrb[0].mxu0
    %v245 = vadd.f32 %v164, %v244
    %v246 = vpop.f32.mrb[0].mxu0
    %247 = vdwg.mxu0
    %v248 = vld [vmem:[#allocation8] sm:$0xff]
    %v249 = vld [vmem:[#allocation8 + $0x8] sm:$0xff]
    %v250 = vld [vmem:[#allocation8 + $0x10] sm:$0xff]
    %v251 = vld [vmem:[#allocation8 + $0x18] sm:$0xff]
    %v252 = vld [vmem:[#allocation10] sm:$0x1]
    %v254 = vlaneseq
    %v255 = vshrl.u32 %v254, 7
    %v256 = vsub.s32 0, %v255
    %v257 = vrot.slane %v252, %v256
    %259 = vmatprep.subr.mxu0 0.0
    %260 = vmatpush1.msra.mxu0 %v248
    %261 = vmatprep.subr.mxu0 0.0
    %262 = vmatpush1.msra.mxu0 %v249
    %263 = vmatprep.subr.mxu0 0.0
    %264 = vmatpush1.msra.mxu0 %v250
    %265 = vmatprep.subr.mxu0 0.0
    %266 = vmatpush1.msra.mxu0 %v251
    %267 = vmatprep.subr.mxu0 0.0
    %268 = vmatpush1.msra.mxu0 0.0
    %269 = vmatprep.subr.mxu0 0.0
    %270 = vmatpush1.msra.mxu0 0.0
    %271 = vmatprep.subr.mxu0 0.0
    %272 = vmatpush1.msra.mxu0 0.0
    %273 = vmatprep.subr.mxu0 0.0
    %274 = vmatpush1.msra.mxu0 0.0
    %275 = vmatprep.subr.mxu0 0.0
    %276 = vmatpush1.msra.mxu0 0.0
    %277 = vmatprep.subr.mxu0 0.0
    %278 = vmatpush1.msra.mxu0 0.0
    %279 = vmatprep.subr.mxu0 0.0
    %280 = vmatpush1.msra.mxu0 0.0
    %281 = vmatprep.subr.mxu0 0.0
    %282 = vmatpush1.msra.mxu0 0.0
    %283 = vmatprep.subr.mxu0 0.0
    %284 = vmatpush1.msra.mxu0 0.0
    %285 = vmatprep.subr.mxu0 0.0
    %286 = vmatpush1.msra.mxu0 0.0
    %287 = vmatprep.subr.mxu0 0.0
    %288 = vmatpush1.msra.mxu0 0.0
    %289 = vmatprep.subr.mxu0 0.0
    %290 = vmatpush1.msra.mxu0 0.0
    %291 = vmatprep.subr.mxu0 0.0
    %292 = vmatpush1.msra.mxu0 0.0
    %293 = vmatprep.subr.mxu0 0.0
    %294 = vmatpush1.msra.mxu0 0.0
    %295 = vmatprep.subr.mxu0 0.0
    %296 = vmatpush1.msra.mxu0 0.0
    %297 = vmatprep.subr.mxu0 0.0
    %298 = vmatpush1.msra.mxu0 0.0
    %299 = vmatprep.subr.mxu0 0.0
    %300 = vmatpush1.msra.mxu0 0.0
    %301 = vmatprep.subr.mxu0 0.0
    %302 = vmatpush1.msra.mxu0 0.0
    %303 = vmatprep.subr.mxu0 0.0
    %304 = vmatpush1.msra.mxu0 0.0
    %305 = vmatprep.subr.mxu0 0.0
    %306 = vmatpush1.msra.mxu0 0.0
    %307 = vmatprep.subr.mxu0 0.0
    %308 = vmatpush1.msra.mxu0 0.0
    %309 = vmatprep.subr.mxu0 0.0
    %310 = vmatpush1.msra.mxu0 0.0
    %311 = vmatprep.subr.mxu0 0.0
    %312 = vmatpush1.msra.mxu0 0.0
    %313 = vmatprep.subr.mxu0 0.0
    %314 = vmatpush1.msra.mxu0 0.0
    %315 = vmatprep.subr.mxu0 0.0
    %316 = vmatpush1.msra.mxu0 0.0
    %317 = vmatprep.subr.mxu0 0.0
    %318 = vmatpush1.msra.mxu0 0.0
    %319 = vmatprep.subr.mxu0 0.0
    %320 = vmatpush1.msra.mxu0 0.0
    %321 = vmatprep.subr.mxu0 0.0
    %322 = vmatpush1.msra.mxu0 0.0
    %323 = vmatprep.mubr.f32.mxu0 0.0
    %324 = vmatmul.mubr.f32.gmra.mrb[0].mxu0 %v168
    %v325 = vpop.f32.mrb[0].mxu0
    %v326 = vadd.f32 %v257, %v325
    %v327 = vpop.f32.mrb[0].mxu0
    %328 = vmatprep.mubr.f32.mxu0 0.0
    %329 = vmatmul.mubr.f32.gmra.mrb[0].mxu0 %v171
    %v330 = vpop.f32.mrb[0].mxu0
    %v331 = vadd.f32 %v257, %v330
    %v332 = vpop.f32.mrb[0].mxu0
    %333 = vdwg.mxu0
    %v334 = vld [vmem:[#allocation11] sm:$0xff]
    %v335 = vld [vmem:[#allocation11 + $0x8] sm:$0xff]
    %v336 = vld [vmem:[#allocation11 + $0x10] sm:$0xff]
    %v337 = vld [vmem:[#allocation11 + $0x18] sm:$0xff]
    %v338 = vld [vmem:[#allocation13] sm:$0x1]
    %v340 = vlaneseq
    %v341 = vshrl.u32 %v340, 7
    %v342 = vsub.s32 0, %v341
    %v343 = vrot.slane %v338, %v342
    %345 = vmatprep.subr.mxu0 0.0
    %346 = vmatpush1.msra.mxu0 %v334
    %347 = vmatprep.subr.mxu0 0.0
    %348 = vmatpush1.msra.mxu0 %v335
    %349 = vmatprep.subr.mxu0 0.0
    %350 = vmatpush1.msra.mxu0 %v336
    %351 = vmatprep.subr.mxu0 0.0
    %352 = vmatpush1.msra.mxu0 %v337
    %353 = vmatprep.subr.mxu0 0.0
    %354 = vmatpush1.msra.mxu0 0.0
    %355 = vmatprep.subr.mxu0 0.0
    %356 = vmatpush1.msra.mxu0 0.0
    %357 = vmatprep.subr.mxu0 0.0
    %358 = vmatpush1.msra.mxu0 0.0
    %359 = vmatprep.subr.mxu0 0.0
    %360 = vmatpush1.msra.mxu0 0.0
    %361 = vmatprep.subr.mxu0 0.0
    %362 = vmatpush1.msra.mxu0 0.0
    %363 = vmatprep.subr.mxu0 0.0
    %364 = vmatpush1.msra.mxu0 0.0
    %365 = vmatprep.subr.mxu0 0.0
    %366 = vmatpush1.msra.mxu0 0.0
    %367 = vmatprep.subr.mxu0 0.0
    %368 = vmatpush1.msra.mxu0 0.0
    %369 = vmatprep.subr.mxu0 0.0
    %370 = vmatpush1.msra.mxu0 0.0
    %371 = vmatprep.subr.mxu0 0.0
    %372 = vmatpush1.msra.mxu0 0.0
    %373 = vmatprep.subr.mxu0 0.0
    %374 = vmatpush1.msra.mxu0 0.0
    %375 = vmatprep.subr.mxu0 0.0
    %376 = vmatpush1.msra.mxu0 0.0
    %377 = vmatprep.subr.mxu0 0.0
    %378 = vmatpush1.msra.mxu0 0.0
    %379 = vmatprep.subr.mxu0 0.0
    %380 = vmatpush1.msra.mxu0 0.0
    %381 = vmatprep.subr.mxu0 0.0
    %382 = vmatpush1.msra.mxu0 0.0
    %383 = vmatprep.subr.mxu0 0.0
    %384 = vmatpush1.msra.mxu0 0.0
    %385 = vmatprep.subr.mxu0 0.0
    %386 = vmatpush1.msra.mxu0 0.0
    %387 = vmatprep.subr.mxu0 0.0
    %388 = vmatpush1.msra.mxu0 0.0
    %389 = vmatprep.subr.mxu0 0.0
    %390 = vmatpush1.msra.mxu0 0.0
    %391 = vmatprep.subr.mxu0 0.0
    %392 = vmatpush1.msra.mxu0 0.0
    %393 = vmatprep.subr.mxu0 0.0
    %394 = vmatpush1.msra.mxu0 0.0
    %395 = vmatprep.subr.mxu0 0.0
    %396 = vmatpush1.msra.mxu0 0.0
    %397 = vmatprep.subr.mxu0 0.0
    %398 = vmatpush1.msra.mxu0 0.0
    %399 = vmatprep.subr.mxu0 0.0
    %400 = vmatpush1.msra.mxu0 0.0
    %401 = vmatprep.subr.mxu0 0.0
    %402 = vmatpush1.msra.mxu0 0.0
    %403 = vmatprep.subr.mxu0 0.0
    %404 = vmatpush1.msra.mxu0 0.0
    %405 = vmatprep.subr.mxu0 0.0
    %406 = vmatpush1.msra.mxu0 0.0
    %407 = vmatprep.subr.mxu0 0.0
    %408 = vmatpush1.msra.mxu0 0.0
    %409 = vmatprep.mubr.f32.mxu0 0.0
    %410 = vmatmul.mubr.f32.gmra.mrb[0].mxu0 %v168
    %v411 = vpop.f32.mrb[0].mxu0
    %v412 = vadd.f32 %v343, %v411
    %v413 = vpop.f32.mrb[0].mxu0
    %414 = vmatprep.mubr.f32.mxu0 0.0
    %415 = vmatmul.mubr.f32.gmra.mrb[0].mxu0 %v171
    %v416 = vpop.f32.mrb[0].mxu0
    %v417 = vadd.f32 %v343, %v416
    %v418 = vpop.f32.mrb[0].mxu0
    %419 = vdwg.mxu0
    %vm420 = vcmask 64512
    %v422 = vsel %vm420, %v240, 0
    %v425 = vsel %vm420, %v326, 0
    %427 = vmatprep.subr.mxu0 0.0
    %428 = vmatpush1.xpose.msra.mxu0 %v425
    %429 = vmatprep.subr.mxu0 0.0
    %430 = vmatpush1.xpose.msra.mxu0 0.0
    %431 = vmatprep.subr.mxu0 0.0
    %432 = vmatpush1.xpose.msra.mxu0 0.0
    %433 = vmatprep.subr.mxu0 0.0
    %434 = vmatpush1.xpose.msra.mxu0 0.0
    %435 = vmatprep.subr.mxu0 0.0
    %436 = vmatpush1.xpose.msra.mxu0 0.0
    %437 = vmatprep.subr.mxu0 0.0
    %438 = vmatpush1.xpose.msra.mxu0 0.0
    %439 = vmatprep.subr.mxu0 0.0
    %440 = vmatpush1.xpose.msra.mxu0 0.0
    %441 = vmatprep.subr.mxu0 0.0
    %442 = vmatpush1.xpose.msra.mxu0 0.0
    %443 = vmatprep.subr.mxu0 0.0
    %444 = vmatpush1.xpose.msra.mxu0 0.0
    %445 = vmatprep.subr.mxu0 0.0
    %446 = vmatpush1.xpose.msra.mxu0 0.0
    %447 = vmatprep.subr.mxu0 0.0
    %448 = vmatpush1.xpose.msra.mxu0 0.0
    %449 = vmatprep.subr.mxu0 0.0
    %450 = vmatpush1.xpose.msra.mxu0 0.0
    %451 = vmatprep.subr.mxu0 0.0
    %452 = vmatpush1.xpose.msra.mxu0 0.0
    %453 = vmatprep.subr.mxu0 0.0
    %454 = vmatpush1.xpose.msra.mxu0 0.0
    %455 = vmatprep.subr.mxu0 0.0
    %456 = vmatpush1.xpose.msra.mxu0 0.0
    %457 = vmatprep.subr.mxu0 0.0
    %458 = vmatpush1.xpose.msra.mxu0 0.0
    %459 = vmatprep.subr.mxu0 0.0
    %460 = vmatpush1.xpose.msra.mxu0 0.0
    %461 = vmatprep.subr.mxu0 0.0
    %462 = vmatpush1.xpose.msra.mxu0 0.0
    %463 = vmatprep.subr.mxu0 0.0
    %464 = vmatpush1.xpose.msra.mxu0 0.0
    %465 = vmatprep.subr.mxu0 0.0
    %466 = vmatpush1.xpose.msra.mxu0 0.0
    %467 = vmatprep.subr.mxu0 0.0
    %468 = vmatpush1.xpose.msra.mxu0 0.0
    %469 = vmatprep.subr.mxu0 0.0
    %470 = vmatpush1.xpose.msra.mxu0 0.0
    %471 = vmatprep.subr.mxu0 0.0
    %472 = vmatpush1.xpose.msra.mxu0 0.0
    %473 = vmatprep.subr.mxu0 0.0
    %474 = vmatpush1.xpose.msra.mxu0 0.0
    %475 = vmatprep.subr.mxu0 0.0
    %476 = vmatpush1.xpose.msra.mxu0 0.0
    %477 = vmatprep.subr.mxu0 0.0
    %478 = vmatpush1.xpose.msra.mxu0 0.0
    %479 = vmatprep.subr.mxu0 0.0
    %480 = vmatpush1.xpose.msra.mxu0 0.0
    %481 = vmatprep.subr.mxu0 0.0
    %482 = vmatpush1.xpose.msra.mxu0 0.0
    %483 = vmatprep.subr.mxu0 0.0
    %484 = vmatpush1.xpose.msra.mxu0 0.0
    %485 = vmatprep.subr.mxu0 0.0
    %486 = vmatpush1.xpose.msra.mxu0 0.0
    %487 = vmatprep.subr.mxu0 0.0
    %488 = vmatpush1.xpose.msra.mxu0 0.0
    %489 = vmatprep.subr.mxu0 0.0
    %490 = vmatpush1.xpose.msra.mxu0 0.0
    %491 = vmatprep.mubr.f32.mxu0 0.0
    %492 = vmatmul.mubr.f32.gmra.mrb[0].mxu0 %v422
    %v493 = vpop.f32.mrb[0].mxu0
    %v494 = vadd.f32 0.0, %v493
    %v495 = vpop.f32.mrb[0].mxu0
    %496 = vdwg.mxu0
    %v498 = vsel %vm420, %v245, 0
    %v501 = vsel %vm420, %v331, 0
    %503 = vmatprep.subr.mxu0 0.0
    %504 = vmatpush1.xpose.msra.mxu0 %v501
    %505 = vmatprep.subr.mxu0 0.0
    %506 = vmatpush1.xpose.msra.mxu0 0.0
    %507 = vmatprep.subr.mxu0 0.0
    %508 = vmatpush1.xpose.msra.mxu0 0.0
    %509 = vmatprep.subr.mxu0 0.0
    %510 = vmatpush1.xpose.msra.mxu0 0.0
    %511 = vmatprep.subr.mxu0 0.0
    %512 = vmatpush1.xpose.msra.mxu0 0.0
    %513 = vmatprep.subr.mxu0 0.0
    %514 = vmatpush1.xpose.msra.mxu0 0.0
    %515 = vmatprep.subr.mxu0 0.0
    %516 = vmatpush1.xpose.msra.mxu0 0.0
    %517 = vmatprep.subr.mxu0 0.0
    %518 = vmatpush1.xpose.msra.mxu0 0.0
    %519 = vmatprep.subr.mxu0 0.0
    %520 = vmatpush1.xpose.msra.mxu0 0.0
    %521 = vmatprep.subr.mxu0 0.0
    %522 = vmatpush1.xpose.msra.mxu0 0.0
    %523 = vmatprep.subr.mxu0 0.0
    %524 = vmatpush1.xpose.msra.mxu0 0.0
    %525 = vmatprep.subr.mxu0 0.0
    %526 = vmatpush1.xpose.msra.mxu0 0.0
    %527 = vmatprep.subr.mxu0 0.0
    %528 = vmatpush1.xpose.msra.mxu0 0.0
    %529 = vmatprep.subr.mxu0 0.0
    %530 = vmatpush1.xpose.msra.mxu0 0.0
    %531 = vmatprep.subr.mxu0 0.0
    %532 = vmatpush1.xpose.msra.mxu0 0.0
    %533 = vmatprep.subr.mxu0 0.0
    %534 = vmatpush1.xpose.msra.mxu0 0.0
    %535 = vmatprep.subr.mxu0 0.0
    %536 = vmatpush1.xpose.msra.mxu0 0.0
    %537 = vmatprep.subr.mxu0 0.0
    %538 = vmatpush1.xpose.msra.mxu0 0.0
    %539 = vmatprep.subr.mxu0 0.0
    %540 = vmatpush1.xpose.msra.mxu0 0.0
    %541 = vmatprep.subr.mxu0 0.0
    %542 = vmatpush1.xpose.msra.mxu0 0.0
    %543 = vmatprep.subr.mxu0 0.0
    %544 = vmatpush1.xpose.msra.mxu0 0.0
    %545 = vmatprep.subr.mxu0 0.0
    %546 = vmatpush1.xpose.msra.mxu0 0.0
    %547 = vmatprep.subr.mxu0 0.0
    %548 = vmatpush1.xpose.msra.mxu0 0.0
    %549 = vmatprep.subr.mxu0 0.0
    %550 = vmatpush1.xpose.msra.mxu0 0.0
    %551 = vmatprep.subr.mxu0 0.0
    %552 = vmatpush1.xpose.msra.mxu0 0.0
    %553 = vmatprep.subr.mxu0 0.0
    %554 = vmatpush1.xpose.msra.mxu0 0.0
    %555 = vmatprep.subr.mxu0 0.0
    %556 = vmatpush1.xpose.msra.mxu0 0.0
    %557 = vmatprep.subr.mxu0 0.0
    %558 = vmatpush1.xpose.msra.mxu0 0.0
    %559 = vmatprep.subr.mxu0 0.0
    %560 = vmatpush1.xpose.msra.mxu0 0.0
    %561 = vmatprep.subr.mxu0 0.0
    %562 = vmatpush1.xpose.msra.mxu0 0.0
    %563 = vmatprep.subr.mxu0 0.0
    %564 = vmatpush1.xpose.msra.mxu0 0.0
    %565 = vmatprep.subr.mxu0 0.0
    %566 = vmatpush1.xpose.msra.mxu0 0.0
    %567 = vmatprep.mubr.f32.mxu0 0.0
    %568 = vmatmul.mubr.f32.gmra.mrb[0].mxu0 %v498
    %v569 = vpop.f32.mrb[0].mxu0
    %v570 = vadd.f32 0.0, %v569
    %v571 = vpop.f32.mrb[0].mxu0
    %572 = vdwg.mxu0
    %v573 = vsel %vm420, %v494, -inf
    %574 = vmax.xlane.f32.xlu0 %v573
    %v575 = vpop.xlane.xlu0 %574
    %v576 = vsel %vm420, %v570, -inf
    %577 = vmax.xlane.f32.xlu0 %v576
    %v578 = vpop.xlane.xlu0 %577
    %v579 = vsub.f32 %v494, %v575
    %v580 = vsub.f32 %v570, %v578
    %v581 = vmul.f32 %v579, 1.442695
    %v582 = vpow.pop %v581
    %v583 = vmul.f32 %v580, 1.442695
    %v584 = vpow.pop %v583
    %v585 = vsel %vm420, %v582, 0.0
    %586 = vadd.xlane.f32.xlu0 %v585
    %v587 = vpop.xlane.xlu0 %586
    %v588 = vsel %vm420, %v584, 0.0
    %589 = vadd.xlane.f32.xlu0 %v588
    %v590 = vpop.xlane.xlu0 %589
    %v591 = vrcp.pop %v587
    %v592 = vmul.f32 %v582, %v591
    %v593 = vrcp.pop %v590
    %v594 = vmul.f32 %v584, %v593
    %v596 = vsel %vm420, %v592, 0
    %598 = vmatprep.subr.mxu0 0.0
    %599 = vmatpush1.msra.mxu0 %v412
    %600 = vmatprep.subr.mxu0 0.0
    %601 = vmatpush1.msra.mxu0 0.0
    %602 = vmatprep.subr.mxu0 0.0
    %603 = vmatpush1.msra.mxu0 0.0
    %604 = vmatprep.subr.mxu0 0.0
    %605 = vmatpush1.msra.mxu0 0.0
    %606 = vmatprep.subr.mxu0 0.0
    %607 = vmatpush1.msra.mxu0 0.0
    %608 = vmatprep.subr.mxu0 0.0
    %609 = vmatpush1.msra.mxu0 0.0
    %610 = vmatprep.subr.mxu0 0.0
    %611 = vmatpush1.msra.mxu0 0.0
    %612 = vmatprep.subr.mxu0 0.0
    %613 = vmatpush1.msra.mxu0 0.0
    %614 = vmatprep.subr.mxu0 0.0
    %615 = vmatpush1.msra.mxu0 0.0
    %616 = vmatprep.subr.mxu0 0.0
    %617 = vmatpush1.msra.mxu0 0.0
    %618 = vmatprep.subr.mxu0 0.0
    %619 = vmatpush1.msra.mxu0 0.0
    %620 = vmatprep.subr.mxu0 0.0
    %621 = vmatpush1.msra.mxu0 0.0
    %622 = vmatprep.subr.mxu0 0.0
    %623 = vmatpush1.msra.mxu0 0.0
    %624 = vmatprep.subr.mxu0 0.0
    %625 = vmatpush1.msra.mxu0 0.0
    %626 = vmatprep.subr.mxu0 0.0
    %627 = vmatpush1.msra.mxu0 0.0
    %628 = vmatprep.subr.mxu0 0.0
    %629 = vmatpush1.msra.mxu0 0.0
    %630 = vmatprep.subr.mxu0 0.0
    %631 = vmatpush1.msra.mxu0 0.0
    %632 = vmatprep.subr.mxu0 0.0
    %633 = vmatpush1.msra.mxu0 0.0
    %634 = vmatprep.subr.mxu0 0.0
    %635 = vmatpush1.msra.mxu0 0.0
    %636 = vmatprep.subr.mxu0 0.0
    %637 = vmatpush1.msra.mxu0 0.0
    %638 = vmatprep.subr.mxu0 0.0
    %639 = vmatpush1.msra.mxu0 0.0
    %640 = vmatprep.subr.mxu0 0.0
    %641 = vmatpush1.msra.mxu0 0.0
    %642 = vmatprep.subr.mxu0 0.0
    %643 = vmatpush1.msra.mxu0 0.0
    %644 = vmatprep.subr.mxu0 0.0
    %645 = vmatpush1.msra.mxu0 0.0
    %646 = vmatprep.subr.mxu0 0.0
    %647 = vmatpush1.msra.mxu0 0.0
    %648 = vmatprep.subr.mxu0 0.0
    %649 = vmatpush1.msra.mxu0 0.0
    %650 = vmatprep.subr.mxu0 0.0
    %651 = vmatpush1.msra.mxu0 0.0
    %652 = vmatprep.subr.mxu0 0.0
    %653 = vmatpush1.msra.mxu0 0.0
    %654 = vmatprep.subr.mxu0 0.0
    %655 = vmatpush1.msra.mxu0 0.0
    %656 = vmatprep.subr.mxu0 0.0
    %657 = vmatpush1.msra.mxu0 0.0
    %658 = vmatprep.subr.mxu0 0.0
    %659 = vmatpush1.msra.mxu0 0.0
    %660 = vmatprep.subr.mxu0 0.0
    %661 = vmatpush1.msra.mxu0 0.0
    %662 = vmatprep.mubr.f32.mxu0 0.0
    %663 = vmatmul.mubr.f32.gmra.mrb[0].mxu0 %v596
    %v664 = vpop.f32.mrb[0].mxu0
    %v665 = vadd.f32 0.0, %v664
    %v666 = vpop.f32.mrb[0].mxu0
    %667 = vdwg.mxu0
    %v669 = vsel %vm420, %v594, 0
    %671 = vmatprep.subr.mxu0 0.0
    %672 = vmatpush1.msra.mxu0 %v417
    %673 = vmatprep.subr.mxu0 0.0
    %674 = vmatpush1.msra.mxu0 0.0
    %675 = vmatprep.subr.mxu0 0.0
    %676 = vmatpush1.msra.mxu0 0.0
    %677 = vmatprep.subr.mxu0 0.0
    %678 = vmatpush1.msra.mxu0 0.0
    %679 = vmatprep.subr.mxu0 0.0
    %680 = vmatpush1.msra.mxu0 0.0
    %681 = vmatprep.subr.mxu0 0.0
    %682 = vmatpush1.msra.mxu0 0.0
    %683 = vmatprep.subr.mxu0 0.0
    %684 = vmatpush1.msra.mxu0 0.0
    %685 = vmatprep.subr.mxu0 0.0
    %686 = vmatpush1.msra.mxu0 0.0
    %687 = vmatprep.subr.mxu0 0.0
    %688 = vmatpush1.msra.mxu0 0.0
    %689 = vmatprep.subr.mxu0 0.0
    %690 = vmatpush1.msra.mxu0 0.0
    %691 = vmatprep.subr.mxu0 0.0
    %692 = vmatpush1.msra.mxu0 0.0
    %693 = vmatprep.subr.mxu0 0.0
    %694 = vmatpush1.msra.mxu0 0.0
    %695 = vmatprep.subr.mxu0 0.0
    %696 = vmatpush1.msra.mxu0 0.0
    %697 = vmatprep.subr.mxu0 0.0
    %698 = vmatpush1.msra.mxu0 0.0
    %699 = vmatprep.subr.mxu0 0.0
    %700 = vmatpush1.msra.mxu0 0.0
    %701 = vmatprep.subr.mxu0 0.0
    %702 = vmatpush1.msra.mxu0 0.0
    %703 = vmatprep.subr.mxu0 0.0
    %704 = vmatpush1.msra.mxu0 0.0
    %705 = vmatprep.subr.mxu0 0.0
    %706 = vmatpush1.msra.mxu0 0.0
    %707 = vmatprep.subr.mxu0 0.0
    %708 = vmatpush1.msra.mxu0 0.0
    %709 = vmatprep.subr.mxu0 0.0
    %710 = vmatpush1.msra.mxu0 0.0
    %711 = vmatprep.subr.mxu0 0.0
    %712 = vmatpush1.msra.mxu0 0.0
    %713 = vmatprep.subr.mxu0 0.0
    %714 = vmatpush1.msra.mxu0 0.0
    %715 = vmatprep.subr.mxu0 0.0
    %716 = vmatpush1.msra.mxu0 0.0
    %717 = vmatprep.subr.mxu0 0.0
    %718 = vmatpush1.msra.mxu0 0.0
    %719 = vmatprep.subr.mxu0 0.0
    %720 = vmatpush1.msra.mxu0 0.0
    %721 = vmatprep.subr.mxu0 0.0
    %722 = vmatpush1.msra.mxu0 0.0
    %723 = vmatprep.subr.mxu0 0.0
    %724 = vmatpush1.msra.mxu0 0.0
    %725 = vmatprep.subr.mxu0 0.0
    %726 = vmatpush1.msra.mxu0 0.0
    %727 = vmatprep.subr.mxu0 0.0
    %728 = vmatpush1.msra.mxu0 0.0
    %729 = vmatprep.subr.mxu0 0.0
    %730 = vmatpush1.msra.mxu0 0.0
    %731 = vmatprep.subr.mxu0 0.0
    %732 = vmatpush1.msra.mxu0 0.0
    %733 = vmatprep.subr.mxu0 0.0
    %734 = vmatpush1.msra.mxu0 0.0
    %735 = vmatprep.mubr.f32.mxu0 0.0
    %736 = vmatmul.mubr.f32.gmra.mrb[0].mxu0 %v669
    %v737 = vpop.f32.mrb[0].mxu0
    %v738 = vadd.f32 0.0, %v737
    %v739 = vpop.f32.mrb[0].mxu0
    %740 = vdwg.mxu0
    %v741 = vld [vmem:[#allocation14] sm:$0xff]
    %s742 = scalar_lea.vmem [#allocation5], 32
    %v743 = vld [vmem:[%s742] sm:$0xff]
    %v744 = vld [vmem:[%s742 + $0x8] sm:$0xff]
    %v745 = vld [vmem:[%s742 + $0x10] sm:$0xff]
    %v746 = vld [vmem:[%s742 + $0x18] sm:$0xff]
    %s747 = scalar_lea.vmem [#allocation7], 1
    %v748 = vld [vmem:[%s747] sm:$0x1]
    %v750 = vlaneseq
    %v751 = vshrl.u32 %v750, 7
    %v752 = vsub.s32 0, %v751
    %v753 = vrot.slane %v748, %v752
    %755 = vmatprep.subr.mxu0 0.0
    %756 = vmatpush1.msra.mxu0 %v743
    %757 = vmatprep.subr.mxu0 0.0
    %758 = vmatpush1.msra.mxu0 %v744
    %759 = vmatprep.subr.mxu0 0.0
    %760 = vmatpush1.msra.mxu0 %v745
    %761 = vmatprep.subr.mxu0 0.0
    %762 = vmatpush1.msra.mxu0 %v746
    %763 = vmatprep.subr.mxu0 0.0
    %764 = vmatpush1.msra.mxu0 0.0
    %765 = vmatprep.subr.mxu0 0.0
    %766 = vmatpush1.msra.mxu0 0.0
    %767 = vmatprep.subr.mxu0 0.0
    %768 = vmatpush1.msra.mxu0 0.0
    %769 = vmatprep.subr.mxu0 0.0
    %770 = vmatpush1.msra.mxu0 0.0
    %771 = vmatprep.subr.mxu0 0.0
    %772 = vmatpush1.msra.mxu0 0.0
    %773 = vmatprep.subr.mxu0 0.0
    %774 = vmatpush1.msra.mxu0 0.0
    %775 = vmatprep.subr.mxu0 0.0
    %776 = vmatpush1.msra.mxu0 0.0
    %777 = vmatprep.subr.mxu0 0.0
    %778 = vmatpush1.msra.mxu0 0.0
    %779 = vmatprep.subr.mxu0 0.0
    %780 = vmatpush1.msra.mxu0 0.0
    %781 = vmatprep.subr.mxu0 0.0
    %782 = vmatpush1.msra.mxu0 0.0
    %783 = vmatprep.subr.mxu0 0.0
    %784 = vmatpush1.msra.mxu0 0.0
    %785 = vmatprep.subr.mxu0 0.0
    %786 = vmatpush1.msra.mxu0 0.0
    %787 = vmatprep.subr.mxu0 0.0
    %788 = vmatpush1.msra.mxu0 0.0
    %789 = vmatprep.subr.mxu0 0.0
    %790 = vmatpush1.msra.mxu0 0.0
    %791 = vmatprep.subr.mxu0 0.0
    %792 = vmatpush1.msra.mxu0 0.0
    %793 = vmatprep.subr.mxu0 0.0
    %794 = vmatpush1.msra.mxu0 0.0
    %795 = vmatprep.subr.mxu0 0.0
    %796 = vmatpush1.msra.mxu0 0.0
    %797 = vmatprep.subr.mxu0 0.0
    %798 = vmatpush1.msra.mxu0 0.0
    %799 = vmatprep.subr.mxu0 0.0
    %800 = vmatpush1.msra.mxu0 0.0
    %801 = vmatprep.subr.mxu0 0.0
    %802 = vmatpush1.msra.mxu0 0.0
    %803 = vmatprep.subr.mxu0 0.0
    %804 = vmatpush1.msra.mxu0 0.0
    %805 = vmatprep.subr.mxu0 0.0
    %806 = vmatpush1.msra.mxu0 0.0
    %807 = vmatprep.subr.mxu0 0.0
    %808 = vmatpush1.msra.mxu0 0.0
    %809 = vmatprep.subr.mxu0 0.0
    %810 = vmatpush1.msra.mxu0 0.0
    %811 = vmatprep.subr.mxu0 0.0
    %812 = vmatpush1.msra.mxu0 0.0
    %813 = vmatprep.subr.mxu0 0.0
    %814 = vmatpush1.msra.mxu0 0.0
    %815 = vmatprep.subr.mxu0 0.0
    %816 = vmatpush1.msra.mxu0 0.0
    %817 = vmatprep.subr.mxu0 0.0
    %818 = vmatpush1.msra.mxu0 0.0
    %819 = vmatprep.mubr.f32.mxu0 0.0
    %820 = vmatmul.mubr.f32.gmra.mrb[0].mxu0 %v168
    %v821 = vpop.f32.mrb[0].mxu0
    %v822 = vadd.f32 %v753, %v821
    %v823 = vpop.f32.mrb[0].mxu0
    %824 = vmatprep.mubr.f32.mxu0 0.0
    %825 = vmatmul.mubr.f32.gmra.mrb[0].mxu0 %v171
    %v826 = vpop.f32.mrb[0].mxu0
    %v827 = vadd.f32 %v753, %v826
    %v828 = vpop.f32.mrb[0].mxu0
    %829 = vdwg.mxu0
    %s830 = scalar_lea.vmem [#allocation8], 32
    %v831 = vld [vmem:[%s830] sm:$0xff]
    %v832 = vld [vmem:[%s830 + $0x8] sm:$0xff]
    %v833 = vld [vmem:[%s830 + $0x10] sm:$0xff]
    %v834 = vld [vmem:[%s830 + $0x18] sm:$0xff]
    %s835 = scalar_lea.vmem [#allocation10], 1
    %v836 = vld [vmem:[%s835] sm:$0x1]
    %v838 = vlaneseq
    %v839 = vshrl.u32 %v838, 7
    %v840 = vsub.s32 0, %v839
    %v841 = vrot.slane %v836, %v840
    %843 = vmatprep.subr.mxu0 0.0
    %844 = vmatpush1.msra.mxu0 %v831
    %845 = vmatprep.subr.mxu0 0.0
    %846 = vmatpush1.msra.mxu0 %v832
    %847 = vmatprep.subr.mxu0 0.0
    %848 = vmatpush1.msra.mxu0 %v833
    %849 = vmatprep.subr.mxu0 0.0
    %850 = vmatpush1.msra.mxu0 %v834
    %851 = vmatprep.subr.mxu0 0.0
    %852 = vmatpush1.msra.mxu0 0.0
    %853 = vmatprep.subr.mxu0 0.0
    %854 = vmatpush1.msra.mxu0 0.0
    %855 = vmatprep.subr.mxu0 0.0
    %856 = vmatpush1.msra.mxu0 0.0
    %857 = vmatprep.subr.mxu0 0.0
    %858 = vmatpush1.msra.mxu0 0.0
    %859 = vmatprep.subr.mxu0 0.0
    %860 = vmatpush1.msra.mxu0 0.0
    %861 = vmatprep.subr.mxu0 0.0
    %862 = vmatpush1.msra.mxu0 0.0
    %863 = vmatprep.subr.mxu0 0.0
    %864 = vmatpush1.msra.mxu0 0.0
    %865 = vmatprep.subr.mxu0 0.0
    %866 = vmatpush1.msra.mxu0 0.0
    %867 = vmatprep.subr.mxu0 0.0
    %868 = vmatpush1.msra.mxu0 0.0
    %869 = vmatprep.subr.mxu0 0.0
    %870 = vmatpush1.msra.mxu0 0.0
    %871 = vmatprep.subr.mxu0 0.0
    %872 = vmatpush1.msra.mxu0 0.0
    %873 = vmatprep.subr.mxu0 0.0
    %874 = vmatpush1.msra.mxu0 0.0
    %875 = vmatprep.subr.mxu0 0.0
    %876 = vmatpush1.msra.mxu0 0.0
    %877 = vmatprep.subr.mxu0 0.0
    %878 = vmatpush1.msra.mxu0 0.0
    %879 = vmatprep.subr.mxu0 0.0
    %880 = vmatpush1.msra.mxu0 0.0
    %881 = vmatprep.subr.mxu0 0.0
    %882 = vmatpush1.msra.mxu0 0.0
    %883 = vmatprep.subr.mxu0 0.0
    %884 = vmatpush1.msra.mxu0 0.0
    %885 = vmatprep.subr.mxu0 0.0
    %886 = vmatpush1.msra.mxu0 0.0
    %887 = vmatprep.subr.mxu0 0.0
    %888 = vmatpush1.msra.mxu0 0.0
    %889 = vmatprep.subr.mxu0 0.0
    %890 = vmatpush1.msra.mxu0 0.0
    %891 = vmatprep.subr.mxu0 0.0
    %892 = vmatpush1.msra.mxu0 0.0
    %893 = vmatprep.subr.mxu0 0.0
    %894 = vmatpush1.msra.mxu0 0.0
    %895 = vmatprep.subr.mxu0 0.0
    %896 = vmatpush1.msra.mxu0 0.0
    %897 = vmatprep.subr.mxu0 0.0
    %898 = vmatpush1.msra.mxu0 0.0
    %899 = vmatprep.subr.mxu0 0.0
    %900 = vmatpush1.msra.mxu0 0.0
    %901 = vmatprep.subr.mxu0 0.0
    %902 = vmatpush1.msra.mxu0 0.0
    %903 = vmatprep.subr.mxu0 0.0
    %904 = vmatpush1.msra.mxu0 0.0
    %905 = vmatprep.subr.mxu0 0.0
    %906 = vmatpush1.msra.mxu0 0.0
    %907 = vmatprep.mubr.f32.mxu0 0.0
    %908 = vmatmul.mubr.f32.gmra.mrb[0].mxu0 %v168
    %v909 = vpop.f32.mrb[0].mxu0
    %v910 = vadd.f32 %v841, %v909
    %v911 = vpop.f32.mrb[0].mxu0
    %912 = vmatprep.mubr.f32.mxu0 0.0
    %913 = vmatmul.mubr.f32.gmra.mrb[0].mxu0 %v171
    %v914 = vpop.f32.mrb[0].mxu0
    %v915 = vadd.f32 %v841, %v914
    %v916 = vpop.f32.mrb[0].mxu0
    %917 = vdwg.mxu0
    %s918 = scalar_lea.vmem [#allocation11], 32
    %v919 = vld [vmem:[%s918] sm:$0xff]
    %v920 = vld [vmem:[%s918 + $0x8] sm:$0xff]
    %v921 = vld [vmem:[%s918 + $0x10] sm:$0xff]
    %v922 = vld [vmem:[%s918 + $0x18] sm:$0xff]
    %s923 = scalar_lea.vmem [#allocation13], 1
    %v924 = vld [vmem:[%s923] sm:$0x1]
    %v926 = vlaneseq
    %v927 = vshrl.u32 %v926, 7
    %v928 = vsub.s32 0, %v927
    %v929 = vrot.slane %v924, %v928
    %931 = vmatprep.subr.mxu0 0.0
    %932 = vmatpush1.msra.mxu0 %v919
    %933 = vmatprep.subr.mxu0 0.0
    %934 = vmatpush1.msra.mxu0 %v920
    %935 = vmatprep.subr.mxu0 0.0
    %936 = vmatpush1.msra.mxu0 %v921
    %937 = vmatprep.subr.mxu0 0.0
    %938 = vmatpush1.msra.mxu0 %v922
    %939 = vmatprep.subr.mxu0 0.0
    %940 = vmatpush1.msra.mxu0 0.0
    %941 = vmatprep.subr.mxu0 0.0
    %942 = vmatpush1.msra.mxu0 0.0
    %943 = vmatprep.subr.mxu0 0.0
    %944 = vmatpush1.msra.mxu0 0.0
    %945 = vmatprep.subr.mxu0 0.0
    %946 = vmatpush1.msra.mxu0 0.0
    %947 = vmatprep.subr.mxu0 0.0
    %948 = vmatpush1.msra.mxu0 0.0
    %949 = vmatprep.subr.mxu0 0.0
    %950 = vmatpush1.msra.mxu0 0.0
    %951 = vmatprep.subr.mxu0 0.0
    %952 = vmatpush1.msra.mxu0 0.0
    %953 = vmatprep.subr.mxu0 0.0
    %954 = vmatpush1.msra.mxu0 0.0
    %955 = vmatprep.subr.mxu0 0.0
    %956 = vmatpush1.msra.mxu0 0.0
    %957 = vmatprep.subr.mxu0 0.0
    %958 = vmatpush1.msra.mxu0 0.0
    %959 = vmatprep.subr.mxu0 0.0
    %960 = vmatpush1.msra.mxu0 0.0
    %961 = vmatprep.subr.mxu0 0.0
    %962 = vmatpush1.msra.mxu0 0.0
    %963 = vmatprep.subr.mxu0 0.0
    %964 = vmatpush1.msra.mxu0 0.0
    %965 = vmatprep.subr.mxu0 0.0
    %966 = vmatpush1.msra.mxu0 0.0
    %967 = vmatprep.subr.mxu0 0.0
    %968 = vmatpush1.msra.mxu0 0.0
    %969 = vmatprep.subr.mxu0 0.0
    %970 = vmatpush1.msra.mxu0 0.0
    %971 = vmatprep.subr.mxu0 0.0
    %972 = vmatpush1.msra.mxu0 0.0
    %973 = vmatprep.subr.mxu0 0.0
    %974 = vmatpush1.msra.mxu0 0.0
    %975 = vmatprep.subr.mxu0 0.0
    %976 = vmatpush1.msra.mxu0 0.0
    %977 = vmatprep.subr.mxu0 0.0
    %978 = vmatpush1.msra.mxu0 0.0
    %979 = vmatprep.subr.mxu0 0.0
    %980 = vmatpush1.msra.mxu0 0.0
    %981 = vmatprep.subr.mxu0 0.0
    %982 = vmatpush1.msra.mxu0 0.0
    %983 = vmatprep.subr.mxu0 0.0
    %984 = vmatpush1.msra.mxu0 0.0
    %985 = vmatprep.subr.mxu0 0.0
    %986 = vmatpush1.msra.mxu0 0.0
    %987 = vmatprep.subr.mxu0 0.0
    %988 = vmatpush1.msra.mxu0 0.0
    %989 = vmatprep.subr.mxu0 0.0
    %990 = vmatpush1.msra.mxu0 0.0
    %991 = vmatprep.subr.mxu0 0.0
    %992 = vmatpush1.msra.mxu0 0.0
    %993 = vmatprep.subr.mxu0 0.0
    %994 = vmatpush1.msra.mxu0 0.0
    %995 = vmatprep.mubr.f32.mxu0 0.0
    %996 = vmatmul.mubr.f32.gmra.mrb[0].mxu0 %v168
    %v997 = vpop.f32.mrb[0].mxu0
    %v998 = vadd.f32 %v929, %v997
    %v999 = vpop.f32.mrb[0].mxu0
    %1000 = vmatprep.mubr.f32.mxu0 0.0
    %1001 = vmatmul.mubr.f32.gmra.mrb[0].mxu0 %v171
    %v1002 = vpop.f32.mrb[0].mxu0
    %v1003 = vadd.f32 %v929, %v1002
    %v1004 = vpop.f32.mrb[0].mxu0
    %1005 = vdwg.mxu0
    %v1007 = vsel %vm420, %v822, 0
    %v1010 = vsel %vm420, %v910, 0
    %1012 = vmatprep.subr.mxu0 0.0
    %1013 = vmatpush1.xpose.msra.mxu0 %v1010
    %1014 = vmatprep.subr.mxu0 0.0
    %1015 = vmatpush1.xpose.msra.mxu0 0.0
    %1016 = vmatprep.subr.mxu0 0.0
    %1017 = vmatpush1.xpose.msra.mxu0 0.0
    %1018 = vmatprep.subr.mxu0 0.0
    %1019 = vmatpush1.xpose.msra.mxu0 0.0
    %1020 = vmatprep.subr.mxu0 0.0
    %1021 = vmatpush1.xpose.msra.mxu0 0.0
    %1022 = vmatprep.subr.mxu0 0.0
    %1023 = vmatpush1.xpose.msra.mxu0 0.0
    %1024 = vmatprep.subr.mxu0 0.0
    %1025 = vmatpush1.xpose.msra.mxu0 0.0
    %1026 = vmatprep.subr.mxu0 0.0
    %1027 = vmatpush1.xpose.msra.mxu0 0.0
    %1028 = vmatprep.subr.mxu0 0.0
    %1029 = vmatpush1.xpose.msra.mxu0 0.0
    %1030 = vmatprep.subr.mxu0 0.0
    %1031 = vmatpush1.xpose.msra.mxu0 0.0
    %1032 = vmatprep.subr.mxu0 0.0
    %1033 = vmatpush1.xpose.msra.mxu0 0.0
    %1034 = vmatprep.subr.mxu0 0.0
    %1035 = vmatpush1.xpose.msra.mxu0 0.0
    %1036 = vmatprep.subr.mxu0 0.0
    %1037 = vmatpush1.xpose.msra.mxu0 0.0
    %1038 = vmatprep.subr.mxu0 0.0
    %1039 = vmatpush1.xpose.msra.mxu0 0.0
    %1040 = vmatprep.subr.mxu0 0.0
    %1041 = vmatpush1.xpose.msra.mxu0 0.0
    %1042 = vmatprep.subr.mxu0 0.0
    %1043 = vmatpush1.xpose.msra.mxu0 0.0
    %1044 = vmatprep.subr.mxu0 0.0
    %1045 = vmatpush1.xpose.msra.mxu0 0.0
    %1046 = vmatprep.subr.mxu0 0.0
    %1047 = vmatpush1.xpose.msra.mxu0 0.0
    %1048 = vmatprep.subr.mxu0 0.0
    %1049 = vmatpush1.xpose.msra.mxu0 0.0
    %1050 = vmatprep.subr.mxu0 0.0
    %1051 = vmatpush1.xpose.msra.mxu0 0.0
    %1052 = vmatprep.subr.mxu0 0.0
    %1053 = vmatpush1.xpose.msra.mxu0 0.0
    %1054 = vmatprep.subr.mxu0 0.0
    %1055 = vmatpush1.xpose.msra.mxu0 0.0
    %1056 = vmatprep.subr.mxu0 0.0
    %1057 = vmatpush1.xpose.msra.mxu0 0.0
    %1058 = vmatprep.subr.mxu0 0.0
    %1059 = vmatpush1.xpose.msra.mxu0 0.0
    %1060 = vmatprep.subr.mxu0 0.0
    %1061 = vmatpush1.xpose.msra.mxu0 0.0
    %1062 = vmatprep.subr.mxu0 0.0
    %1063 = vmatpush1.xpose.msra.mxu0 0.0
    %1064 = vmatprep.subr.mxu0 0.0
    %1065 = vmatpush1.xpose.msra.mxu0 0.0
    %1066 = vmatprep.subr.mxu0 0.0
    %1067 = vmatpush1.xpose.msra.mxu0 0.0
    %1068 = vmatprep.subr.mxu0 0.0
    %1069 = vmatpush1.xpose.msra.mxu0 0.0
    %1070 = vmatprep.subr.mxu0 0.0
    %1071 = vmatpush1.xpose.msra.mxu0 0.0
    %1072 = vmatprep.subr.mxu0 0.0
    %1073 = vmatpush1.xpose.msra.mxu0 0.0
    %1074 = vmatprep.subr.mxu0 0.0
    %1075 = vmatpush1.xpose.msra.mxu0 0.0
    %1076 = vmatprep.mubr.f32.mxu0 0.0
    %1077 = vmatmul.mubr.f32.gmra.mrb[0].mxu0 %v1007
    %v1078 = vpop.f32.mrb[0].mxu0
    %v1079 = vadd.f32 0.0, %v1078
    %v1080 = vpop.f32.mrb[0].mxu0
    %1081 = vdwg.mxu0
    %v1083 = vsel %vm420, %v827, 0
    %v1086 = vsel %vm420, %v915, 0
    %1088 = vmatprep.subr.mxu0 0.0
    %1089 = vmatpush1.xpose.msra.mxu0 %v1086
    %1090 = vmatprep.subr.mxu0 0.0
    %1091 = vmatpush1.xpose.msra.mxu0 0.0
    %1092 = vmatprep.subr.mxu0 0.0
    %1093 = vmatpush1.xpose.msra.mxu0 0.0
    %1094 = vmatprep.subr.mxu0 0.0
    %1095 = vmatpush1.xpose.msra.mxu0 0.0
    %1096 = vmatprep.subr.mxu0 0.0
    %1097 = vmatpush1.xpose.msra.mxu0 0.0
    %1098 = vmatprep.subr.mxu0 0.0
    %1099 = vmatpush1.xpose.msra.mxu0 0.0
    %1100 = vmatprep.subr.mxu0 0.0
    %1101 = vmatpush1.xpose.msra.mxu0 0.0
    %1102 = vmatprep.subr.mxu0 0.0
    %1103 = vmatpush1.xpose.msra.mxu0 0.0
    %1104 = vmatprep.subr.mxu0 0.0
    %1105 = vmatpush1.xpose.msra.mxu0 0.0
    %1106 = vmatprep.subr.mxu0 0.0
    %1107 = vmatpush1.xpose.msra.mxu0 0.0
    %1108 = vmatprep.subr.mxu0 0.0
    %1109 = vmatpush1.xpose.msra.mxu0 0.0
    %1110 = vmatprep.subr.mxu0 0.0
    %1111 = vmatpush1.xpose.msra.mxu0 0.0
    %1112 = vmatprep.subr.mxu0 0.0
    %1113 = vmatpush1.xpose.msra.mxu0 0.0
    %1114 = vmatprep.subr.mxu0 0.0
    %1115 = vmatpush1.xpose.msra.mxu0 0.0
    %1116 = vmatprep.subr.mxu0 0.0
    %1117 = vmatpush1.xpose.msra.mxu0 0.0
    %1118 = vmatprep.subr.mxu0 0.0
    %1119 = vmatpush1.xpose.msra.mxu0 0.0
    %1120 = vmatprep.subr.mxu0 0.0
    %1121 = vmatpush1.xpose.msra.mxu0 0.0
    %1122 = vmatprep.subr.mxu0 0.0
    %1123 = vmatpush1.xpose.msra.mxu0 0.0
    %1124 = vmatprep.subr.mxu0 0.0
    %1125 = vmatpush1.xpose.msra.mxu0 0.0
    %1126 = vmatprep.subr.mxu0 0.0
    %1127 = vmatpush1.xpose.msra.mxu0 0.0
    %1128 = vmatprep.subr.mxu0 0.0
    %1129 = vmatpush1.xpose.msra.mxu0 0.0
    %1130 = vmatprep.subr.mxu0 0.0
    %1131 = vmatpush1.xpose.msra.mxu0 0.0
    %1132 = vmatprep.subr.mxu0 0.0
    %1133 = vmatpush1.xpose.msra.mxu0 0.0
    %1134 = vmatprep.subr.mxu0 0.0
    %1135 = vmatpush1.xpose.msra.mxu0 0.0
    %1136 = vmatprep.subr.mxu0 0.0
    %1137 = vmatpush1.xpose.msra.mxu0 0.0
    %1138 = vmatprep.subr.mxu0 0.0
    %1139 = vmatpush1.xpose.msra.mxu0 0.0
    %1140 = vmatprep.subr.mxu0 0.0
    %1141 = vmatpush1.xpose.msra.mxu0 0.0
    %1142 = vmatprep.subr.mxu0 0.0
    %1143 = vmatpush1.xpose.msra.mxu0 0.0
    %1144 = vmatprep.subr.mxu0 0.0
    %1145 = vmatpush1.xpose.msra.mxu0 0.0
    %1146 = vmatprep.subr.mxu0 0.0
    %1147 = vmatpush1.xpose.msra.mxu0 0.0
    %1148 = vmatprep.subr.mxu0 0.0
    %1149 = vmatpush1.xpose.msra.mxu0 0.0
    %1150 = vmatprep.subr.mxu0 0.0
    %1151 = vmatpush1.xpose.msra.mxu0 0.0
    %1152 = vmatprep.mubr.f32.mxu0 0.0
    %1153 = vmatmul.mubr.f32.gmra.mrb[0].mxu0 %v1083
    %v1154 = vpop.f32.mrb[0].mxu0
    %v1155 = vadd.f32 0.0, %v1154
    %v1156 = vpop.f32.mrb[0].mxu0
    %1157 = vdwg.mxu0
    %v1158 = vsel %vm420, %v1079, -inf
    %1159 = vmax.xlane.f32.xlu0 %v1158
    %v1160 = vpop.xlane.xlu0 %1159
    %v1161 = vsel %vm420, %v1155, -inf
    %1162 = vmax.xlane.f32.xlu0 %v1161
    %v1163 = vpop.xlane.xlu0 %1162
    %v1164 = vsub.f32 %v1079, %v1160
    %v1165 = vsub.f32 %v1155, %v1163
    %v1166 = vmul.f32 %v1164, 1.442695
    %v1167 = vpow.pop %v1166
    %v1168 = vmul.f32 %v1165, 1.442695
    %v1169 = vpow.pop %v1168
    %v1170 = vsel %vm420, %v1167, 0.0
    %1171 = vadd.xlane.f32.xlu0 %v1170
    %v1172 = vpop.xlane.xlu0 %1171
    %v1173 = vsel %vm420, %v1169, 0.0
    %1174 = vadd.xlane.f32.xlu0 %v1173
    %v1175 = vpop.xlane.xlu0 %1174
    %v1176 = vrcp.pop %v1172
    %v1177 = vmul.f32 %v1167, %v1176
    %v1178 = vrcp.pop %v1175
    %v1179 = vmul.f32 %v1169, %v1178
    %v1181 = vsel %vm420, %v1177, 0
    %1183 = vmatprep.subr.mxu0 0.0
    %1184 = vmatpush1.msra.mxu0 %v998
    %1185 = vmatprep.subr.mxu0 0.0
    %1186 = vmatpush1.msra.mxu0 0.0
    %1187 = vmatprep.subr.mxu0 0.0
    %1188 = vmatpush1.msra.mxu0 0.0
    %1189 = vmatprep.subr.mxu0 0.0
    %1190 = vmatpush1.msra.mxu0 0.0
    %1191 = vmatprep.subr.mxu0 0.0
    %1192 = vmatpush1.msra.mxu0 0.0
    %1193 = vmatprep.subr.mxu0 0.0
    %1194 = vmatpush1.msra.mxu0 0.0
    %1195 = vmatprep.subr.mxu0 0.0
    %1196 = vmatpush1.msra.mxu0 0.0
    %1197 = vmatprep.subr.mxu0 0.0
    %1198 = vmatpush1.msra.mxu0 0.0
    %1199 = vmatprep.subr.mxu0 0.0
    %1200 = vmatpush1.msra.mxu0 0.0
    %1201 = vmatprep.subr.mxu0 0.0
    %1202 = vmatpush1.msra.mxu0 0.0
    %1203 = vmatprep.subr.mxu0 0.0
    %1204 = vmatpush1.msra.mxu0 0.0
    %1205 = vmatprep.subr.mxu0 0.0
    %1206 = vmatpush1.msra.mxu0 0.0
    %1207 = vmatprep.subr.mxu0 0.0
    %1208 = vmatpush1.msra.mxu0 0.0
    %1209 = vmatprep.subr.mxu0 0.0
    %1210 = vmatpush1.msra.mxu0 0.0
    %1211 = vmatprep.subr.mxu0 0.0
    %1212 = vmatpush1.msra.mxu0 0.0
    %1213 = vmatprep.subr.mxu0 0.0
    %1214 = vmatpush1.msra.mxu0 0.0
    %1215 = vmatprep.subr.mxu0 0.0
    %1216 = vmatpush1.msra.mxu0 0.0
    %1217 = vmatprep.subr.mxu0 0.0
    %1218 = vmatpush1.msra.mxu0 0.0
    %1219 = vmatprep.subr.mxu0 0.0
    %1220 = vmatpush1.msra.mxu0 0.0
    %1221 = vmatprep.subr.mxu0 0.0
    %1222 = vmatpush1.msra.mxu0 0.0
    %1223 = vmatprep.subr.mxu0 0.0
    %1224 = vmatpush1.msra.mxu0 0.0
    %1225 = vmatprep.subr.mxu0 0.0
    %1226 = vmatpush1.msra.mxu0 0.0
    %1227 = vmatprep.subr.mxu0 0.0
    %1228 = vmatpush1.msra.mxu0 0.0
    %1229 = vmatprep.subr.mxu0 0.0
    %1230 = vmatpush1.msra.mxu0 0.0
    %1231 = vmatprep.subr.mxu0 0.0
    %1232 = vmatpush1.msra.mxu0 0.0
    %1233 = vmatprep.subr.mxu0 0.0
    %1234 = vmatpush1.msra.mxu0 0.0
    %1235 = vmatprep.subr.mxu0 0.0
    %1236 = vmatpush1.msra.mxu0 0.0
    %1237 = vmatprep.subr.mxu0 0.0
    %1238 = vmatpush1.msra.mxu0 0.0
    %1239 = vmatprep.subr.mxu0 0.0
    %1240 = vmatpush1.msra.mxu0 0.0
    %1241 = vmatprep.subr.mxu0 0.0
    %1242 = vmatpush1.msra.mxu0 0.0
    %1243 = vmatprep.subr.mxu0 0.0
    %1244 = vmatpush1.msra.mxu0 0.0
    %1245 = vmatprep.subr.mxu0 0.0
    %1246 = vmatpush1.msra.mxu0 0.0
    %1247 = vmatprep.mubr.f32.mxu0 0.0
    %1248 = vmatmul.mubr.f32.gmra.mrb[0].mxu0 %v1181
    %v1249 = vpop.f32.mrb[0].mxu0
    %v1250 = vadd.f32 0.0, %v1249
    %v1251 = vpop.f32.mrb[0].mxu0
    %1252 = vdwg.mxu0
    %v1254 = vsel %vm420, %v1179, 0
    %1256 = vmatprep.subr.mxu0 0.0
    %1257 = vmatpush1.msra.mxu0 %v1003
    %1258 = vmatprep.subr.mxu0 0.0
    %1259 = vmatpush1.msra.mxu0 0.0
    %1260 = vmatprep.subr.mxu0 0.0
    %1261 = vmatpush1.msra.mxu0 0.0
    %1262 = vmatprep.subr.mxu0 0.0
    %1263 = vmatpush1.msra.mxu0 0.0
    %1264 = vmatprep.subr.mxu0 0.0
    %1265 = vmatpush1.msra.mxu0 0.0
    %1266 = vmatprep.subr.mxu0 0.0
    %1267 = vmatpush1.msra.mxu0 0.0
    %1268 = vmatprep.subr.mxu0 0.0
    %1269 = vmatpush1.msra.mxu0 0.0
    %1270 = vmatprep.subr.mxu0 0.0
    %1271 = vmatpush1.msra.mxu0 0.0
    %1272 = vmatprep.subr.mxu0 0.0
    %1273 = vmatpush1.msra.mxu0 0.0
    %1274 = vmatprep.subr.mxu0 0.0
    %1275 = vmatpush1.msra.mxu0 0.0
    %1276 = vmatprep.subr.mxu0 0.0
    %1277 = vmatpush1.msra.mxu0 0.0
    %1278 = vmatprep.subr.mxu0 0.0
    %1279 = vmatpush1.msra.mxu0 0.0
    %1280 = vmatprep.subr.mxu0 0.0
    %1281 = vmatpush1.msra.mxu0 0.0
    %1282 = vmatprep.subr.mxu0 0.0
    %1283 = vmatpush1.msra.mxu0 0.0
    %1284 = vmatprep.subr.mxu0 0.0
    %1285 = vmatpush1.msra.mxu0 0.0
    %1286 = vmatprep.subr.mxu0 0.0
    %1287 = vmatpush1.msra.mxu0 0.0
    %1288 = vmatprep.subr.mxu0 0.0
    %1289 = vmatpush1.msra.mxu0 0.0
    %1290 = vmatprep.subr.mxu0 0.0
    %1291 = vmatpush1.msra.mxu0 0.0
    %1292 = vmatprep.subr.mxu0 0.0
    %1293 = vmatpush1.msra.mxu0 0.0
    %1294 = vmatprep.subr.mxu0 0.0
    %1295 = vmatpush1.msra.mxu0 0.0
    %1296 = vmatprep.subr.mxu0 0.0
    %1297 = vmatpush1.msra.mxu0 0.0
    %1298 = vmatprep.subr.mxu0 0.0
    %1299 = vmatpush1.msra.mxu0 0.0
    %1300 = vmatprep.subr.mxu0 0.0
    %1301 = vmatpush1.msra.mxu0 0.0
    %1302 = vmatprep.subr.mxu0 0.0
    %1303 = vmatpush1.msra.mxu0 0.0
    %1304 = vmatprep.subr.mxu0 0.0
    %1305 = vmatpush1.msra.mxu0 0.0
    %1306 = vmatprep.subr.mxu0 0.0
    %1307 = vmatpush1.msra.mxu0 0.0
    %1308 = vmatprep.subr.mxu0 0.0
    %1309 = vmatpush1.msra.mxu0 0.0
    %1310 = vmatprep.subr.mxu0 0.0
    %1311 = vmatpush1.msra.mxu0 0.0
    %1312 = vmatprep.subr.mxu0 0.0
    %1313 = vmatpush1.msra.mxu0 0.0
    %1314 = vmatprep.subr.mxu0 0.0
    %1315 = vmatpush1.msra.mxu0 0.0
    %1316 = vmatprep.subr.mxu0 0.0
    %1317 = vmatpush1.msra.mxu0 0.0
    %1318 = vmatprep.subr.mxu0 0.0
    %1319 = vmatpush1.msra.mxu0 0.0
    %1320 = vmatprep.mubr.f32.mxu0 0.0
    %1321 = vmatmul.mubr.f32.gmra.mrb[0].mxu0 %v1254
    %v1322 = vpop.f32.mrb[0].mxu0
    %v1323 = vadd.f32 0.0, %v1322
    %v1324 = vpop.f32.mrb[0].mxu0
    %1325 = vdwg.mxu0
    %s1326 = scalar_lea.vmem [#allocation14], 8
    %v1327 = vld [vmem:[%s1326] sm:$0xff]
    %v1329 = vsel %vm420, %v1250, 0
    %v1332 = vsel %vm420, %v1323, 0
    %1334 = vmatprep.subr.mxu0 0.0
    %1335 = vmatpush1.msra.mxu0 %v1327
    %1336 = vmatprep.subr.mxu0 0.0
    %1337 = vmatpush1.msra.mxu0 0.0
    %1338 = vmatprep.subr.mxu0 0.0
    %1339 = vmatpush1.msra.mxu0 0.0
    %1340 = vmatprep.subr.mxu0 0.0
    %1341 = vmatpush1.msra.mxu0 0.0
    %1342 = vmatprep.subr.mxu0 0.0
    %1343 = vmatpush1.msra.mxu0 0.0
    %1344 = vmatprep.subr.mxu0 0.0
    %1345 = vmatpush1.msra.mxu0 0.0
    %1346 = vmatprep.subr.mxu0 0.0
    %1347 = vmatpush1.msra.mxu0 0.0
    %1348 = vmatprep.subr.mxu0 0.0
    %1349 = vmatpush1.msra.mxu0 0.0
    %1350 = vmatprep.subr.mxu0 0.0
    %1351 = vmatpush1.msra.mxu0 0.0
    %1352 = vmatprep.subr.mxu0 0.0
    %1353 = vmatpush1.msra.mxu0 0.0
    %1354 = vmatprep.subr.mxu0 0.0
    %1355 = vmatpush1.msra.mxu0 0.0
    %1356 = vmatprep.subr.mxu0 0.0
    %1357 = vmatpush1.msra.mxu0 0.0
    %1358 = vmatprep.subr.mxu0 0.0
    %1359 = vmatpush1.msra.mxu0 0.0
    %1360 = vmatprep.subr.mxu0 0.0
    %1361 = vmatpush1.msra.mxu0 0.0
    %1362 = vmatprep.subr.mxu0 0.0
    %1363 = vmatpush1.msra.mxu0 0.0
    %1364 = vmatprep.subr.mxu0 0.0
    %1365 = vmatpush1.msra.mxu0 0.0
    %1366 = vmatprep.subr.mxu0 0.0
    %1367 = vmatpush1.msra.mxu0 0.0
    %1368 = vmatprep.subr.mxu0 0.0
    %1369 = vmatpush1.msra.mxu0 0.0
    %1370 = vmatprep.subr.mxu0 0.0
    %1371 = vmatpush1.msra.mxu0 0.0
    %1372 = vmatprep.subr.mxu0 0.0
    %1373 = vmatpush1.msra.mxu0 0.0
    %1374 = vmatprep.subr.mxu0 0.0
    %1375 = vmatpush1.msra.mxu0 0.0
    %1376 = vmatprep.subr.mxu0 0.0
    %1377 = vmatpush1.msra.mxu0 0.0
    %1378 = vmatprep.subr.mxu0 0.0
    %1379 = vmatpush1.msra.mxu0 0.0
    %1380 = vmatprep.subr.mxu0 0.0
    %1381 = vmatpush1.msra.mxu0 0.0
    %1382 = vmatprep.subr.mxu0 0.0
    %1383 = vmatpush1.msra.mxu0 0.0
    %1384 = vmatprep.subr.mxu0 0.0
    %1385 = vmatpush1.msra.mxu0 0.0
    %1386 = vmatprep.subr.mxu0 0.0
    %1387 = vmatpush1.msra.mxu0 0.0
    %1388 = vmatprep.subr.mxu0 0.0
    %1389 = vmatpush1.msra.mxu0 0.0
    %1390 = vmatprep.subr.mxu0 0.0
    %1391 = vmatpush1.msra.mxu0 0.0
    %1392 = vmatprep.subr.mxu0 0.0
    %1393 = vmatpush1.msra.mxu0 0.0
    %1394 = vmatprep.subr.mxu0 0.0
    %1395 = vmatpush1.msra.mxu0 0.0
    %1396 = vmatprep.subr.mxu0 0.0
    %1397 = vmatpush1.msra.mxu0 0.0
    %1398 = vmatprep.mubr.f32.mxu0 0.0
    %1399 = vmatmul.mubr.f32.gmra.mrb[0].mxu0 %v1329
    %v1400 = vpop.f32.mrb[0].mxu0
    %v1401 = vadd.f32 0.0, %v1400
    %v1402 = vpop.f32.mrb[0].mxu0
    %1403 = vmatprep.mubr.f32.mxu0 0.0
    %1404 = vmatmul.mubr.f32.gmra.mrb[0].mxu0 %v1332
    %v1405 = vpop.f32.mrb[0].mxu0
    %v1406 = vadd.f32 0.0, %v1405
    %v1407 = vpop.f32.mrb[0].mxu0
    %1408 = vdwg.mxu0
    %v1410 = vsel %vm420, %v665, 0
    %v1413 = vsel %vm420, %v738, 0
    %1415 = vmatprep.subr.mxu0 0.0
    %1416 = vmatpush1.msra.mxu0 %v741
    %1417 = vmatprep.subr.mxu0 0.0
    %1418 = vmatpush1.msra.mxu0 0.0
    %1419 = vmatprep.subr.mxu0 0.0
    %1420 = vmatpush1.msra.mxu0 0.0
    %1421 = vmatprep.subr.mxu0 0.0
    %1422 = vmatpush1.msra.mxu0 0.0
    %1423 = vmatprep.subr.mxu0 0.0
    %1424 = vmatpush1.msra.mxu0 0.0
    %1425 = vmatprep.subr.mxu0 0.0
    %1426 = vmatpush1.msra.mxu0 0.0
    %1427 = vmatprep.subr.mxu0 0.0
    %1428 = vmatpush1.msra.mxu0 0.0
    %1429 = vmatprep.subr.mxu0 0.0
    %1430 = vmatpush1.msra.mxu0 0.0
    %1431 = vmatprep.subr.mxu0 0.0
    %1432 = vmatpush1.msra.mxu0 0.0
    %1433 = vmatprep.subr.mxu0 0.0
    %1434 = vmatpush1.msra.mxu0 0.0
    %1435 = vmatprep.subr.mxu0 0.0
    %1436 = vmatpush1.msra.mxu0 0.0
    %1437 = vmatprep.subr.mxu0 0.0
    %1438 = vmatpush1.msra.mxu0 0.0
    %1439 = vmatprep.subr.mxu0 0.0
    %1440 = vmatpush1.msra.mxu0 0.0
    %1441 = vmatprep.subr.mxu0 0.0
    %1442 = vmatpush1.msra.mxu0 0.0
    %1443 = vmatprep.subr.mxu0 0.0
    %1444 = vmatpush1.msra.mxu0 0.0
    %1445 = vmatprep.subr.mxu0 0.0
    %1446 = vmatpush1.msra.mxu0 0.0
    %1447 = vmatprep.subr.mxu0 0.0
    %1448 = vmatpush1.msra.mxu0 0.0
    %1449 = vmatprep.subr.mxu0 0.0
    %1450 = vmatpush1.msra.mxu0 0.0
    %1451 = vmatprep.subr.mxu0 0.0
    %1452 = vmatpush1.msra.mxu0 0.0
    %1453 = vmatprep.subr.mxu0 0.0
    %1454 = vmatpush1.msra.mxu0 0.0
    %1455 = vmatprep.subr.mxu0 0.0
    %1456 = vmatpush1.msra.mxu0 0.0
    %1457 = vmatprep.subr.mxu0 0.0
    %1458 = vmatpush1.msra.mxu0 0.0
    %1459 = vmatprep.subr.mxu0 0.0
    %1460 = vmatpush1.msra.mxu0 0.0
    %1461 = vmatprep.subr.mxu0 0.0
    %1462 = vmatpush1.msra.mxu0 0.0
    %1463 = vmatprep.subr.mxu0 0.0
    %1464 = vmatpush1.msra.mxu0 0.0
    %1465 = vmatprep.subr.mxu0 0.0
    %1466 = vmatpush1.msra.mxu0 0.0
    %1467 = vmatprep.subr.mxu0 0.0
    %1468 = vmatpush1.msra.mxu0 0.0
    %1469 = vmatprep.subr.mxu0 0.0
    %1470 = vmatpush1.msra.mxu0 0.0
    %1471 = vmatprep.subr.mxu0 0.0
    %1472 = vmatpush1.msra.mxu0 0.0
    %1473 = vmatprep.subr.mxu0 0.0
    %1474 = vmatpush1.msra.mxu0 0.0
    %1475 = vmatprep.subr.mxu0 0.0
    %1476 = vmatpush1.msra.mxu0 0.0
    %1477 = vmatprep.subr.mxu0 0.0
    %1478 = vmatpush1.msra.mxu0 0.0
    %1479 = vmatprep.mubr.f32.mxu0 0.0
    %1480 = vmatmul.mubr.f32.gmra.mrb[0].mxu0 %v1410
    %v1481 = vpop.f32.mrb[0].mxu0
    %v1482 = vadd.f32 %v1401, %v1481
    %v1483 = vpop.f32.mrb[0].mxu0
    %1484 = vmatprep.mubr.f32.mxu0 0.0
    %1485 = vmatmul.mubr.f32.gmra.mrb[0].mxu0 %v1413
    %v1486 = vpop.f32.mrb[0].mxu0
    %v1487 = vadd.f32 %v1406, %v1486
    %v1488 = vpop.f32.mrb[0].mxu0
    %1489 = vdwg.mxu0
    %s1490 = scalar_lea.vmem [#allocation5], 64
    %v1491 = vld [vmem:[%s1490] sm:$0xff]
    %v1492 = vld [vmem:[%s1490 + $0x8] sm:$0xff]
    %v1493 = vld [vmem:[%s1490 + $0x10] sm:$0xff]
    %v1494 = vld [vmem:[%s1490 + $0x18] sm:$0xff]
    %s1495 = scalar_lea.vmem [#allocation7], 2
    %v1496 = vld [vmem:[%s1495] sm:$0x1]
    %v1498 = vlaneseq
    %v1499 = vshrl.u32 %v1498, 7
    %v1500 = vsub.s32 0, %v1499
    %v1501 = vrot.slane %v1496, %v1500
    %1503 = vmatprep.subr.mxu0 0.0
    %1504 = vmatpush1.msra.mxu0 %v1491
    %1505 = vmatprep.subr.mxu0 0.0
    %1506 = vmatpush1.msra.mxu0 %v1492
    %1507 = vmatprep.subr.mxu0 0.0
    %1508 = vmatpush1.msra.mxu0 %v1493
    %1509 = vmatprep.subr.mxu0 0.0
    %1510 = vmatpush1.msra.mxu0 %v1494
    %1511 = vmatprep.subr.mxu0 0.0
    %1512 = vmatpush1.msra.mxu0 0.0
    %1513 = vmatprep.subr.mxu0 0.0
    %1514 = vmatpush1.msra.mxu0 0.0
    %1515 = vmatprep.subr.mxu0 0.0
    %1516 = vmatpush1.msra.mxu0 0.0
    %1517 = vmatprep.subr.mxu0 0.0
    %1518 = vmatpush1.msra.mxu0 0.0
    %1519 = vmatprep.subr.mxu0 0.0
    %1520 = vmatpush1.msra.mxu0 0.0
    %1521 = vmatprep.subr.mxu0 0.0
    %1522 = vmatpush1.msra.mxu0 0.0
    %1523 = vmatprep.subr.mxu0 0.0
    %1524 = vmatpush1.msra.mxu0 0.0
    %1525 = vmatprep.subr.mxu0 0.0
    %1526 = vmatpush1.msra.mxu0 0.0
    %1527 = vmatprep.subr.mxu0 0.0
    %1528 = vmatpush1.msra.mxu0 0.0
    %1529 = vmatprep.subr.mxu0 0.0
    %1530 = vmatpush1.msra.mxu0 0.0
    %1531 = vmatprep.subr.mxu0 0.0
    %1532 = vmatpush1.msra.mxu0 0.0
    %1533 = vmatprep.subr.mxu0 0.0
    %1534 = vmatpush1.msra.mxu0 0.0
    %1535 = vmatprep.subr.mxu0 0.0
    %1536 = vmatpush1.msra.mxu0 0.0
    %1537 = vmatprep.subr.mxu0 0.0
    %1538 = vmatpush1.msra.mxu0 0.0
    %1539 = vmatprep.subr.mxu0 0.0
    %1540 = vmatpush1.msra.mxu0 0.0
    %1541 = vmatprep.subr.mxu0 0.0
    %1542 = vmatpush1.msra.mxu0 0.0
    %1543 = vmatprep.subr.mxu0 0.0
    %1544 = vmatpush1.msra.mxu0 0.0
    %1545 = vmatprep.subr.mxu0 0.0
    %1546 = vmatpush1.msra.mxu0 0.0
    %1547 = vmatprep.subr.mxu0 0.0
    %1548 = vmatpush1.msra.mxu0 0.0
    %1549 = vmatprep.subr.mxu0 0.0
    %1550 = vmatpush1.msra.mxu0 0.0
    %1551 = vmatprep.subr.mxu0 0.0
    %1552 = vmatpush1.msra.mxu0 0.0
    %1553 = vmatprep.subr.mxu0 0.0
    %1554 = vmatpush1.msra.mxu0 0.0
    %1555 = vmatprep.subr.mxu0 0.0
    %1556 = vmatpush1.msra.mxu0 0.0
    %1557 = vmatprep.subr.mxu0 0.0
    %1558 = vmatpush1.msra.mxu0 0.0
    %1559 = vmatprep.subr.mxu0 0.0
    %1560 = vmatpush1.msra.mxu0 0.0
    %1561 = vmatprep.subr.mxu0 0.0
    %1562 = vmatpush1.msra.mxu0 0.0
    %1563 = vmatprep.subr.mxu0 0.0
    %1564 = vmatpush1.msra.mxu0 0.0
    %1565 = vmatprep.subr.mxu0 0.0
    %1566 = vmatpush1.msra.mxu0 0.0
    %1567 = vmatprep.mubr.f32.mxu0 0.0
    %1568 = vmatmul.mubr.f32.gmra.mrb[0].mxu0 %v168
    %v1569 = vpop.f32.mrb[0].mxu0
    %v1570 = vadd.f32 %v1501, %v1569
    %v1571 = vpop.f32.mrb[0].mxu0
    %1572 = vmatprep.mubr.f32.mxu0 0.0
    %1573 = vmatmul.mubr.f32.gmra.mrb[0].mxu0 %v171
    %v1574 = vpop.f32.mrb[0].mxu0
    %v1575 = vadd.f32 %v1501, %v1574
    %v1576 = vpop.f32.mrb[0].mxu0
    %1577 = vdwg.mxu0
    %s1578 = scalar_lea.vmem [#allocation8], 64
    %v1579 = vld [vmem:[%s1578] sm:$0xff]
    %v1580 = vld [vmem:[%s1578 + $0x8] sm:$0xff]
    %v1581 = vld [vmem:[%s1578 + $0x10] sm:$0xff]
    %v1582 = vld [vmem:[%s1578 + $0x18] sm:$0xff]
    %s1583 = scalar_lea.vmem [#allocation10], 2
    %v1584 = vld [vmem:[%s1583] sm:$0x1]
    %v1586 = vlaneseq
    %v1587 = vshrl.u32 %v1586, 7
    %v1588 = vsub.s32 0, %v1587
    %v1589 = vrot.slane %v1584, %v1588
    %1591 = vmatprep.subr.mxu0 0.0
    %1592 = vmatpush1.msra.mxu0 %v1579
    %1593 = vmatprep.subr.mxu0 0.0
    %1594 = vmatpush1.msra.mxu0 %v1580
    %1595 = vmatprep.subr.mxu0 0.0
    %1596 = vmatpush1.msra.mxu0 %v1581
    %1597 = vmatprep.subr.mxu0 0.0
    %1598 = vmatpush1.msra.mxu0 %v1582
    %1599 = vmatprep.subr.mxu0 0.0
    %1600 = vmatpush1.msra.mxu0 0.0
    %1601 = vmatprep.subr.mxu0 0.0
    %1602 = vmatpush1.msra.mxu0 0.0
    %1603 = vmatprep.subr.mxu0 0.0
    %1604 = vmatpush1.msra.mxu0 0.0
    %1605 = vmatprep.subr.mxu0 0.0
    %1606 = vmatpush1.msra.mxu0 0.0
    %1607 = vmatprep.subr.mxu0 0.0
    %1608 = vmatpush1.msra.mxu0 0.0
    %1609 = vmatprep.subr.mxu0 0.0
    %1610 = vmatpush1.msra.mxu0 0.0
    %1611 = vmatprep.subr.mxu0 0.0
    %1612 = vmatpush1.msra.mxu0 0.0
    %1613 = vmatprep.subr.mxu0 0.0
    %1614 = vmatpush1.msra.mxu0 0.0
    %1615 = vmatprep.subr.mxu0 0.0
    %1616 = vmatpush1.msra.mxu0 0.0
    %1617 = vmatprep.subr.mxu0 0.0
    %1618 = vmatpush1.msra.mxu0 0.0
    %1619 = vmatprep.subr.mxu0 0.0
    %1620 = vmatpush1.msra.mxu0 0.0
    %1621 = vmatprep.subr.mxu0 0.0
    %1622 = vmatpush1.msra.mxu0 0.0
    %1623 = vmatprep.subr.mxu0 0.0
    %1624 = vmatpush1.msra.mxu0 0.0
    %1625 = vmatprep.subr.mxu0 0.0
    %1626 = vmatpush1.msra.mxu0 0.0
    %1627 = vmatprep.subr.mxu0 0.0
    %1628 = vmatpush1.msra.mxu0 0.0
    %1629 = vmatprep.subr.mxu0 0.0
    %1630 = vmatpush1.msra.mxu0 0.0
    %1631 = vmatprep.subr.mxu0 0.0
    %1632 = vmatpush1.msra.mxu0 0.0
    %1633 = vmatprep.subr.mxu0 0.0
    %1634 = vmatpush1.msra.mxu0 0.0
    %1635 = vmatprep.subr.mxu0 0.0
    %1636 = vmatpush1.msra.mxu0 0.0
    %1637 = vmatprep.subr.mxu0 0.0
    %1638 = vmatpush1.msra.mxu0 0.0
    %1639 = vmatprep.subr.mxu0 0.0
    %1640 = vmatpush1.msra.mxu0 0.0
    %1641 = vmatprep.subr.mxu0 0.0
    %1642 = vmatpush1.msra.mxu0 0.0
    %1643 = vmatprep.subr.mxu0 0.0
    %1644 = vmatpush1.msra.mxu0 0.0
    %1645 = vmatprep.subr.mxu0 0.0
    %1646 = vmatpush1.msra.mxu0 0.0
    %1647 = vmatprep.subr.mxu0 0.0
    %1648 = vmatpush1.msra.mxu0 0.0
    %1649 = vmatprep.subr.mxu0 0.0
    %1650 = vmatpush1.msra.mxu0 0.0
    %1651 = vmatprep.subr.mxu0 0.0
    %1652 = vmatpush1.msra.mxu0 0.0
    %1653 = vmatprep.subr.mxu0 0.0
    %1654 = vmatpush1.msra.mxu0 0.0
    %1655 = vmatprep.mubr.f32.mxu0 0.0
    %1656 = vmatmul.mubr.f32.gmra.mrb[0].mxu0 %v168
    %v1657 = vpop.f32.mrb[0].mxu0
    %v1658 = vadd.f32 %v1589, %v1657
    %v1659 = vpop.f32.mrb[0].mxu0
    %1660 = vmatprep.mubr.f32.mxu0 0.0
    %1661 = vmatmul.mubr.f32.gmra.mrb[0].mxu0 %v171
    %v1662 = vpop.f32.mrb[0].mxu0
    %v1663 = vadd.f32 %v1589, %v1662
    %v1664 = vpop.f32.mrb[0].mxu0
    %1665 = vdwg.mxu0
    %s1666 = scalar_lea.vmem [#allocation11], 64
    %v1667 = vld [vmem:[%s1666] sm:$0xff]
    %v1668 = vld [vmem:[%s1666 + $0x8] sm:$0xff]
    %v1669 = vld [vmem:[%s1666 + $0x10] sm:$0xff]
    %v1670 = vld [vmem:[%s1666 + $0x18] sm:$0xff]
    %s1671 = scalar_lea.vmem [#allocation13], 2
    %v1672 = vld [vmem:[%s1671] sm:$0x1]
    %v1674 = vlaneseq
    %v1675 = vshrl.u32 %v1674, 7
    %v1676 = vsub.s32 0, %v1675
    %v1677 = vrot.slane %v1672, %v1676
    %1679 = vmatprep.subr.mxu0 0.0
    %1680 = vmatpush1.msra.mxu0 %v1667
    %1681 = vmatprep.subr.mxu0 0.0
    %1682 = vmatpush1.msra.mxu0 %v1668
    %1683 = vmatprep.subr.mxu0 0.0
    %1684 = vmatpush1.msra.mxu0 %v1669
    %1685 = vmatprep.subr.mxu0 0.0
    %1686 = vmatpush1.msra.mxu0 %v1670
    %1687 = vmatprep.subr.mxu0 0.0
    %1688 = vmatpush1.msra.mxu0 0.0
    %1689 = vmatprep.subr.mxu0 0.0
    %1690 = vmatpush1.msra.mxu0 0.0
    %1691 = vmatprep.subr.mxu0 0.0
    %1692 = vmatpush1.msra.mxu0 0.0
    %1693 = vmatprep.subr.mxu0 0.0
    %1694 = vmatpush1.msra.mxu0 0.0
    %1695 = vmatprep.subr.mxu0 0.0
    %1696 = vmatpush1.msra.mxu0 0.0
    %1697 = vmatprep.subr.mxu0 0.0
    %1698 = vmatpush1.msra.mxu0 0.0
    %1699 = vmatprep.subr.mxu0 0.0
    %1700 = vmatpush1.msra.mxu0 0.0
    %1701 = vmatprep.subr.mxu0 0.0
    %1702 = vmatpush1.msra.mxu0 0.0
    %1703 = vmatprep.subr.mxu0 0.0
    %1704 = vmatpush1.msra.mxu0 0.0
    %1705 = vmatprep.subr.mxu0 0.0
    %1706 = vmatpush1.msra.mxu0 0.0
    %1707 = vmatprep.subr.mxu0 0.0
    %1708 = vmatpush1.msra.mxu0 0.0
    %1709 = vmatprep.subr.mxu0 0.0
    %1710 = vmatpush1.msra.mxu0 0.0
    %1711 = vmatprep.subr.mxu0 0.0
    %1712 = vmatpush1.msra.mxu0 0.0
    %1713 = vmatprep.subr.mxu0 0.0
    %1714 = vmatpush1.msra.mxu0 0.0
    %1715 = vmatprep.subr.mxu0 0.0
    %1716 = vmatpush1.msra.mxu0 0.0
    %1717 = vmatprep.subr.mxu0 0.0
    %1718 = vmatpush1.msra.mxu0 0.0
    %1719 = vmatprep.subr.mxu0 0.0
    %1720 = vmatpush1.msra.mxu0 0.0
    %1721 = vmatprep.subr.mxu0 0.0
    %1722 = vmatpush1.msra.mxu0 0.0
    %1723 = vmatprep.subr.mxu0 0.0
    %1724 = vmatpush1.msra.mxu0 0.0
    %1725 = vmatprep.subr.mxu0 0.0
    %1726 = vmatpush1.msra.mxu0 0.0
    %1727 = vmatprep.subr.mxu0 0.0
    %1728 = vmatpush1.msra.mxu0 0.0
    %1729 = vmatprep.subr.mxu0 0.0
    %1730 = vmatpush1.msra.mxu0 0.0
    %1731 = vmatprep.subr.mxu0 0.0
    %1732 = vmatpush1.msra.mxu0 0.0
    %1733 = vmatprep.subr.mxu0 0.0
    %1734 = vmatpush1.msra.mxu0 0.0
    %1735 = vmatprep.subr.mxu0 0.0
    %1736 = vmatpush1.msra.mxu0 0.0
    %1737 = vmatprep.subr.mxu0 0.0
    %1738 = vmatpush1.msra.mxu0 0.0
    %1739 = vmatprep.subr.mxu0 0.0
    %1740 = vmatpush1.msra.mxu0 0.0
    %1741 = vmatprep.subr.mxu0 0.0
    %1742 = vmatpush1.msra.mxu0 0.0
    %1743 = vmatprep.mubr.f32.mxu0 0.0
    %1744 = vmatmul.mubr.f32.gmra.mrb[0].mxu0 %v168
    %v1745 = vpop.f32.mrb[0].mxu0
    %v1746 = vadd.f32 %v1677, %v1745
    %v1747 = vpop.f32.mrb[0].mxu0
    %1748 = vmatprep.mubr.f32.mxu0 0.0
    %1749 = vmatmul.mubr.f32.gmra.mrb[0].mxu0 %v171
    %v1750 = vpop.f32.mrb[0].mxu0
    %v1751 = vadd.f32 %v1677, %v1750
    %v1752 = vpop.f32.mrb[0].mxu0
    %1753 = vdwg.mxu0
    %v1755 = vsel %vm420, %v1570, 0
    %v1758 = vsel %vm420, %v1658, 0
    %1760 = vmatprep.subr.mxu0 0.0
    %1761 = vmatpush1.xpose.msra.mxu0 %v1758
    %1762 = vmatprep.subr.mxu0 0.0
    %1763 = vmatpush1.xpose.msra.mxu0 0.0
    %1764 = vmatprep.subr.mxu0 0.0
    %1765 = vmatpush1.xpose.msra.mxu0 0.0
    %1766 = vmatprep.subr.mxu0 0.0
    %1767 = vmatpush1.xpose.msra.mxu0 0.0
    %1768 = vmatprep.subr.mxu0 0.0
    %1769 = vmatpush1.xpose.msra.mxu0 0.0
    %1770 = vmatprep.subr.mxu0 0.0
    %1771 = vmatpush1.xpose.msra.mxu0 0.0
    %1772 = vmatprep.subr.mxu0 0.0
    %1773 = vmatpush1.xpose.msra.mxu0 0.0
    %1774 = vmatprep.subr.mxu0 0.0
    %1775 = vmatpush1.xpose.msra.mxu0 0.0
    %1776 = vmatprep.subr.mxu0 0.0
    %1777 = vmatpush1.xpose.msra.mxu0 0.0
    %1778 = vmatprep.subr.mxu0 0.0
    %1779 = vmatpush1.xpose.msra.mxu0 0.0
    %1780 = vmatprep.subr.mxu0 0.0
    %1781 = vmatpush1.xpose.msra.mxu0 0.0
    %1782 = vmatprep.subr.mxu0 0.0
    %1783 = vmatpush1.xpose.msra.mxu0 0.0
    %1784 = vmatprep.subr.mxu0 0.0
    %1785 = vmatpush1.xpose.msra.mxu0 0.0
    %1786 = vmatprep.subr.mxu0 0.0
    %1787 = vmatpush1.xpose.msra.mxu0 0.0
    %1788 = vmatprep.subr.mxu0 0.0
    %1789 = vmatpush1.xpose.msra.mxu0 0.0
    %1790 = vmatprep.subr.mxu0 0.0
    %1791 = vmatpush1.xpose.msra.mxu0 0.0
    %1792 = vmatprep.subr.mxu0 0.0
    %1793 = vmatpush1.xpose.msra.mxu0 0.0
    %1794 = vmatprep.subr.mxu0 0.0
    %1795 = vmatpush1.xpose.msra.mxu0 0.0
    %1796 = vmatprep.subr.mxu0 0.0
    %1797 = vmatpush1.xpose.msra.mxu0 0.0
    %1798 = vmatprep.subr.mxu0 0.0
    %1799 = vmatpush1.xpose.msra.mxu0 0.0
    %1800 = vmatprep.subr.mxu0 0.0
    %1801 = vmatpush1.xpose.msra.mxu0 0.0
    %1802 = vmatprep.subr.mxu0 0.0
    %1803 = vmatpush1.xpose.msra.mxu0 0.0
    %1804 = vmatprep.subr.mxu0 0.0
    %1805 = vmatpush1.xpose.msra.mxu0 0.0
    %1806 = vmatprep.subr.mxu0 0.0
    %1807 = vmatpush1.xpose.msra.mxu0 0.0
    %1808 = vmatprep.subr.mxu0 0.0
    %1809 = vmatpush1.xpose.msra.mxu0 0.0
    %1810 = vmatprep.subr.mxu0 0.0
    %1811 = vmatpush1.xpose.msra.mxu0 0.0
    %1812 = vmatprep.subr.mxu0 0.0
    %1813 = vmatpush1.xpose.msra.mxu0 0.0
    %1814 = vmatprep.subr.mxu0 0.0
    %1815 = vmatpush1.xpose.msra.mxu0 0.0
    %1816 = vmatprep.subr.mxu0 0.0
    %1817 = vmatpush1.xpose.msra.mxu0 0.0
    %1818 = vmatprep.subr.mxu0 0.0
    %1819 = vmatpush1.xpose.msra.mxu0 0.0
    %1820 = vmatprep.subr.mxu0 0.0
    %1821 = vmatpush1.xpose.msra.mxu0 0.0
    %1822 = vmatprep.subr.mxu0 0.0
    %1823 = vmatpush1.xpose.msra.mxu0 0.0
    %1824 = vmatprep.mubr.f32.mxu0 0.0
    %1825 = vmatmul.mubr.f32.gmra.mrb[0].mxu0 %v1755
    %v1826 = vpop.f32.mrb[0].mxu0
    %v1827 = vadd.f32 0.0, %v1826
    %v1828 = vpop.f32.mrb[0].mxu0
    %1829 = vdwg.mxu0
    %v1831 = vsel %vm420, %v1575, 0
    %v1834 = vsel %vm420, %v1663, 0
    %1836 = vmatprep.subr.mxu0 0.0
    %1837 = vmatpush1.xpose.msra.mxu0 %v1834
    %1838 = vmatprep.subr.mxu0 0.0
    %1839 = vmatpush1.xpose.msra.mxu0 0.0
    %1840 = vmatprep.subr.mxu0 0.0
    %1841 = vmatpush1.xpose.msra.mxu0 0.0
    %1842 = vmatprep.subr.mxu0 0.0
    %1843 = vmatpush1.xpose.msra.mxu0 0.0
    %1844 = vmatprep.subr.mxu0 0.0
    %1845 = vmatpush1.xpose.msra.mxu0 0.0
    %1846 = vmatprep.subr.mxu0 0.0
    %1847 = vmatpush1.xpose.msra.mxu0 0.0
    %1848 = vmatprep.subr.mxu0 0.0
    %1849 = vmatpush1.xpose.msra.mxu0 0.0
    %1850 = vmatprep.subr.mxu0 0.0
    %1851 = vmatpush1.xpose.msra.mxu0 0.0
    %1852 = vmatprep.subr.mxu0 0.0
    %1853 = vmatpush1.xpose.msra.mxu0 0.0
    %1854 = vmatprep.subr.mxu0 0.0
    %1855 = vmatpush1.xpose.msra.mxu0 0.0
    %1856 = vmatprep.subr.mxu0 0.0
    %1857 = vmatpush1.xpose.msra.mxu0 0.0
    %1858 = vmatprep.subr.mxu0 0.0
    %1859 = vmatpush1.xpose.msra.mxu0 0.0
    %1860 = vmatprep.subr.mxu0 0.0
    %1861 = vmatpush1.xpose.msra.mxu0 0.0
    %1862 = vmatprep.subr.mxu0 0.0
    %1863 = vmatpush1.xpose.msra.mxu0 0.0
    %1864 = vmatprep.subr.mxu0 0.0
    %1865 = vmatpush1.xpose.msra.mxu0 0.0
    %1866 = vmatprep.subr.mxu0 0.0
    %1867 = vmatpush1.xpose.msra.mxu0 0.0
    %1868 = vmatprep.subr.mxu0 0.0
    %1869 = vmatpush1.xpose.msra.mxu0 0.0
    %1870 = vmatprep.subr.mxu0 0.0
    %1871 = vmatpush1.xpose.msra.mxu0 0.0
    %1872 = vmatprep.subr.mxu0 0.0
    %1873 = vmatpush1.xpose.msra.mxu0 0.0
    %1874 = vmatprep.subr.mxu0 0.0
    %1875 = vmatpush1.xpose.msra.mxu0 0.0
    %1876 = vmatprep.subr.mxu0 0.0
    %1877 = vmatpush1.xpose.msra.mxu0 0.0
    %1878 = vmatprep.subr.mxu0 0.0
    %1879 = vmatpush1.xpose.msra.mxu0 0.0
    %1880 = vmatprep.subr.mxu0 0.0
    %1881 = vmatpush1.xpose.msra.mxu0 0.0
    %1882 = vmatprep.subr.mxu0 0.0
    %1883 = vmatpush1.xpose.msra.mxu0 0.0
    %1884 = vmatprep.subr.mxu0 0.0
    %1885 = vmatpush1.xpose.msra.mxu0 0.0
    %1886 = vmatprep.subr.mxu0 0.0
    %1887 = vmatpush1.xpose.msra.mxu0 0.0
    %1888 = vmatprep.subr.mxu0 0.0
    %1889 = vmatpush1.xpose.msra.mxu0 0.0
    %1890 = vmatprep.subr.mxu0 0.0
    %1891 = vmatpush1.xpose.msra.mxu0 0.0
    %1892 = vmatprep.subr.mxu0 0.0
    %1893 = vmatpush1.xpose.msra.mxu0 0.0
    %1894 = vmatprep.subr.mxu0 0.0
    %1895 = vmatpush1.xpose.msra.mxu0 0.0
    %1896 = vmatprep.subr.mxu0 0.0
    %1897 = vmatpush1.xpose.msra.mxu0 0.0
    %1898 = vmatprep.subr.mxu0 0.0
    %1899 = vmatpush1.xpose.msra.mxu0 0.0
    %1900 = vmatprep.mubr.f32.mxu0 0.0
    %1901 = vmatmul.mubr.f32.gmra.mrb[0].mxu0 %v1831
    %v1902 = vpop.f32.mrb[0].mxu0
    %v1903 = vadd.f32 0.0, %v1902
    %v1904 = vpop.f32.mrb[0].mxu0
    %1905 = vdwg.mxu0
    %v1906 = vsel %vm420, %v1827, -inf
    %1907 = vmax.xlane.f32.xlu0 %v1906
    %v1908 = vpop.xlane.xlu0 %1907
    %v1909 = vsel %vm420, %v1903, -inf
    %1910 = vmax.xlane.f32.xlu0 %v1909
    %v1911 = vpop.xlane.xlu0 %1910
    %v1912 = vsub.f32 %v1827, %v1908
    %v1913 = vsub.f32 %v1903, %v1911
    %v1914 = vmul.f32 %v1912, 1.442695
    %v1915 = vpow.pop %v1914
    %v1916 = vmul.f32 %v1913, 1.442695
    %v1917 = vpow.pop %v1916
    %v1918 = vsel %vm420, %v1915, 0.0
    %1919 = vadd.xlane.f32.xlu0 %v1918
    %v1920 = vpop.xlane.xlu0 %1919
    %v1921 = vsel %vm420, %v1917, 0.0
    %1922 = vadd.xlane.f32.xlu0 %v1921
    %v1923 = vpop.xlane.xlu0 %1922
    %v1924 = vrcp.pop %v1920
    %v1925 = vmul.f32 %v1915, %v1924
    %v1926 = vrcp.pop %v1923
    %v1927 = vmul.f32 %v1917, %v1926
    %v1929 = vsel %vm420, %v1925, 0
    %1931 = vmatprep.subr.mxu0 0.0
    %1932 = vmatpush1.msra.mxu0 %v1746
    %1933 = vmatprep.subr.mxu0 0.0
    %1934 = vmatpush1.msra.mxu0 0.0
    %1935 = vmatprep.subr.mxu0 0.0
    %1936 = vmatpush1.msra.mxu0 0.0
    %1937 = vmatprep.subr.mxu0 0.0
    %1938 = vmatpush1.msra.mxu0 0.0
    %1939 = vmatprep.subr.mxu0 0.0
    %1940 = vmatpush1.msra.mxu0 0.0
    %1941 = vmatprep.subr.mxu0 0.0
    %1942 = vmatpush1.msra.mxu0 0.0
    %1943 = vmatprep.subr.mxu0 0.0
    %1944 = vmatpush1.msra.mxu0 0.0
    %1945 = vmatprep.subr.mxu0 0.0
    %1946 = vmatpush1.msra.mxu0 0.0
    %1947 = vmatprep.subr.mxu0 0.0
    %1948 = vmatpush1.msra.mxu0 0.0
    %1949 = vmatprep.subr.mxu0 0.0
    %1950 = vmatpush1.msra.mxu0 0.0
    %1951 = vmatprep.subr.mxu0 0.0
    %1952 = vmatpush1.msra.mxu0 0.0
    %1953 = vmatprep.subr.mxu0 0.0
    %1954 = vmatpush1.msra.mxu0 0.0
    %1955 = vmatprep.subr.mxu0 0.0
    %1956 = vmatpush1.msra.mxu0 0.0
    %1957 = vmatprep.subr.mxu0 0.0
    %1958 = vmatpush1.msra.mxu0 0.0
    %1959 = vmatprep.subr.mxu0 0.0
    %1960 = vmatpush1.msra.mxu0 0.0
    %1961 = vmatprep.subr.mxu0 0.0
    %1962 = vmatpush1.msra.mxu0 0.0
    %1963 = vmatprep.subr.mxu0 0.0
    %1964 = vmatpush1.msra.mxu0 0.0
    %1965 = vmatprep.subr.mxu0 0.0
    %1966 = vmatpush1.msra.mxu0 0.0
    %1967 = vmatprep.subr.mxu0 0.0
    %1968 = vmatpush1.msra.mxu0 0.0
    %1969 = vmatprep.subr.mxu0 0.0
    %1970 = vmatpush1.msra.mxu0 0.0
    %1971 = vmatprep.subr.mxu0 0.0
    %1972 = vmatpush1.msra.mxu0 0.0
    %1973 = vmatprep.subr.mxu0 0.0
    %1974 = vmatpush1.msra.mxu0 0.0
    %1975 = vmatprep.subr.mxu0 0.0
    %1976 = vmatpush1.msra.mxu0 0.0
    %1977 = vmatprep.subr.mxu0 0.0
    %1978 = vmatpush1.msra.mxu0 0.0
    %1979 = vmatprep.subr.mxu0 0.0
    %1980 = vmatpush1.msra.mxu0 0.0
    %1981 = vmatprep.subr.mxu0 0.0
    %1982 = vmatpush1.msra.mxu0 0.0
    %1983 = vmatprep.subr.mxu0 0.0
    %1984 = vmatpush1.msra.mxu0 0.0
    %1985 = vmatprep.subr.mxu0 0.0
    %1986 = vmatpush1.msra.mxu0 0.0
    %1987 = vmatprep.subr.mxu0 0.0
    %1988 = vmatpush1.msra.mxu0 0.0
    %1989 = vmatprep.subr.mxu0 0.0
    %1990 = vmatpush1.msra.mxu0 0.0
    %1991 = vmatprep.subr.mxu0 0.0
    %1992 = vmatpush1.msra.mxu0 0.0
    %1993 = vmatprep.subr.mxu0 0.0
    %1994 = vmatpush1.msra.mxu0 0.0
    %1995 = vmatprep.mubr.f32.mxu0 0.0
    %1996 = vmatmul.mubr.f32.gmra.mrb[0].mxu0 %v1929
    %v1997 = vpop.f32.mrb[0].mxu0
    %v1998 = vadd.f32 0.0, %v1997
    %v1999 = vpop.f32.mrb[0].mxu0
    %2000 = vdwg.mxu0
    %v2002 = vsel %vm420, %v1927, 0
    %2004 = vmatprep.subr.mxu0 0.0
    %2005 = vmatpush1.msra.mxu0 %v1751
    %2006 = vmatprep.subr.mxu0 0.0
    %2007 = vmatpush1.msra.mxu0 0.0
    %2008 = vmatprep.subr.mxu0 0.0
    %2009 = vmatpush1.msra.mxu0 0.0
    %2010 = vmatprep.subr.mxu0 0.0
    %2011 = vmatpush1.msra.mxu0 0.0
    %2012 = vmatprep.subr.mxu0 0.0
    %2013 = vmatpush1.msra.mxu0 0.0
    %2014 = vmatprep.subr.mxu0 0.0
    %2015 = vmatpush1.msra.mxu0 0.0
    %2016 = vmatprep.subr.mxu0 0.0
    %2017 = vmatpush1.msra.mxu0 0.0
    %2018 = vmatprep.subr.mxu0 0.0
    %2019 = vmatpush1.msra.mxu0 0.0
    %2020 = vmatprep.subr.mxu0 0.0
    %2021 = vmatpush1.msra.mxu0 0.0
    %2022 = vmatprep.subr.mxu0 0.0
    %2023 = vmatpush1.msra.mxu0 0.0
    %2024 = vmatprep.subr.mxu0 0.0
    %2025 = vmatpush1.msra.mxu0 0.0
    %2026 = vmatprep.subr.mxu0 0.0
    %2027 = vmatpush1.msra.mxu0 0.0
    %2028 = vmatprep.subr.mxu0 0.0
    %2029 = vmatpush1.msra.mxu0 0.0
    %2030 = vmatprep.subr.mxu0 0.0
    %2031 = vmatpush1.msra.mxu0 0.0
    %2032 = vmatprep.subr.mxu0 0.0
    %2033 = vmatpush1.msra.mxu0 0.0
    %2034 = vmatprep.subr.mxu0 0.0
    %2035 = vmatpush1.msra.mxu0 0.0
    %2036 = vmatprep.subr.mxu0 0.0
    %2037 = vmatpush1.msra.mxu0 0.0
    %2038 = vmatprep.subr.mxu0 0.0
    %2039 = vmatpush1.msra.mxu0 0.0
    %2040 = vmatprep.subr.mxu0 0.0
    %2041 = vmatpush1.msra.mxu0 0.0
    %2042 = vmatprep.subr.mxu0 0.0
    %2043 = vmatpush1.msra.mxu0 0.0
    %2044 = vmatprep.subr.mxu0 0.0
    %2045 = vmatpush1.msra.mxu0 0.0
    %2046 = vmatprep.subr.mxu0 0.0
    %2047 = vmatpush1.msra.mxu0 0.0
    %2048 = vmatprep.subr.mxu0 0.0
    %2049 = vmatpush1.msra.mxu0 0.0
    %2050 = vmatprep.subr.mxu0 0.0
    %2051 = vmatpush1.msra.mxu0 0.0
    %2052 = vmatprep.subr.mxu0 0.0
    %2053 = vmatpush1.msra.mxu0 0.0
    %2054 = vmatprep.subr.mxu0 0.0
    %2055 = vmatpush1.msra.mxu0 0.0
    %2056 = vmatprep.subr.mxu0 0.0
    %2057 = vmatpush1.msra.mxu0 0.0
    %2058 = vmatprep.subr.mxu0 0.0
    %2059 = vmatpush1.msra.mxu0 0.0
    %2060 = vmatprep.subr.mxu0 0.0
    %2061 = vmatpush1.msra.mxu0 0.0
    %2062 = vmatprep.subr.mxu0 0.0
    %2063 = vmatpush1.msra.mxu0 0.0
    %2064 = vmatprep.subr.mxu0 0.0
    %2065 = vmatpush1.msra.mxu0 0.0
    %2066 = vmatprep.subr.mxu0 0.0
    %2067 = vmatpush1.msra.mxu0 0.0
    %2068 = vmatprep.mubr.f32.mxu0 0.0
    %2069 = vmatmul.mubr.f32.gmra.mrb[0].mxu0 %v2002
    %v2070 = vpop.f32.mrb[0].mxu0
    %v2071 = vadd.f32 0.0, %v2070
    %v2072 = vpop.f32.mrb[0].mxu0
    %2073 = vdwg.mxu0
    %s2074 = scalar_lea.vmem [#allocation14], 16
    %v2075 = vld [vmem:[%s2074] sm:$0xff]
    %v2077 = vsel %vm420, %v1998, 0
    %v2080 = vsel %vm420, %v2071, 0
    %2082 = vmatprep.subr.mxu0 0.0
    %2083 = vmatpush1.msra.mxu0 %v2075
    %2084 = vmatprep.subr.mxu0 0.0
    %2085 = vmatpush1.msra.mxu0 0.0
    %2086 = vmatprep.subr.mxu0 0.0
    %2087 = vmatpush1.msra.mxu0 0.0
    %2088 = vmatprep.subr.mxu0 0.0
    %2089 = vmatpush1.msra.mxu0 0.0
    %2090 = vmatprep.subr.mxu0 0.0
    %2091 = vmatpush1.msra.mxu0 0.0
    %2092 = vmatprep.subr.mxu0 0.0
    %2093 = vmatpush1.msra.mxu0 0.0
    %2094 = vmatprep.subr.mxu0 0.0
    %2095 = vmatpush1.msra.mxu0 0.0
    %2096 = vmatprep.subr.mxu0 0.0
    %2097 = vmatpush1.msra.mxu0 0.0
    %2098 = vmatprep.subr.mxu0 0.0
    %2099 = vmatpush1.msra.mxu0 0.0
    %2100 = vmatprep.subr.mxu0 0.0
    %2101 = vmatpush1.msra.mxu0 0.0
    %2102 = vmatprep.subr.mxu0 0.0
    %2103 = vmatpush1.msra.mxu0 0.0
    %2104 = vmatprep.subr.mxu0 0.0
    %2105 = vmatpush1.msra.mxu0 0.0
    %2106 = vmatprep.subr.mxu0 0.0
    %2107 = vmatpush1.msra.mxu0 0.0
    %2108 = vmatprep.subr.mxu0 0.0
    %2109 = vmatpush1.msra.mxu0 0.0
    %2110 = vmatprep.subr.mxu0 0.0
    %2111 = vmatpush1.msra.mxu0 0.0
    %2112 = vmatprep.subr.mxu0 0.0
    %2113 = vmatpush1.msra.mxu0 0.0
    %2114 = vmatprep.subr.mxu0 0.0
    %2115 = vmatpush1.msra.mxu0 0.0
    %2116 = vmatprep.subr.mxu0 0.0
    %2117 = vmatpush1.msra.mxu0 0.0
    %2118 = vmatprep.subr.mxu0 0.0
    %2119 = vmatpush1.msra.mxu0 0.0
    %2120 = vmatprep.subr.mxu0 0.0
    %2121 = vmatpush1.msra.mxu0 0.0
    %2122 = vmatprep.subr.mxu0 0.0
    %2123 = vmatpush1.msra.mxu0 0.0
    %2124 = vmatprep.subr.mxu0 0.0
    %2125 = vmatpush1.msra.mxu0 0.0
    %2126 = vmatprep.subr.mxu0 0.0
    %2127 = vmatpush1.msra.mxu0 0.0
    %2128 = vmatprep.subr.mxu0 0.0
    %2129 = vmatpush1.msra.mxu0 0.0
    %2130 = vmatprep.subr.mxu0 0.0
    %2131 = vmatpush1.msra.mxu0 0.0
    %2132 = vmatprep.subr.mxu0 0.0
    %2133 = vmatpush1.msra.mxu0 0.0
    %2134 = vmatprep.subr.mxu0 0.0
    %2135 = vmatpush1.msra.mxu0 0.0
    %2136 = vmatprep.subr.mxu0 0.0
    %2137 = vmatpush1.msra.mxu0 0.0
    %2138 = vmatprep.subr.mxu0 0.0
    %2139 = vmatpush1.msra.mxu0 0.0
    %2140 = vmatprep.subr.mxu0 0.0
    %2141 = vmatpush1.msra.mxu0 0.0
    %2142 = vmatprep.subr.mxu0 0.0
    %2143 = vmatpush1.msra.mxu0 0.0
    %2144 = vmatprep.subr.mxu0 0.0
    %2145 = vmatpush1.msra.mxu0 0.0
    %2146 = vmatprep.mubr.f32.mxu0 0.0
    %2147 = vmatmul.mubr.f32.gmra.mrb[0].mxu0 %v2077
    %v2148 = vpop.f32.mrb[0].mxu0
    %v2149 = vadd.f32 0.0, %v2148
    %v2150 = vpop.f32.mrb[0].mxu0
    %2151 = vmatprep.mubr.f32.mxu0 0.0
    %2152 = vmatmul.mubr.f32.gmra.mrb[0].mxu0 %v2080
    %v2153 = vpop.f32.mrb[0].mxu0
    %v2154 = vadd.f32 0.0, %v2153
    %v2155 = vpop.f32.mrb[0].mxu0
    %2156 = vdwg.mxu0
    %v2157 = vadd.f32 %v1482, %v2149
    %v2158 = vadd.f32 %v1487, %v2154
    %s2159 = scalar_lea.vmem [#allocation5], 96
    %v2160 = vld [vmem:[%s2159] sm:$0xff]
    %v2161 = vld [vmem:[%s2159 + $0x8] sm:$0xff]
    %v2162 = vld [vmem:[%s2159 + $0x10] sm:$0xff]
    %v2163 = vld [vmem:[%s2159 + $0x18] sm:$0xff]
    %s2164 = scalar_lea.vmem [#allocation7], 3
    %v2165 = vld [vmem:[%s2164] sm:$0x1]
    %v2167 = vlaneseq
    %v2168 = vshrl.u32 %v2167, 7
    %v2169 = vsub.s32 0, %v2168
    %v2170 = vrot.slane %v2165, %v2169
    %2172 = vmatprep.subr.mxu0 0.0
    %2173 = vmatpush1.msra.mxu0 %v2160
    %2174 = vmatprep.subr.mxu0 0.0
    %2175 = vmatpush1.msra.mxu0 %v2161
    %2176 = vmatprep.subr.mxu0 0.0
    %2177 = vmatpush1.msra.mxu0 %v2162
    %2178 = vmatprep.subr.mxu0 0.0
    %2179 = vmatpush1.msra.mxu0 %v2163
    %2180 = vmatprep.subr.mxu0 0.0
    %2181 = vmatpush1.msra.mxu0 0.0
    %2182 = vmatprep.subr.mxu0 0.0
    %2183 = vmatpush1.msra.mxu0 0.0
    %2184 = vmatprep.subr.mxu0 0.0
    %2185 = vmatpush1.msra.mxu0 0.0
    %2186 = vmatprep.subr.mxu0 0.0
    %2187 = vmatpush1.msra.mxu0 0.0
    %2188 = vmatprep.subr.mxu0 0.0
    %2189 = vmatpush1.msra.mxu0 0.0
    %2190 = vmatprep.subr.mxu0 0.0
    %2191 = vmatpush1.msra.mxu0 0.0
    %2192 = vmatprep.subr.mxu0 0.0
    %2193 = vmatpush1.msra.mxu0 0.0
    %2194 = vmatprep.subr.mxu0 0.0
    %2195 = vmatpush1.msra.mxu0 0.0
    %2196 = vmatprep.subr.mxu0 0.0
    %2197 = vmatpush1.msra.mxu0 0.0
    %2198 = vmatprep.subr.mxu0 0.0
    %2199 = vmatpush1.msra.mxu0 0.0
    %2200 = vmatprep.subr.mxu0 0.0
    %2201 = vmatpush1.msra.mxu0 0.0
    %2202 = vmatprep.subr.mxu0 0.0
    %2203 = vmatpush1.msra.mxu0 0.0
    %2204 = vmatprep.subr.mxu0 0.0
    %2205 = vmatpush1.msra.mxu0 0.0
    %2206 = vmatprep.subr.mxu0 0.0
    %2207 = vmatpush1.msra.mxu0 0.0
    %2208 = vmatprep.subr.mxu0 0.0
    %2209 = vmatpush1.msra.mxu0 0.0
    %2210 = vmatprep.subr.mxu0 0.0
    %2211 = vmatpush1.msra.mxu0 0.0
    %2212 = vmatprep.subr.mxu0 0.0
    %2213 = vmatpush1.msra.mxu0 0.0
    %2214 = vmatprep.subr.mxu0 0.0
    %2215 = vmatpush1.msra.mxu0 0.0
    %2216 = vmatprep.subr.mxu0 0.0
    %2217 = vmatpush1.msra.mxu0 0.0
    %2218 = vmatprep.subr.mxu0 0.0
    %2219 = vmatpush1.msra.mxu0 0.0
    %2220 = vmatprep.subr.mxu0 0.0
    %2221 = vmatpush1.msra.mxu0 0.0
    %2222 = vmatprep.subr.mxu0 0.0
    %2223 = vmatpush1.msra.mxu0 0.0
    %2224 = vmatprep.subr.mxu0 0.0
    %2225 = vmatpush1.msra.mxu0 0.0
    %2226 = vmatprep.subr.mxu0 0.0
    %2227 = vmatpush1.msra.mxu0 0.0
    %2228 = vmatprep.subr.mxu0 0.0
    %2229 = vmatpush1.msra.mxu0 0.0
    %2230 = vmatprep.subr.mxu0 0.0
    %2231 = vmatpush1.msra.mxu0 0.0
    %2232 = vmatprep.subr.mxu0 0.0
    %2233 = vmatpush1.msra.mxu0 0.0
    %2234 = vmatprep.subr.mxu0 0.0
    %2235 = vmatpush1.msra.mxu0 0.0
    %2236 = vmatprep.mubr.f32.mxu0 0.0
    %2237 = vmatmul.mubr.f32.gmra.mrb[0].mxu0 %v168
    %v2238 = vpop.f32.mrb[0].mxu0
    %v2239 = vadd.f32 %v2170, %v2238
    %v2240 = vpop.f32.mrb[0].mxu0
    %2241 = vmatprep.mubr.f32.mxu0 0.0
    %2242 = vmatmul.mubr.f32.gmra.mrb[0].mxu0 %v171
    %v2243 = vpop.f32.mrb[0].mxu0
    %v2244 = vadd.f32 %v2170, %v2243
    %v2245 = vpop.f32.mrb[0].mxu0
    %2246 = vdwg.mxu0
    %s2247 = scalar_lea.vmem [#allocation8], 96
    %v2248 = vld [vmem:[%s2247] sm:$0xff]
    %v2249 = vld [vmem:[%s2247 + $0x8] sm:$0xff]
    %v2250 = vld [vmem:[%s2247 + $0x10] sm:$0xff]
    %v2251 = vld [vmem:[%s2247 + $0x18] sm:$0xff]
    %s2252 = scalar_lea.vmem [#allocation10], 3
    %v2253 = vld [vmem:[%s2252] sm:$0x1]
    %v2255 = vlaneseq
    %v2256 = vshrl.u32 %v2255, 7
    %v2257 = vsub.s32 0, %v2256
    %v2258 = vrot.slane %v2253, %v2257
    %2260 = vmatprep.subr.mxu0 0.0
    %2261 = vmatpush1.msra.mxu0 %v2248
    %2262 = vmatprep.subr.mxu0 0.0
    %2263 = vmatpush1.msra.mxu0 %v2249
    %2264 = vmatprep.subr.mxu0 0.0
    %2265 = vmatpush1.msra.mxu0 %v2250
    %2266 = vmatprep.subr.mxu0 0.0
    %2267 = vmatpush1.msra.mxu0 %v2251
    %2268 = vmatprep.subr.mxu0 0.0
    %2269 = vmatpush1.msra.mxu0 0.0
    %2270 = vmatprep.subr.mxu0 0.0
    %2271 = vmatpush1.msra.mxu0 0.0
    %2272 = vmatprep.subr.mxu0 0.0
    %2273 = vmatpush1.msra.mxu0 0.0
    %2274 = vmatprep.subr.mxu0 0.0
    %2275 = vmatpush1.msra.mxu0 0.0
    %2276 = vmatprep.subr.mxu0 0.0
    %2277 = vmatpush1.msra.mxu0 0.0
    %2278 = vmatprep.subr.mxu0 0.0
    %2279 = vmatpush1.msra.mxu0 0.0
    %2280 = vmatprep.subr.mxu0 0.0
    %2281 = vmatpush1.msra.mxu0 0.0
    %2282 = vmatprep.subr.mxu0 0.0
    %2283 = vmatpush1.msra.mxu0 0.0
    %2284 = vmatprep.subr.mxu0 0.0
    %2285 = vmatpush1.msra.mxu0 0.0
    %2286 = vmatprep.subr.mxu0 0.0
    %2287 = vmatpush1.msra.mxu0 0.0
    %2288 = vmatprep.subr.mxu0 0.0
    %2289 = vmatpush1.msra.mxu0 0.0
    %2290 = vmatprep.subr.mxu0 0.0
    %2291 = vmatpush1.msra.mxu0 0.0
    %2292 = vmatprep.subr.mxu0 0.0
    %2293 = vmatpush1.msra.mxu0 0.0
    %2294 = vmatprep.subr.mxu0 0.0
    %2295 = vmatpush1.msra.mxu0 0.0
    %2296 = vmatprep.subr.mxu0 0.0
    %2297 = vmatpush1.msra.mxu0 0.0
    %2298 = vmatprep.subr.mxu0 0.0
    %2299 = vmatpush1.msra.mxu0 0.0
    %2300 = vmatprep.subr.mxu0 0.0
    %2301 = vmatpush1.msra.mxu0 0.0
    %2302 = vmatprep.subr.mxu0 0.0
    %2303 = vmatpush1.msra.mxu0 0.0
    %2304 = vmatprep.subr.mxu0 0.0
    %2305 = vmatpush1.msra.mxu0 0.0
    %2306 = vmatprep.subr.mxu0 0.0
    %2307 = vmatpush1.msra.mxu0 0.0
    %2308 = vmatprep.subr.mxu0 0.0
    %2309 = vmatpush1.msra.mxu0 0.0
    %2310 = vmatprep.subr.mxu0 0.0
    %2311 = vmatpush1.msra.mxu0 0.0
    %2312 = vmatprep.subr.mxu0 0.0
    %2313 = vmatpush1.msra.mxu0 0.0
    %2314 = vmatprep.subr.mxu0 0.0
    %2315 = vmatpush1.msra.mxu0 0.0
    %2316 = vmatprep.subr.mxu0 0.0
    %2317 = vmatpush1.msra.mxu0 0.0
    %2318 = vmatprep.subr.mxu0 0.0
    %2319 = vmatpush1.msra.mxu0 0.0
    %2320 = vmatprep.subr.mxu0 0.0
    %2321 = vmatpush1.msra.mxu0 0.0
    %2322 = vmatprep.subr.mxu0 0.0
    %2323 = vmatpush1.msra.mxu0 0.0
    %2324 = vmatprep.mubr.f32.mxu0 0.0
    %2325 = vmatmul.mubr.f32.gmra.mrb[0].mxu0 %v168
    %v2326 = vpop.f32.mrb[0].mxu0
    %v2327 = vadd.f32 %v2258, %v2326
    %v2328 = vpop.f32.mrb[0].mxu0
    %2329 = vmatprep.mubr.f32.mxu0 0.0
    %2330 = vmatmul.mubr.f32.gmra.mrb[0].mxu0 %v171
    %v2331 = vpop.f32.mrb[0].mxu0
    %v2332 = vadd.f32 %v2258, %v2331
    %v2333 = vpop.f32.mrb[0].mxu0
    %2334 = vdwg.mxu0
    %s2335 = scalar_lea.vmem [#allocation11], 96
    %v2336 = vld [vmem:[%s2335] sm:$0xff]
    %v2337 = vld [vmem:[%s2335 + $0x8] sm:$0xff]
    %v2338 = vld [vmem:[%s2335 + $0x10] sm:$0xff]
    %v2339 = vld [vmem:[%s2335 + $0x18] sm:$0xff]
    %s2340 = scalar_lea.vmem [#allocation13], 3
    %v2341 = vld [vmem:[%s2340] sm:$0x1]
    %v2343 = vlaneseq
    %v2344 = vshrl.u32 %v2343, 7
    %v2345 = vsub.s32 0, %v2344
    %v2346 = vrot.slane %v2341, %v2345
    %2348 = vmatprep.subr.mxu0 0.0
    %2349 = vmatpush1.msra.mxu0 %v2336
    %2350 = vmatprep.subr.mxu0 0.0
    %2351 = vmatpush1.msra.mxu0 %v2337
    %2352 = vmatprep.subr.mxu0 0.0
    %2353 = vmatpush1.msra.mxu0 %v2338
    %2354 = vmatprep.subr.mxu0 0.0
    %2355 = vmatpush1.msra.mxu0 %v2339
    %2356 = vmatprep.subr.mxu0 0.0
    %2357 = vmatpush1.msra.mxu0 0.0
    %2358 = vmatprep.subr.mxu0 0.0
    %2359 = vmatpush1.msra.mxu0 0.0
    %2360 = vmatprep.subr.mxu0 0.0
    %2361 = vmatpush1.msra.mxu0 0.0
    %2362 = vmatprep.subr.mxu0 0.0
    %2363 = vmatpush1.msra.mxu0 0.0
    %2364 = vmatprep.subr.mxu0 0.0
    %2365 = vmatpush1.msra.mxu0 0.0
    %2366 = vmatprep.subr.mxu0 0.0
    %2367 = vmatpush1.msra.mxu0 0.0
    %2368 = vmatprep.subr.mxu0 0.0
    %2369 = vmatpush1.msra.mxu0 0.0
    %2370 = vmatprep.subr.mxu0 0.0
    %2371 = vmatpush1.msra.mxu0 0.0
    %2372 = vmatprep.subr.mxu0 0.0
    %2373 = vmatpush1.msra.mxu0 0.0
    %2374 = vmatprep.subr.mxu0 0.0
    %2375 = vmatpush1.msra.mxu0 0.0
    %2376 = vmatprep.subr.mxu0 0.0
    %2377 = vmatpush1.msra.mxu0 0.0
    %2378 = vmatprep.subr.mxu0 0.0
    %2379 = vmatpush1.msra.mxu0 0.0
    %2380 = vmatprep.subr.mxu0 0.0
    %2381 = vmatpush1.msra.mxu0 0.0
    %2382 = vmatprep.subr.mxu0 0.0
    %2383 = vmatpush1.msra.mxu0 0.0
    %2384 = vmatprep.subr.mxu0 0.0
    %2385 = vmatpush1.msra.mxu0 0.0
    %2386 = vmatprep.subr.mxu0 0.0
    %2387 = vmatpush1.msra.mxu0 0.0
    %2388 = vmatprep.subr.mxu0 0.0
    %2389 = vmatpush1.msra.mxu0 0.0
    %2390 = vmatprep.subr.mxu0 0.0
    %2391 = vmatpush1.msra.mxu0 0.0
    %2392 = vmatprep.subr.mxu0 0.0
    %2393 = vmatpush1.msra.mxu0 0.0
    %2394 = vmatprep.subr.mxu0 0.0
    %2395 = vmatpush1.msra.mxu0 0.0
    %2396 = vmatprep.subr.mxu0 0.0
    %2397 = vmatpush1.msra.mxu0 0.0
    %2398 = vmatprep.subr.mxu0 0.0
    %2399 = vmatpush1.msra.mxu0 0.0
    %2400 = vmatprep.subr.mxu0 0.0
    %2401 = vmatpush1.msra.mxu0 0.0
    %2402 = vmatprep.subr.mxu0 0.0
    %2403 = vmatpush1.msra.mxu0 0.0
    %2404 = vmatprep.subr.mxu0 0.0
    %2405 = vmatpush1.msra.mxu0 0.0
    %2406 = vmatprep.subr.mxu0 0.0
    %2407 = vmatpush1.msra.mxu0 0.0
    %2408 = vmatprep.subr.mxu0 0.0
    %2409 = vmatpush1.msra.mxu0 0.0
    %2410 = vmatprep.subr.mxu0 0.0
    %2411 = vmatpush1.msra.mxu0 0.0
    %2412 = vmatprep.mubr.f32.mxu0 0.0
    %2413 = vmatmul.mubr.f32.gmra.mrb[0].mxu0 %v168
    %v2414 = vpop.f32.mrb[0].mxu0
    %v2415 = vadd.f32 %v2346, %v2414
    %v2416 = vpop.f32.mrb[0].mxu0
    %2417 = vmatprep.mubr.f32.mxu0 0.0
    %2418 = vmatmul.mubr.f32.gmra.mrb[0].mxu0 %v171
    %v2419 = vpop.f32.mrb[0].mxu0
    %v2420 = vadd.f32 %v2346, %v2419
    %v2421 = vpop.f32.mrb[0].mxu0
    %2422 = vdwg.mxu0
    %v2424 = vsel %vm420, %v2239, 0
    %v2427 = vsel %vm420, %v2327, 0
    %2429 = vmatprep.subr.mxu0 0.0
    %2430 = vmatpush1.xpose.msra.mxu0 %v2427
    %2431 = vmatprep.subr.mxu0 0.0
    %2432 = vmatpush1.xpose.msra.mxu0 0.0
    %2433 = vmatprep.subr.mxu0 0.0
    %2434 = vmatpush1.xpose.msra.mxu0 0.0
    %2435 = vmatprep.subr.mxu0 0.0
    %2436 = vmatpush1.xpose.msra.mxu0 0.0
    %2437 = vmatprep.subr.mxu0 0.0
    %2438 = vmatpush1.xpose.msra.mxu0 0.0
    %2439 = vmatprep.subr.mxu0 0.0
    %2440 = vmatpush1.xpose.msra.mxu0 0.0
    %2441 = vmatprep.subr.mxu0 0.0
    %2442 = vmatpush1.xpose.msra.mxu0 0.0
    %2443 = vmatprep.subr.mxu0 0.0
    %2444 = vmatpush1.xpose.msra.mxu0 0.0
    %2445 = vmatprep.subr.mxu0 0.0
    %2446 = vmatpush1.xpose.msra.mxu0 0.0
    %2447 = vmatprep.subr.mxu0 0.0
    %2448 = vmatpush1.xpose.msra.mxu0 0.0
    %2449 = vmatprep.subr.mxu0 0.0
    %2450 = vmatpush1.xpose.msra.mxu0 0.0
    %2451 = vmatprep.subr.mxu0 0.0
    %2452 = vmatpush1.xpose.msra.mxu0 0.0
    %2453 = vmatprep.subr.mxu0 0.0
    %2454 = vmatpush1.xpose.msra.mxu0 0.0
    %2455 = vmatprep.subr.mxu0 0.0
    %2456 = vmatpush1.xpose.msra.mxu0 0.0
    %2457 = vmatprep.subr.mxu0 0.0
    %2458 = vmatpush1.xpose.msra.mxu0 0.0
    %2459 = vmatprep.subr.mxu0 0.0
    %2460 = vmatpush1.xpose.msra.mxu0 0.0
    %2461 = vmatprep.subr.mxu0 0.0
    %2462 = vmatpush1.xpose.msra.mxu0 0.0
    %2463 = vmatprep.subr.mxu0 0.0
    %2464 = vmatpush1.xpose.msra.mxu0 0.0
    %2465 = vmatprep.subr.mxu0 0.0
    %2466 = vmatpush1.xpose.msra.mxu0 0.0
    %2467 = vmatprep.subr.mxu0 0.0
    %2468 = vmatpush1.xpose.msra.mxu0 0.0
    %2469 = vmatprep.subr.mxu0 0.0
    %2470 = vmatpush1.xpose.msra.mxu0 0.0
    %2471 = vmatprep.subr.mxu0 0.0
    %2472 = vmatpush1.xpose.msra.mxu0 0.0
    %2473 = vmatprep.subr.mxu0 0.0
    %2474 = vmatpush1.xpose.msra.mxu0 0.0
    %2475 = vmatprep.subr.mxu0 0.0
    %2476 = vmatpush1.xpose.msra.mxu0 0.0
    %2477 = vmatprep.subr.mxu0 0.0
    %2478 = vmatpush1.xpose.msra.mxu0 0.0
    %2479 = vmatprep.subr.mxu0 0.0
    %2480 = vmatpush1.xpose.msra.mxu0 0.0
    %2481 = vmatprep.subr.mxu0 0.0
    %2482 = vmatpush1.xpose.msra.mxu0 0.0
    %2483 = vmatprep.subr.mxu0 0.0
    %2484 = vmatpush1.xpose.msra.mxu0 0.0
    %2485 = vmatprep.subr.mxu0 0.0
    %2486 = vmatpush1.xpose.msra.mxu0 0.0
    %2487 = vmatprep.subr.mxu0 0.0
    %2488 = vmatpush1.xpose.msra.mxu0 0.0
    %2489 = vmatprep.subr.mxu0 0.0
    %2490 = vmatpush1.xpose.msra.mxu0 0.0
    %2491 = vmatprep.subr.mxu0 0.0
    %2492 = vmatpush1.xpose.msra.mxu0 0.0
    %2493 = vmatprep.mubr.f32.mxu0 0.0
    %2494 = vmatmul.mubr.f32.gmra.mrb[0].mxu0 %v2424
    %v2495 = vpop.f32.mrb[0].mxu0
    %v2496 = vadd.f32 0.0, %v2495
    %v2497 = vpop.f32.mrb[0].mxu0
    %2498 = vdwg.mxu0
    %v2500 = vsel %vm420, %v2244, 0
    %v2503 = vsel %vm420, %v2332, 0
    %2505 = vmatprep.subr.mxu0 0.0
    %2506 = vmatpush1.xpose.msra.mxu0 %v2503
    %2507 = vmatprep.subr.mxu0 0.0
    %2508 = vmatpush1.xpose.msra.mxu0 0.0
    %2509 = vmatprep.subr.mxu0 0.0
    %2510 = vmatpush1.xpose.msra.mxu0 0.0
    %2511 = vmatprep.subr.mxu0 0.0
    %2512 = vmatpush1.xpose.msra.mxu0 0.0
    %2513 = vmatprep.subr.mxu0 0.0
    %2514 = vmatpush1.xpose.msra.mxu0 0.0
    %2515 = vmatprep.subr.mxu0 0.0
    %2516 = vmatpush1.xpose.msra.mxu0 0.0
    %2517 = vmatprep.subr.mxu0 0.0
    %2518 = vmatpush1.xpose.msra.mxu0 0.0
    %2519 = vmatprep.subr.mxu0 0.0
    %2520 = vmatpush1.xpose.msra.mxu0 0.0
    %2521 = vmatprep.subr.mxu0 0.0
    %2522 = vmatpush1.xpose.msra.mxu0 0.0
    %2523 = vmatprep.subr.mxu0 0.0
    %2524 = vmatpush1.xpose.msra.mxu0 0.0
    %2525 = vmatprep.subr.mxu0 0.0
    %2526 = vmatpush1.xpose.msra.mxu0 0.0
    %2527 = vmatprep.subr.mxu0 0.0
    %2528 = vmatpush1.xpose.msra.mxu0 0.0
    %2529 = vmatprep.subr.mxu0 0.0
    %2530 = vmatpush1.xpose.msra.mxu0 0.0
    %2531 = vmatprep.subr.mxu0 0.0
    %2532 = vmatpush1.xpose.msra.mxu0 0.0
    %2533 = vmatprep.subr.mxu0 0.0
    %2534 = vmatpush1.xpose.msra.mxu0 0.0
    %2535 = vmatprep.subr.mxu0 0.0
    %2536 = vmatpush1.xpose.msra.mxu0 0.0
    %2537 = vmatprep.subr.mxu0 0.0
    %2538 = vmatpush1.xpose.msra.mxu0 0.0
    %2539 = vmatprep.subr.mxu0 0.0
    %2540 = vmatpush1.xpose.msra.mxu0 0.0
    %2541 = vmatprep.subr.mxu0 0.0
    %2542 = vmatpush1.xpose.msra.mxu0 0.0
    %2543 = vmatprep.subr.mxu0 0.0
    %2544 = vmatpush1.xpose.msra.mxu0 0.0
    %2545 = vmatprep.subr.mxu0 0.0
    %2546 = vmatpush1.xpose.msra.mxu0 0.0
    %2547 = vmatprep.subr.mxu0 0.0
    %2548 = vmatpush1.xpose.msra.mxu0 0.0
    %2549 = vmatprep.subr.mxu0 0.0
    %2550 = vmatpush1.xpose.msra.mxu0 0.0
    %2551 = vmatprep.subr.mxu0 0.0
    %2552 = vmatpush1.xpose.msra.mxu0 0.0
    %2553 = vmatprep.subr.mxu0 0.0
    %2554 = vmatpush1.xpose.msra.mxu0 0.0
    %2555 = vmatprep.subr.mxu0 0.0
    %2556 = vmatpush1.xpose.msra.mxu0 0.0
    %2557 = vmatprep.subr.mxu0 0.0
    %2558 = vmatpush1.xpose.msra.mxu0 0.0
    %2559 = vmatprep.subr.mxu0 0.0
    %2560 = vmatpush1.xpose.msra.mxu0 0.0
    %2561 = vmatprep.subr.mxu0 0.0
    %2562 = vmatpush1.xpose.msra.mxu0 0.0
    %2563 = vmatprep.subr.mxu0 0.0
    %2564 = vmatpush1.xpose.msra.mxu0 0.0
    %2565 = vmatprep.subr.mxu0 0.0
    %2566 = vmatpush1.xpose.msra.mxu0 0.0
    %2567 = vmatprep.subr.mxu0 0.0
    %2568 = vmatpush1.xpose.msra.mxu0 0.0
    %2569 = vmatprep.mubr.f32.mxu0 0.0
    %2570 = vmatmul.mubr.f32.gmra.mrb[0].mxu0 %v2500
    %v2571 = vpop.f32.mrb[0].mxu0
    %v2572 = vadd.f32 0.0, %v2571
    %v2573 = vpop.f32.mrb[0].mxu0
    %2574 = vdwg.mxu0
    %v2575 = vsel %vm420, %v2496, -inf
    %2576 = vmax.xlane.f32.xlu0 %v2575
    %v2577 = vpop.xlane.xlu0 %2576
    %v2578 = vsel %vm420, %v2572, -inf
    %2579 = vmax.xlane.f32.xlu0 %v2578
    %v2580 = vpop.xlane.xlu0 %2579
    %v2581 = vsub.f32 %v2496, %v2577
    %v2582 = vsub.f32 %v2572, %v2580
    %v2583 = vmul.f32 %v2581, 1.442695
    %v2584 = vpow.pop %v2583
    %v2585 = vmul.f32 %v2582, 1.442695
    %v2586 = vpow.pop %v2585
    %v2587 = vsel %vm420, %v2584, 0.0
    %2588 = vadd.xlane.f32.xlu0 %v2587
    %v2589 = vpop.xlane.xlu0 %2588
    %v2590 = vsel %vm420, %v2586, 0.0
    %2591 = vadd.xlane.f32.xlu0 %v2590
    %v2592 = vpop.xlane.xlu0 %2591
    %v2593 = vrcp.pop %v2589
    %v2594 = vmul.f32 %v2584, %v2593
    %v2595 = vrcp.pop %v2592
    %v2596 = vmul.f32 %v2586, %v2595
    %v2598 = vsel %vm420, %v2594, 0
    %2600 = vmatprep.subr.mxu0 0.0
    %2601 = vmatpush1.msra.mxu0 %v2415
    %2602 = vmatprep.subr.mxu0 0.0
    %2603 = vmatpush1.msra.mxu0 0.0
    %2604 = vmatprep.subr.mxu0 0.0
    %2605 = vmatpush1.msra.mxu0 0.0
    %2606 = vmatprep.subr.mxu0 0.0
    %2607 = vmatpush1.msra.mxu0 0.0
    %2608 = vmatprep.subr.mxu0 0.0
    %2609 = vmatpush1.msra.mxu0 0.0
    %2610 = vmatprep.subr.mxu0 0.0
    %2611 = vmatpush1.msra.mxu0 0.0
    %2612 = vmatprep.subr.mxu0 0.0
    %2613 = vmatpush1.msra.mxu0 0.0
    %2614 = vmatprep.subr.mxu0 0.0
    %2615 = vmatpush1.msra.mxu0 0.0
    %2616 = vmatprep.subr.mxu0 0.0
    %2617 = vmatpush1.msra.mxu0 0.0
    %2618 = vmatprep.subr.mxu0 0.0
    %2619 = vmatpush1.msra.mxu0 0.0
    %2620 = vmatprep.subr.mxu0 0.0
    %2621 = vmatpush1.msra.mxu0 0.0
    %2622 = vmatprep.subr.mxu0 0.0
    %2623 = vmatpush1.msra.mxu0 0.0
    %2624 = vmatprep.subr.mxu0 0.0
    %2625 = vmatpush1.msra.mxu0 0.0
    %2626 = vmatprep.subr.mxu0 0.0
    %2627 = vmatpush1.msra.mxu0 0.0
    %2628 = vmatprep.subr.mxu0 0.0
    %2629 = vmatpush1.msra.mxu0 0.0
    %2630 = vmatprep.subr.mxu0 0.0
    %2631 = vmatpush1.msra.mxu0 0.0
    %2632 = vmatprep.subr.mxu0 0.0
    %2633 = vmatpush1.msra.mxu0 0.0
    %2634 = vmatprep.subr.mxu0 0.0
    %2635 = vmatpush1.msra.mxu0 0.0
    %2636 = vmatprep.subr.mxu0 0.0
    %2637 = vmatpush1.msra.mxu0 0.0
    %2638 = vmatprep.subr.mxu0 0.0
    %2639 = vmatpush1.msra.mxu0 0.0
    %2640 = vmatprep.subr.mxu0 0.0
    %2641 = vmatpush1.msra.mxu0 0.0
    %2642 = vmatprep.subr.mxu0 0.0
    %2643 = vmatpush1.msra.mxu0 0.0
    %2644 = vmatprep.subr.mxu0 0.0
    %2645 = vmatpush1.msra.mxu0 0.0
    %2646 = vmatprep.subr.mxu0 0.0
    %2647 = vmatpush1.msra.mxu0 0.0
    %2648 = vmatprep.subr.mxu0 0.0
    %2649 = vmatpush1.msra.mxu0 0.0
    %2650 = vmatprep.subr.mxu0 0.0
    %2651 = vmatpush1.msra.mxu0 0.0
    %2652 = vmatprep.subr.mxu0 0.0
    %2653 = vmatpush1.msra.mxu0 0.0
    %2654 = vmatprep.subr.mxu0 0.0
    %2655 = vmatpush1.msra.mxu0 0.0
    %2656 = vmatprep.subr.mxu0 0.0
    %2657 = vmatpush1.msra.mxu0 0.0
    %2658 = vmatprep.subr.mxu0 0.0
    %2659 = vmatpush1.msra.mxu0 0.0
    %2660 = vmatprep.subr.mxu0 0.0
    %2661 = vmatpush1.msra.mxu0 0.0
    %2662 = vmatprep.subr.mxu0 0.0
    %2663 = vmatpush1.msra.mxu0 0.0
    %2664 = vmatprep.mubr.f32.mxu0 0.0
    %2665 = vmatmul.mubr.f32.gmra.mrb[0].mxu0 %v2598
    %v2666 = vpop.f32.mrb[0].mxu0
    %v2667 = vadd.f32 0.0, %v2666
    %v2668 = vpop.f32.mrb[0].mxu0
    %2669 = vdwg.mxu0
    %v2671 = vsel %vm420, %v2596, 0
    %2673 = vmatprep.subr.mxu0 0.0
    %2674 = vmatpush1.msra.mxu0 %v2420
    %2675 = vmatprep.subr.mxu0 0.0
    %2676 = vmatpush1.msra.mxu0 0.0
    %2677 = vmatprep.subr.mxu0 0.0
    %2678 = vmatpush1.msra.mxu0 0.0
    %2679 = vmatprep.subr.mxu0 0.0
    %2680 = vmatpush1.msra.mxu0 0.0
    %2681 = vmatprep.subr.mxu0 0.0
    %2682 = vmatpush1.msra.mxu0 0.0
    %2683 = vmatprep.subr.mxu0 0.0
    %2684 = vmatpush1.msra.mxu0 0.0
    %2685 = vmatprep.subr.mxu0 0.0
    %2686 = vmatpush1.msra.mxu0 0.0
    %2687 = vmatprep.subr.mxu0 0.0
    %2688 = vmatpush1.msra.mxu0 0.0
    %2689 = vmatprep.subr.mxu0 0.0
    %2690 = vmatpush1.msra.mxu0 0.0
    %2691 = vmatprep.subr.mxu0 0.0
    %2692 = vmatpush1.msra.mxu0 0.0
    %2693 = vmatprep.subr.mxu0 0.0
    %2694 = vmatpush1.msra.mxu0 0.0
    %2695 = vmatprep.subr.mxu0 0.0
    %2696 = vmatpush1.msra.mxu0 0.0
    %2697 = vmatprep.subr.mxu0 0.0
    %2698 = vmatpush1.msra.mxu0 0.0
    %2699 = vmatprep.subr.mxu0 0.0
    %2700 = vmatpush1.msra.mxu0 0.0
    %2701 = vmatprep.subr.mxu0 0.0
    %2702 = vmatpush1.msra.mxu0 0.0
    %2703 = vmatprep.subr.mxu0 0.0
    %2704 = vmatpush1.msra.mxu0 0.0
    %2705 = vmatprep.subr.mxu0 0.0
    %2706 = vmatpush1.msra.mxu0 0.0
    %2707 = vmatprep.subr.mxu0 0.0
    %2708 = vmatpush1.msra.mxu0 0.0
    %2709 = vmatprep.subr.mxu0 0.0
    %2710 = vmatpush1.msra.mxu0 0.0
    %2711 = vmatprep.subr.mxu0 0.0
    %2712 = vmatpush1.msra.mxu0 0.0
    %2713 = vmatprep.subr.mxu0 0.0
    %2714 = vmatpush1.msra.mxu0 0.0
    %2715 = vmatprep.subr.mxu0 0.0
    %2716 = vmatpush1.msra.mxu0 0.0
    %2717 = vmatprep.subr.mxu0 0.0
    %2718 = vmatpush1.msra.mxu0 0.0
    %2719 = vmatprep.subr.mxu0 0.0
    %2720 = vmatpush1.msra.mxu0 0.0
    %2721 = vmatprep.subr.mxu0 0.0
    %2722 = vmatpush1.msra.mxu0 0.0
    %2723 = vmatprep.subr.mxu0 0.0
    %2724 = vmatpush1.msra.mxu0 0.0
    %2725 = vmatprep.subr.mxu0 0.0
    %2726 = vmatpush1.msra.mxu0 0.0
    %2727 = vmatprep.subr.mxu0 0.0
    %2728 = vmatpush1.msra.mxu0 0.0
    %2729 = vmatprep.subr.mxu0 0.0
    %2730 = vmatpush1.msra.mxu0 0.0
    %2731 = vmatprep.subr.mxu0 0.0
    %2732 = vmatpush1.msra.mxu0 0.0
    %2733 = vmatprep.subr.mxu0 0.0
    %2734 = vmatpush1.msra.mxu0 0.0
    %2735 = vmatprep.subr.mxu0 0.0
    %2736 = vmatpush1.msra.mxu0 0.0
    %2737 = vmatprep.mubr.f32.mxu0 0.0
    %2738 = vmatmul.mubr.f32.gmra.mrb[0].mxu0 %v2671
    %v2739 = vpop.f32.mrb[0].mxu0
    %v2740 = vadd.f32 0.0, %v2739
    %v2741 = vpop.f32.mrb[0].mxu0
    %2742 = vdwg.mxu0
    %s2743 = scalar_lea.vmem [#allocation14], 24
    %v2744 = vld [vmem:[%s2743] sm:$0xff]
    %v2746 = vsel %vm420, %v2667, 0
    %v2749 = vsel %vm420, %v2740, 0
    %2751 = vmatprep.subr.mxu0 0.0
    %2752 = vmatpush1.msra.mxu0 %v2744
    %2753 = vmatprep.subr.mxu0 0.0
    %2754 = vmatpush1.msra.mxu0 0.0
    %2755 = vmatprep.subr.mxu0 0.0
    %2756 = vmatpush1.msra.mxu0 0.0
    %2757 = vmatprep.subr.mxu0 0.0
    %2758 = vmatpush1.msra.mxu0 0.0
    %2759 = vmatprep.subr.mxu0 0.0
    %2760 = vmatpush1.msra.mxu0 0.0
    %2761 = vmatprep.subr.mxu0 0.0
    %2762 = vmatpush1.msra.mxu0 0.0
    %2763 = vmatprep.subr.mxu0 0.0
    %2764 = vmatpush1.msra.mxu0 0.0
    %2765 = vmatprep.subr.mxu0 0.0
    %2766 = vmatpush1.msra.mxu0 0.0
    %2767 = vmatprep.subr.mxu0 0.0
    %2768 = vmatpush1.msra.mxu0 0.0
    %2769 = vmatprep.subr.mxu0 0.0
    %2770 = vmatpush1.msra.mxu0 0.0
    %2771 = vmatprep.subr.mxu0 0.0
    %2772 = vmatpush1.msra.mxu0 0.0
    %2773 = vmatprep.subr.mxu0 0.0
    %2774 = vmatpush1.msra.mxu0 0.0
    %2775 = vmatprep.subr.mxu0 0.0
    %2776 = vmatpush1.msra.mxu0 0.0
    %2777 = vmatprep.subr.mxu0 0.0
    %2778 = vmatpush1.msra.mxu0 0.0
    %2779 = vmatprep.subr.mxu0 0.0
    %2780 = vmatpush1.msra.mxu0 0.0
    %2781 = vmatprep.subr.mxu0 0.0
    %2782 = vmatpush1.msra.mxu0 0.0
    %2783 = vmatprep.subr.mxu0 0.0
    %2784 = vmatpush1.msra.mxu0 0.0
    %2785 = vmatprep.subr.mxu0 0.0
    %2786 = vmatpush1.msra.mxu0 0.0
    %2787 = vmatprep.subr.mxu0 0.0
    %2788 = vmatpush1.msra.mxu0 0.0
    %2789 = vmatprep.subr.mxu0 0.0
    %2790 = vmatpush1.msra.mxu0 0.0
    %2791 = vmatprep.subr.mxu0 0.0
    %2792 = vmatpush1.msra.mxu0 0.0
    %2793 = vmatprep.subr.mxu0 0.0
    %2794 = vmatpush1.msra.mxu0 0.0
    %2795 = vmatprep.subr.mxu0 0.0
    %2796 = vmatpush1.msra.mxu0 0.0
    %2797 = vmatprep.subr.mxu0 0.0
    %2798 = vmatpush1.msra.mxu0 0.0
    %2799 = vmatprep.subr.mxu0 0.0
    %2800 = vmatpush1.msra.mxu0 0.0
    %2801 = vmatprep.subr.mxu0 0.0
    %2802 = vmatpush1.msra.mxu0 0.0
    %2803 = vmatprep.subr.mxu0 0.0
    %2804 = vmatpush1.msra.mxu0 0.0
    %2805 = vmatprep.subr.mxu0 0.0
    %2806 = vmatpush1.msra.mxu0 0.0
    %2807 = vmatprep.subr.mxu0 0.0
    %2808 = vmatpush1.msra.mxu0 0.0
    %2809 = vmatprep.subr.mxu0 0.0
    %2810 = vmatpush1.msra.mxu0 0.0
    %2811 = vmatprep.subr.mxu0 0.0
    %2812 = vmatpush1.msra.mxu0 0.0
    %2813 = vmatprep.subr.mxu0 0.0
    %2814 = vmatpush1.msra.mxu0 0.0
    %2815 = vmatprep.mubr.f32.mxu0 0.0
    %2816 = vmatmul.mubr.f32.gmra.mrb[0].mxu0 %v2746
    %v2817 = vpop.f32.mrb[0].mxu0
    %v2818 = vadd.f32 0.0, %v2817
    %v2819 = vpop.f32.mrb[0].mxu0
    %2820 = vmatprep.mubr.f32.mxu0 0.0
    %2821 = vmatmul.mubr.f32.gmra.mrb[0].mxu0 %v2749
    %v2822 = vpop.f32.mrb[0].mxu0
    %v2823 = vadd.f32 0.0, %v2822
    %v2824 = vpop.f32.mrb[0].mxu0
    %2825 = vdwg.mxu0
    %v2826 = vadd.f32 %v2157, %v2818
    %v2827 = vadd.f32 %v2158, %v2823
    %v2828 = vld [vmem:[#allocation16] sm:$0x1]
    %v2830 = vlaneseq
    %v2831 = vshrl.u32 %v2830, 7
    %v2832 = vsub.s32 0, %v2831
    %v2833 = vrot.slane %v2828, %v2832
    %v2835 = vadd.f32 %v2826, %v2833
    %v2836 = vadd.f32 %v2827, %v2833
    %2837 = vst.msk [vmem:[#allocation17] sm:$0xff] %vm166, %v2835
    %2838 = vst.msk [vmem:[#allocation17 + $0x8] sm:$0xff] %vm166, %v2836
    // Predicated region
    $region74: #{tpu_custom_call.1} parent=1 // pred_check
      _
    $region75: #{tpu_custom_call.1} parent=1 // pred_check_branch
      %2840 = sbr.rel (0) target = $region77
    $region76: #{tpu_custom_call.1} parent=1 // pred_region
      %s2842 = ssub.s32 256, 256
      %2843 = vsyncadd [#allocation4], %s2842
      %s2844 = sshll.u32 [#allocation17], 4
      %s2845 = int_to_ptr.vmem [resolvable:$true] %s2844
      %2850 = dma.vmem_to_hbm [thread:$0]  %s2845, 256, %s9, [#allocation4], 128, 128, 8
    $region77: #{tpu_custom_call.1} parent=1 // pred_fallthru
      _
    // Predicated region
    $region78: #{tpu_custom_call.1} parent=1 // pred_check
      _
    $region79: #{tpu_custom_call.1} parent=1 // pred_check_branch
      %2852 = sbr.rel (0) target = $region81
    $region80: #{tpu_custom_call.1} parent=1 // pred_region
      %2853 = dma.done [#allocation4], 256
    $region81: #{tpu_custom_call.1} parent=1 // pred_fallthru
      _
    %2854 = vsyncpa [#allocation3], 1
    %2855 = vsyncpa [#allocation6], 1
    %2856 = vsyncpa [#allocation9], 1
    %2857 = vsyncpa [#allocation12], 1
    %2858 = vsyncpa [#allocation15], 1
    %2859 = vsyncpa [#allocation4], 1

</llo_original>
